<compile_context>
chip_gen: v7x
topology: tpu7x:2x2x1
jax: 0.10.0
libtpu: 0.0.40
codegen_flags: <defaults>
</compile_context>

<pallas_src>
import functools

import jax
import jax.numpy as jnp
import numpy as np
from jax.experimental import pallas as pl
from jax.experimental.pallas import tpu as pltpu

EPS = 1e-5


def _toeplitz(w_hwio, W, dtype=jnp.bfloat16):
    """(3,3,Cin,Cout) HWIO conv weights -> (3, W*Cin, W*Cout) block-Toeplitz
    matrices, one per vertical tap; horizontal taps + W zero-padding baked in.
    Emitted in bf16 (MXU operand dtype); accumulation in the kernel is f32."""
    kh, kw, cin, cout = w_hwio.shape
    mats = []
    for ky in range(kh):
        m = jnp.zeros((W * cin, W * cout), jnp.float32)
        for kx in range(kw):
            # contribution: w_in = w_out + (kx - 1); out-of-range -> zero pad
            shift = jnp.eye(W, k=1 - kx, dtype=jnp.float32)
            m = m + jnp.kron(shift, w_hwio[ky, kx].astype(jnp.float32))
        mats.append(m)
    return jnp.stack(mats, axis=0).astype(dtype)


def prepare_constants(params, W):
    """Precompute the expanded conv weights and the BN lane->channel fold
    matrix ONCE (at init / parameter-update time), not per forward call."""
    hidden = params["w1"].shape[-1]
    return dict(
        m1=_toeplitz(params["w1"], W),                                  # (3, WC, WC) bf16
        m2=_toeplitz(params["w2"], W),                                  # (3, WC, WC) bf16
        fold=jnp.tile(jnp.eye(hidden, dtype=jnp.float32), (W, 1)),      # (WC, C) f32
    )


def _block_kernel(x_ref, m1_ref, m2_hbm_ref, fold_ref,
                  g1_ref, be1_ref, alpha_ref, g2_ref, be2_ref,
                  out_ref, m2_vmem, mid_ref, m2_sem, *, N, H, W, C):
    WC = W * C
    NH = N * H
    NHW = N * H * W

    # ---- kick off conv2's weight fetch; it only has to land before the
    #      second conv, so the DMA overlaps conv1 + bn1 + PReLU. ----
    m2_copy = pltpu.make_async_copy(m2_hbm_ref, m2_vmem, m2_sem)
    m2_copy.start()

    # ---- conv1: 3x3 conv as 3 dense (WC x WC) Toeplitz matmuls (ky taps);
    #      bf16 operands, f32 accumulation.  conv bias omitted: a per-channel
    #      constant cancels exactly under batch-statistics BatchNorm. ----
    acc1 = jnp.dot(x_ref[:, 1:H + 1, :].reshape(NH, WC), m1_ref[1],
                   preferred_element_type=jnp.float32)
    acc1 = acc1 + jnp.dot(x_ref[:, 0:H, :].reshape(NH, WC), m1_ref[0],
                          preferred_element_type=jnp.float32)
    acc1 = acc1 + jnp.dot(x_ref[:, 2:H + 2, :].reshape(NH, WC), m1_ref[2],
                          preferred_element_type=jnp.float32)

    fold = fold_ref[...]                       # (WC, C) 0/1 lane->channel fold

    def bn_scale_shift(acc, g_ref, be_ref):
        # Single-pass batch statistics (biased variance, eps=1e-5) in f32.
        # sum and sum-of-squares share ONE fold matmul; the channel->lane
        # expansion is a jnp.tile (VPU/XLU) instead of more MXU weight loads.
        s = jnp.sum(acc, axis=0, keepdims=True)           # (1, WC)
        ss = jnp.sum(acc * acc, axis=0, keepdims=True)    # (1, WC)
        folded = jnp.dot(jnp.concatenate([s, ss], axis=0), fold,
                         preferred_element_type=jnp.float32)   # (2, C)
        mean_c = folded[0:1, :] / NHW
        var_c = folded[1:2, :] / NHW - mean_c * mean_c
        scale_c = g_ref[...] * jax.lax.rsqrt(var_c + EPS)      # (1, C)
        shift_c = be_ref[...] - mean_c * scale_c               # (1, C)
        return jnp.tile(scale_c, (1, W)), jnp.tile(shift_c, (1, W))   # (1, WC)

    # ---- bn1 + PReLU (f32) ----
    scale1, shift1 = bn_scale_shift(acc1, g1_ref, be1_ref)
    alpha = alpha_ref[0, 0]
    out2 = acc1 * scale1 + shift1
    out3 = jnp.where(out2 >= 0, out2, alpha * out2)

    # ---- H-pad the intermediate into bf16 VMEM scratch (only the two border
    #      rows are zeroed).  conv2 reads all three taps from this scratch so
    #      acc1/out2/out3 do not stay live across the second conv. ----
    mid_ref[:, 0:1, :] = jnp.zeros((N, 1, WC), mid_ref.dtype)
    mid_ref[:, H + 1:H + 2, :] = jnp.zeros((N, 1, WC), mid_ref.dtype)
    mid_ref[:, 1:H + 1, :] = out3.astype(mid_ref.dtype).reshape(N, H, WC)

    # ---- conv2 (weights arrive via the async copy started at kernel entry;
    #      bias omitted, same BN-cancellation argument as conv1) ----
    m2_copy.wait()
    acc2 = jnp.dot(mid_ref[:, 1:H + 1, :].reshape(NH, WC), m2_vmem[1],
                   preferred_element_type=jnp.float32)
    acc2 = acc2 + jnp.dot(mid_ref[:, 0:H, :].reshape(NH, WC), m2_vmem[0],
                          preferred_element_type=jnp.float32)
    acc2 = acc2 + jnp.dot(mid_ref[:, 2:H + 2, :].reshape(NH, WC), m2_vmem[2],
                          preferred_element_type=jnp.float32)

    # ---- bn2 + residual add; residual slab reloaded from VMEM (cheaper than
    #      keeping it live through both convs); lane-dense f32 store. ----
    scale2, shift2 = bn_scale_shift(acc2, g2_ref, be2_ref)
    x_res = x_ref[:, 1:H + 1, :].reshape(NH, WC).astype(jnp.float32)
    out_ref[...] = x_res + acc2 * scale2 + shift2


def block_forward(x_nchw, params, consts):
    N, C, H, W = x_nchw.shape
    hidden = params["w1"].shape[-1]
    assert hidden == C, "residual add requires in_channels == hidden"
    WC = W * hidden

    # NCHW -> NHWC -> lane-dense (N, H+2, W*C) bf16; pad H only (the W zero
    # padding is baked into the Toeplitz matrices).  Wrapper-side layout only.
    x = jnp.transpose(x_nchw, (0, 2, 3, 1)).astype(jnp.float32)
    x3 = x.reshape(N, H, WC)
    x3 = jnp.pad(x3, ((0, 0), (1, 1), (0, 0))).astype(jnp.bfloat16)

    kernel = functools.partial(_block_kernel, N=N, H=H, W=W, C=hidden)

    vspec = pl.BlockSpec(memory_space=pltpu.MemorySpace.VMEM)
    sspec = pl.BlockSpec(memory_space=pltpu.MemorySpace.SMEM)
    hbm_spec = pl.BlockSpec(memory_space=pl.ANY)      # m2 stays in HBM

    out2d = pl.pallas_call(
        kernel,
        out_shape=jax.ShapeDtypeStruct((N * H, WC), jnp.float32),
        in_specs=[vspec,            # x3 (bf16, H-padded, lane-dense)
                  vspec,            # m1 (bf16) -> VMEM before the kernel runs
                  hbm_spec,         # m2 (bf16) -> fetched by in-kernel DMA
                  vspec,            # fold (f32)
                  vspec, vspec,     # gamma1, beta1
                  sspec,            # prelu alpha (scalar, SMEM)
                  vspec, vspec],    # gamma2, beta2
        out_specs=vspec,
        scratch_shapes=[
            pltpu.VMEM((3, WC, WC), jnp.bfloat16),      # conv2 weights (DMA dst)
            pltpu.VMEM((N, H + 2, WC), jnp.bfloat16),   # H-padded intermediate
            pltpu.SemaphoreType.DMA(()),                # m2 copy completion
        ],
        compiler_params=pltpu.CompilerParams(vmem_limit_bytes=16 * 1024 * 1024),
    )(x3, consts["m1"], consts["m2"], consts["fold"],
      params["g1"], params["be1"], params["alpha"], params["g2"], params["be2"])

    out = out2d.reshape(N, H, W, hidden)
    return jnp.transpose(out, (0, 3, 1, 2))            # back to NCHW, f32


def init_params(key, in_channels, hidden):
    k1, k2, k3, k4, k5, k6, k7, k8 = jax.random.split(key, 8)
    fan1 = in_channels * 9
    fan2 = hidden * 9
    return dict(
        w1=jax.random.normal(k1, (3, 3, in_channels, hidden), jnp.float32) / np.sqrt(fan1),
        b1=0.1 * jax.random.normal(k2, (1, hidden), jnp.float32),
        g1=1.0 + 0.1 * jax.random.normal(k3, (1, hidden), jnp.float32),
        be1=0.1 * jax.random.normal(k4, (1, hidden), jnp.float32),
        alpha=jnp.full((1, 1), 0.25, jnp.float32),   # nn.PReLU(num_parameters=1, init=0.25)
        w2=jax.random.normal(k5, (3, 3, hidden, hidden), jnp.float32) / np.sqrt(fan2),
        b2=0.1 * jax.random.normal(k6, (1, hidden), jnp.float32),
        g2=1.0 + 0.1 * jax.random.normal(k7, (1, hidden), jnp.float32),
        be2=0.1 * jax.random.normal(k8, (1, hidden), jnp.float32),
    )


def ref_block(x_nchw, params):
    """Pure-JAX f32 reference (PyTorch training-mode semantics, incl. conv biases)."""
    x = jnp.transpose(x_nchw, (0, 2, 3, 1)).astype(jnp.float32)

    def conv(y, w, b):
        o = jax.lax.conv_general_dilated(
            y, w, window_strides=(1, 1), padding=((1, 1), (1, 1)),
            dimension_numbers=("NHWC", "HWIO", "NHWC"))
        return o + b[0]

    def bn(y, g, be):
        m = jnp.mean(y, axis=(0, 1, 2), keepdims=True)
        v = jnp.mean((y - m) ** 2, axis=(0, 1, 2), keepdims=True)
        return (y - m) / jnp.sqrt(v + EPS) * g[0] + be[0]

    o = conv(x, params["w1"], params["b1"])
    o = bn(o, params["g1"], params["be1"])
    a = params["alpha"][0, 0]
    o = jnp.where(o >= 0, o, a * o)
    o = conv(o, params["w2"], params["b2"])
    o = bn(o, params["g2"], params["be2"])
    return jnp.transpose(x + o, (0, 3, 1, 2))


if __name__ == "__main__":
    key = jax.random.PRNGKey(0)
    kx, kp = jax.random.split(key)

    # batch=2, in_channels=hidden=32, spatial=16x16 (NCHW); the module's
    # residual add requires in_channels == hidden.
    N, C, H, W = 2, 32, 16, 16
    x = jax.random.normal(kx, (N, C, H, W), jnp.float32)
    params = init_params(kp, C, C)

    # Expanded Toeplitz weights / fold matrix computed once, not per forward.
    consts = prepare_constants(params, W)

    out = jax.block_until_ready(block_forward(x, params, consts))
    assert out.shape == (N, C, H, W)

    ref = jax.block_until_ready(ref_block(x, params))
    # bf16 MXU operands (f32 accumulation) -> slightly wider tolerance than
    # the all-f32 reference; real layout/BN bugs would be orders larger.
    if not np.allclose(np.asarray(out), np.asarray(ref), atol=5e-2, rtol=5e-2):
        raise AssertionError("Pallas Block output does not match JAX reference")

    # TODO(synk): BatchNorm running_mean/running_var updates (a training-time
    # side effect on module buffers) are not modeled; forward output matches.
    print("KERNEL_OK")
</pallas_src>

<mosaic_0001>
module attributes {stable_mosaic.version = 11 : i64} {
  func.func @_block_kernel(%arg0: memref<2x18x512xbf16, #tpu.memory_space<vmem>>, %arg1: memref<3x512x512xbf16, #tpu.memory_space<vmem>>, %arg2: memref<3x512x512xbf16, #tpu.memory_space<any>>, %arg3: memref<512x32xf32, #tpu.memory_space<vmem>>, %arg4: memref<1x32xf32, #tpu.memory_space<vmem>>, %arg5: memref<1x32xf32, #tpu.memory_space<vmem>>, %arg6: memref<1x1xf32, #tpu.memory_space<smem>>, %arg7: memref<1x32xf32, #tpu.memory_space<vmem>>, %arg8: memref<1x32xf32, #tpu.memory_space<vmem>>, %arg9: memref<32x512xf32, #tpu.memory_space<vmem>>, %arg10: memref<3x512x512xbf16, #tpu.memory_space<vmem>>, %arg11: memref<2x18x512xbf16, #tpu.memory_space<vmem>>, %arg12: memref<!tpu.dma_semaphore, #tpu.memory_space<semaphore_mem>>) attributes {dimension_semantics = [], scalar_prefetch = 0 : i64, scratch_operands = 3 : i64, tpu.core_type = #tpu.core_type<tc>} {
    tpu.enqueue_dma source(%arg2 : memref<3x512x512xbf16, #tpu.memory_space<any>>) target(%arg10 : memref<3x512x512xbf16, #tpu.memory_space<vmem>>) target_semaphore(%arg12 : memref<!tpu.dma_semaphore, #tpu.memory_space<semaphore_mem>>)
    %c0 = arith.constant 0 : index
    %c1 = arith.constant 1 : index
    %c0_0 = arith.constant 0 : index
    %0 = vector.load %arg0[%c0, %c1, %c0_0] : memref<2x18x512xbf16, #tpu.memory_space<vmem>>, vector<2x16x512xbf16>
    %1 = vector.shape_cast %0 : vector<2x16x512xbf16> to vector<32x512xbf16>
    %c1_1 = arith.constant 1 : index
    %c0_2 = arith.constant 0 : index
    %c0_3 = arith.constant 0 : index
    %2 = vector.load %arg1[%c1_1, %c0_2, %c0_3] : memref<3x512x512xbf16, #tpu.memory_space<vmem>>, vector<1x512x512xbf16>
    %3 = vector.shape_cast %2 : vector<1x512x512xbf16> to vector<512x512xbf16>
    %cst = arith.constant dense<0.000000e+00> : vector<32x512xf32>
    %4 = tpu.matmul %1, %3, %cst {dimension_numbers = #tpu.dot_dimension_numbers<[1], [0], [0], [1], [0, 0, 1, 1], [], []>} : vector<32x512xbf16>, vector<512x512xbf16>, vector<32x512xf32> -> vector<32x512xf32>
    %c0_4 = arith.constant 0 : index
    %c0_5 = arith.constant 0 : index
    %c0_6 = arith.constant 0 : index
    %5 = vector.load %arg0[%c0_4, %c0_5, %c0_6] : memref<2x18x512xbf16, #tpu.memory_space<vmem>>, vector<2x16x512xbf16>
    %6 = vector.shape_cast %5 : vector<2x16x512xbf16> to vector<32x512xbf16>
    %c0_7 = arith.constant 0 : index
    %c0_8 = arith.constant 0 : index
    %c0_9 = arith.constant 0 : index
    %7 = vector.load %arg1[%c0_7, %c0_8, %c0_9] : memref<3x512x512xbf16, #tpu.memory_space<vmem>>, vector<1x512x512xbf16>
    %8 = vector.shape_cast %7 : vector<1x512x512xbf16> to vector<512x512xbf16>
    %cst_10 = arith.constant dense<0.000000e+00> : vector<32x512xf32>
    %9 = tpu.matmul %6, %8, %cst_10 {dimension_numbers = #tpu.dot_dimension_numbers<[1], [0], [0], [1], [0, 0, 1, 1], [], []>} : vector<32x512xbf16>, vector<512x512xbf16>, vector<32x512xf32> -> vector<32x512xf32>
    %10 = arith.addf %4, %9 : vector<32x512xf32>
    %c0_11 = arith.constant 0 : index
    %c2 = arith.constant 2 : index
    %c0_12 = arith.constant 0 : index
    %11 = vector.load %arg0[%c0_11, %c2, %c0_12] : memref<2x18x512xbf16, #tpu.memory_space<vmem>>, vector<2x16x512xbf16>
    %12 = vector.shape_cast %11 : vector<2x16x512xbf16> to vector<32x512xbf16>
    %c2_13 = arith.constant 2 : index
    %c0_14 = arith.constant 0 : index
    %c0_15 = arith.constant 0 : index
    %13 = vector.load %arg1[%c2_13, %c0_14, %c0_15] : memref<3x512x512xbf16, #tpu.memory_space<vmem>>, vector<1x512x512xbf16>
    %14 = vector.shape_cast %13 : vector<1x512x512xbf16> to vector<512x512xbf16>
    %cst_16 = arith.constant dense<0.000000e+00> : vector<32x512xf32>
    %15 = tpu.matmul %12, %14, %cst_16 {dimension_numbers = #tpu.dot_dimension_numbers<[1], [0], [0], [1], [0, 0, 1, 1], [], []>} : vector<32x512xbf16>, vector<512x512xbf16>, vector<32x512xf32> -> vector<32x512xf32>
    %16 = arith.addf %10, %15 : vector<32x512xf32>
    %c0_17 = arith.constant 0 : index
    %c0_18 = arith.constant 0 : index
    %17 = vector.load %arg3[%c0_17, %c0_18] : memref<512x32xf32, #tpu.memory_space<vmem>>, vector<512x32xf32>
    %cst_19 = arith.constant dense<0.000000e+00> : vector<512xf32>
    %18 = vector.multi_reduction <add>, %16, %cst_19 [0] : vector<32x512xf32> to vector<512xf32>
    %19 = vector.shape_cast %18 : vector<512xf32> to vector<1x512xf32>
    %20 = arith.mulf %16, %16 : vector<32x512xf32>
    %cst_20 = arith.constant dense<0.000000e+00> : vector<512xf32>
    %21 = vector.multi_reduction <add>, %20, %cst_20 [0] : vector<32x512xf32> to vector<512xf32>
    %22 = vector.shape_cast %21 : vector<512xf32> to vector<1x512xf32>
    %23 = tpu.concatenate %19, %22 in 0 : vector<1x512xf32>, vector<1x512xf32> -> vector<2x512xf32>
    %cst_21 = arith.constant dense<0.000000e+00> : vector<2x32xf32>
    %24 = tpu.matmul %23, %17, %cst_21 {dimension_numbers = #tpu.dot_dimension_numbers<[1], [0], [0], [1], [0, 0, 1, 1], [], []>} : vector<2x512xf32>, vector<512x32xf32>, vector<2x32xf32> -> vector<2x32xf32>
    %25 = vector.extract_strided_slice %24 {offsets = [0, 0], sizes = [1, 32], strides = [1, 1]} : vector<2x32xf32> to vector<1x32xf32>
    %cst_22 = arith.constant 5.120000e+02 : f32
    %26 = vector.broadcast %cst_22 : f32 to vector<1x32xf32>
    %27 = arith.divf %25, %26 : vector<1x32xf32>
    %28 = vector.extract_strided_slice %24 {offsets = [1, 0], sizes = [1, 32], strides = [1, 1]} : vector<2x32xf32> to vector<1x32xf32>
    %cst_23 = arith.constant 5.120000e+02 : f32
    %29 = vector.broadcast %cst_23 : f32 to vector<1x32xf32>
    %30 = arith.divf %28, %29 : vector<1x32xf32>
    %31 = arith.mulf %27, %27 : vector<1x32xf32>
    %32 = arith.subf %30, %31 : vector<1x32xf32>
    %c0_24 = arith.constant 0 : index
    %c0_25 = arith.constant 0 : index
    %33 = vector.load %arg4[%c0_24, %c0_25] : memref<1x32xf32, #tpu.memory_space<vmem>>, vector<1x32xf32>
    %cst_26 = arith.constant 9.99999974E-6 : f32
    %34 = vector.broadcast %cst_26 : f32 to vector<1x32xf32>
    %35 = arith.addf %32, %34 : vector<1x32xf32>
    %36 = math.rsqrt %35 : vector<1x32xf32>
    %37 = arith.mulf %33, %36 : vector<1x32xf32>
    %c0_27 = arith.constant 0 : index
    %c0_28 = arith.constant 0 : index
    %38 = vector.load %arg5[%c0_27, %c0_28] : memref<1x32xf32, #tpu.memory_space<vmem>>, vector<1x32xf32>
    %39 = arith.mulf %27, %37 : vector<1x32xf32>
    %40 = arith.subf %38, %39 : vector<1x32xf32>
    %41 = tpu.concatenate %37, %37, %37, %37, %37, %37, %37, %37, %37, %37, %37, %37, %37, %37, %37, %37 in 1 : vector<1x32xf32>, vector<1x32xf32>, vector<1x32xf32>, vector<1x32xf32>, vector<1x32xf32>, vector<1x32xf32>, vector<1x32xf32>, vector<1x32xf32>, vector<1x32xf32>, vector<1x32xf32>, vector<1x32xf32>, vector<1x32xf32>, vector<1x32xf32>, vector<1x32xf32>, vector<1x32xf32>, vector<1x32xf32> -> vector<1x512xf32>
    %42 = tpu.concatenate %40, %40, %40, %40, %40, %40, %40, %40, %40, %40, %40, %40, %40, %40, %40, %40 in 1 : vector<1x32xf32>, vector<1x32xf32>, vector<1x32xf32>, vector<1x32xf32>, vector<1x32xf32>, vector<1x32xf32>, vector<1x32xf32>, vector<1x32xf32>, vector<1x32xf32>, vector<1x32xf32>, vector<1x32xf32>, vector<1x32xf32>, vector<1x32xf32>, vector<1x32xf32>, vector<1x32xf32>, vector<1x32xf32> -> vector<1x512xf32>
    %c0_29 = arith.constant 0 : index
    %c0_30 = arith.constant 0 : index
    %43 = memref.load %arg6[%c0_29, %c0_30] : memref<1x1xf32, #tpu.memory_space<smem>>
    %44 = vector.broadcast %41 : vector<1x512xf32> to vector<32x512xf32>
    %45 = arith.mulf %16, %44 : vector<32x512xf32>
    %46 = vector.broadcast %42 : vector<1x512xf32> to vector<32x512xf32>
    %47 = arith.addf %45, %46 : vector<32x512xf32>
    %cst_31 = arith.constant 0.000000e+00 : f32
    %48 = vector.broadcast %cst_31 : f32 to vector<32x512xf32>
    %49 = arith.cmpf oge, %47, %48 : vector<32x512xf32>
    %50 = vector.broadcast %43 : f32 to vector<32x512xf32>
    %51 = arith.mulf %50, %47 : vector<32x512xf32>
    %52 = arith.select %49, %47, %51 : vector<32x512xi1>, vector<32x512xf32>
    %cst_32 = arith.constant 0.000000e+00 : bf16
    %53 = vector.broadcast %cst_32 : bf16 to vector<2x1x512xbf16>
    %c0_33 = arith.constant 0 : index
    %c0_34 = arith.constant 0 : index
    %c0_35 = arith.constant 0 : index
    %54 = vector.load %arg11[%c0_33, %c0_34, %c0_35] : memref<2x18x512xbf16, #tpu.memory_space<vmem>>, vector<2x1x512xbf16>
    tpu.vector_store %arg11[%c0_33, %c0_34, %c0_35], %53 {strides = array<i32>} : memref<2x18x512xbf16, #tpu.memory_space<vmem>>, vector<2x1x512xbf16>,
    %cst_36 = arith.constant 0.000000e+00 : bf16
    %55 = vector.broadcast %cst_36 : bf16 to vector<2x1x512xbf16>
    %c0_37 = arith.constant 0 : index
    %c17 = arith.constant 17 : index
    %c0_38 = arith.constant 0 : index
    %56 = vector.load %arg11[%c0_37, %c17, %c0_38] : memref<2x18x512xbf16, #tpu.memory_space<vmem>>, vector<2x1x512xbf16>
    tpu.vector_store %arg11[%c0_37, %c17, %c0_38], %55 {strides = array<i32>} : memref<2x18x512xbf16, #tpu.memory_space<vmem>>, vector<2x1x512xbf16>,
    %57 = arith.truncf %52 : vector<32x512xf32> to vector<32x512xbf16>
    %58 = vector.shape_cast %57 : vector<32x512xbf16> to vector<2x16x512xbf16>
    %c0_39 = arith.constant 0 : index
    %c1_40 = arith.constant 1 : index
    %c0_41 = arith.constant 0 : index
    %59 = vector.load %arg11[%c0_39, %c1_40, %c0_41] : memref<2x18x512xbf16, #tpu.memory_space<vmem>>, vector<2x16x512xbf16>
    tpu.vector_store %arg11[%c0_39, %c1_40, %c0_41], %58 {strides = array<i32>} : memref<2x18x512xbf16, #tpu.memory_space<vmem>>, vector<2x16x512xbf16>,
    tpu.wait_dma2 semaphore(%arg12 : memref<!tpu.dma_semaphore, #tpu.memory_space<semaphore_mem>>) src(%arg2 : memref<3x512x512xbf16, #tpu.memory_space<any>>) dst(%arg10 : memref<3x512x512xbf16, #tpu.memory_space<vmem>>)
    %c0_42 = arith.constant 0 : index
    %c1_43 = arith.constant 1 : index
    %c0_44 = arith.constant 0 : index
    %60 = vector.load %arg11[%c0_42, %c1_43, %c0_44] : memref<2x18x512xbf16, #tpu.memory_space<vmem>>, vector<2x16x512xbf16>
    %61 = vector.shape_cast %60 : vector<2x16x512xbf16> to vector<32x512xbf16>
    %c1_45 = arith.constant 1 : index
    %c0_46 = arith.constant 0 : index
    %c0_47 = arith.constant 0 : index
    %62 = vector.load %arg10[%c1_45, %c0_46, %c0_47] : memref<3x512x512xbf16, #tpu.memory_space<vmem>>, vector<1x512x512xbf16>
    %63 = vector.shape_cast %62 : vector<1x512x512xbf16> to vector<512x512xbf16>
    %cst_48 = arith.constant dense<0.000000e+00> : vector<32x512xf32>
    %64 = tpu.matmul %61, %63, %cst_48 {dimension_numbers = #tpu.dot_dimension_numbers<[1], [0], [0], [1], [0, 0, 1, 1], [], []>} : vector<32x512xbf16>, vector<512x512xbf16>, vector<32x512xf32> -> vector<32x512xf32>
    %c0_49 = arith.constant 0 : index
    %c0_50 = arith.constant 0 : index
    %c0_51 = arith.constant 0 : index
    %65 = vector.load %arg11[%c0_49, %c0_50, %c0_51] : memref<2x18x512xbf16, #tpu.memory_space<vmem>>, vector<2x16x512xbf16>
    %66 = vector.shape_cast %65 : vector<2x16x512xbf16> to vector<32x512xbf16>
    %c0_52 = arith.constant 0 : index
    %c0_53 = arith.constant 0 : index
    %c0_54 = arith.constant 0 : index
    %67 = vector.load %arg10[%c0_52, %c0_53, %c0_54] : memref<3x512x512xbf16, #tpu.memory_space<vmem>>, vector<1x512x512xbf16>
    %68 = vector.shape_cast %67 : vector<1x512x512xbf16> to vector<512x512xbf16>
    %cst_55 = arith.constant dense<0.000000e+00> : vector<32x512xf32>
    %69 = tpu.matmul %66, %68, %cst_55 {dimension_numbers = #tpu.dot_dimension_numbers<[1], [0], [0], [1], [0, 0, 1, 1], [], []>} : vector<32x512xbf16>, vector<512x512xbf16>, vector<32x512xf32> -> vector<32x512xf32>
    %70 = arith.addf %64, %69 : vector<32x512xf32>
    %c0_56 = arith.constant 0 : index
    %c2_57 = arith.constant 2 : index
    %c0_58 = arith.constant 0 : index
    %71 = vector.load %arg11[%c0_56, %c2_57, %c0_58] : memref<2x18x512xbf16, #tpu.memory_space<vmem>>, vector<2x16x512xbf16>
    %72 = vector.shape_cast %71 : vector<2x16x512xbf16> to vector<32x512xbf16>
    %c2_59 = arith.constant 2 : index
    %c0_60 = arith.constant 0 : index
    %c0_61 = arith.constant 0 : index
    %73 = vector.load %arg10[%c2_59, %c0_60, %c0_61] : memref<3x512x512xbf16, #tpu.memory_space<vmem>>, vector<1x512x512xbf16>
    %74 = vector.shape_cast %73 : vector<1x512x512xbf16> to vector<512x512xbf16>
    %cst_62 = arith.constant dense<0.000000e+00> : vector<32x512xf32>
    %75 = tpu.matmul %72, %74, %cst_62 {dimension_numbers = #tpu.dot_dimension_numbers<[1], [0], [0], [1], [0, 0, 1, 1], [], []>} : vector<32x512xbf16>, vector<512x512xbf16>, vector<32x512xf32> -> vector<32x512xf32>
    %76 = arith.addf %70, %75 : vector<32x512xf32>
    %cst_63 = arith.constant dense<0.000000e+00> : vector<512xf32>
    %77 = vector.multi_reduction <add>, %76, %cst_63 [0] : vector<32x512xf32> to vector<512xf32>
    %78 = vector.shape_cast %77 : vector<512xf32> to vector<1x512xf32>
    %79 = arith.mulf %76, %76 : vector<32x512xf32>
    %cst_64 = arith.constant dense<0.000000e+00> : vector<512xf32>
    %80 = vector.multi_reduction <add>, %79, %cst_64 [0] : vector<32x512xf32> to vector<512xf32>
    %81 = vector.shape_cast %80 : vector<512xf32> to vector<1x512xf32>
    %82 = tpu.concatenate %78, %81 in 0 : vector<1x512xf32>, vector<1x512xf32> -> vector<2x512xf32>
    %cst_65 = arith.constant dense<0.000000e+00> : vector<2x32xf32>
    %83 = tpu.matmul %82, %17, %cst_65 {dimension_numbers = #tpu.dot_dimension_numbers<[1], [0], [0], [1], [0, 0, 1, 1], [], []>} : vector<2x512xf32>, vector<512x32xf32>, vector<2x32xf32> -> vector<2x32xf32>
    %84 = vector.extract_strided_slice %83 {offsets = [0, 0], sizes = [1, 32], strides = [1, 1]} : vector<2x32xf32> to vector<1x32xf32>
    %cst_66 = arith.constant 5.120000e+02 : f32
    %85 = vector.broadcast %cst_66 : f32 to vector<1x32xf32>
    %86 = arith.divf %84, %85 : vector<1x32xf32>
    %87 = vector.extract_strided_slice %83 {offsets = [1, 0], sizes = [1, 32], strides = [1, 1]} : vector<2x32xf32> to vector<1x32xf32>
    %cst_67 = arith.constant 5.120000e+02 : f32
    %88 = vector.broadcast %cst_67 : f32 to vector<1x32xf32>
    %89 = arith.divf %87, %88 : vector<1x32xf32>
    %90 = arith.mulf %86, %86 : vector<1x32xf32>
    %91 = arith.subf %89, %90 : vector<1x32xf32>
    %c0_68 = arith.constant 0 : index
    %c0_69 = arith.constant 0 : index
    %92 = vector.load %arg7[%c0_68, %c0_69] : memref<1x32xf32, #tpu.memory_space<vmem>>, vector<1x32xf32>
    %cst_70 = arith.constant 9.99999974E-6 : f32
    %93 = vector.broadcast %cst_70 : f32 to vector<1x32xf32>
    %94 = arith.addf %91, %93 : vector<1x32xf32>
    %95 = math.rsqrt %94 : vector<1x32xf32>
    %96 = arith.mulf %92, %95 : vector<1x32xf32>
    %c0_71 = arith.constant 0 : index
    %c0_72 = arith.constant 0 : index
    %97 = vector.load %arg8[%c0_71, %c0_72] : memref<1x32xf32, #tpu.memory_space<vmem>>, vector<1x32xf32>
    %98 = arith.mulf %86, %96 : vector<1x32xf32>
    %99 = arith.subf %97, %98 : vector<1x32xf32>
    %100 = tpu.concatenate %96, %96, %96, %96, %96, %96, %96, %96, %96, %96, %96, %96, %96, %96, %96, %96 in 1 : vector<1x32xf32>, vector<1x32xf32>, vector<1x32xf32>, vector<1x32xf32>, vector<1x32xf32>, vector<1x32xf32>, vector<1x32xf32>, vector<1x32xf32>, vector<1x32xf32>, vector<1x32xf32>, vector<1x32xf32>, vector<1x32xf32>, vector<1x32xf32>, vector<1x32xf32>, vector<1x32xf32>, vector<1x32xf32> -> vector<1x512xf32>
    %101 = tpu.concatenate %99, %99, %99, %99, %99, %99, %99, %99, %99, %99, %99, %99, %99, %99, %99, %99 in 1 : vector<1x32xf32>, vector<1x32xf32>, vector<1x32xf32>, vector<1x32xf32>, vector<1x32xf32>, vector<1x32xf32>, vector<1x32xf32>, vector<1x32xf32>, vector<1x32xf32>, vector<1x32xf32>, vector<1x32xf32>, vector<1x32xf32>, vector<1x32xf32>, vector<1x32xf32>, vector<1x32xf32>, vector<1x32xf32> -> vector<1x512xf32>
    %c0_73 = arith.constant 0 : index
    %c1_74 = arith.constant 1 : index
    %c0_75 = arith.constant 0 : index
    %102 = vector.load %arg0[%c0_73, %c1_74, %c0_75] : memref<2x18x512xbf16, #tpu.memory_space<vmem>>, vector<2x16x512xbf16>
    %103 = vector.shape_cast %102 : vector<2x16x512xbf16> to vector<32x512xbf16>
    %104 = arith.extf %103 : vector<32x512xbf16> to vector<32x512xf32>
    %105 = vector.broadcast %100 : vector<1x512xf32> to vector<32x512xf32>
    %106 = arith.mulf %76, %105 : vector<32x512xf32>
    %107 = arith.addf %104, %106 : vector<32x512xf32>
    %108 = vector.broadcast %101 : vector<1x512xf32> to vector<32x512xf32>
    %109 = arith.addf %107, %108 : vector<32x512xf32>
    %c0_76 = arith.constant 0 : index
    %c0_77 = arith.constant 0 : index
    %110 = vector.load %arg9[%c0_76, %c0_77] : memref<32x512xf32, #tpu.memory_space<vmem>>, vector<32x512xf32>
    tpu.vector_store %arg9[%c0_76, %c0_77], %109 {strides = array<i32>} : memref<32x512xf32, #tpu.memory_space<vmem>>, vector<32x512xf32>,
    return
  }
}

</mosaic_0001>

<llo_original>
// kernel: tpu_custom_call.1
$region0: #{tpu_custom_call.1}
  #allocation0 [shape = 'u32[]', space=smem, size = 0x4, offset = 0x4, fixed_abs, tag = 'smem constant byte address 0x4 - core index']
  #allocation1 [shape = 'u32[144,128]{1,0:T(1,128)}', space=vmem, size = 0x12000, scoped, tag = 'internal scratch']
  #allocation2 [shape = 'bf16[3,512,512]{2,1,0:T(16,128)(2,1)}', space=vmem, size = 0x180000, scoped, tag = 'scratch operand']
  #allocation3 [shape = 'bf16[2,18,512]{2,1,0:T(8,128)(2,1)}', space=vmem, size = 0xc000, scoped, tag = 'scratch operand']
  #allocation4 [shape = 's32[1]{0}', space=sflag, size = 0x4, scoped, tag = 'scratch operand']
  #allocation5 [shape = 'f32[1,1]{1,0:T(1,128)S(6)}', space=smem, size = 0x200, scoped, tag = 'scoped memory for tpu_custom_call.1']
  #allocation16 [shape = 's32[]', space=sflag, size = 0x4, offset = 0, fixed_abs, tag = 'sflag constant byte address 0x0 - dummy sync flag']
  %s0 = inlined_call_operand.vmem [shape: bf16[2,18,512], index: 0, kind: input, shape index: {}]
  %s1 = inlined_call_operand.hbm [shape: bf16[3,512,512], index: 1, kind: input, shape index: {}]
  %s2 = inlined_call_operand.hbm [shape: bf16[3,512,512], index: 2, kind: input, shape index: {}]
  %s3 = inlined_call_operand.vmem [shape: f32[512,32], index: 3, kind: input, shape index: {}]
  %s4 = inlined_call_operand.hbm [shape: f32[1,32], index: 4, kind: input, shape index: {}]
  %s5 = inlined_call_operand.hbm [shape: f32[1,32], index: 5, kind: input, shape index: {}]
  %s6 = inlined_call_operand.<no memory space> [shape: f32[1,1], index: 6, kind: input, shape index: {}]
  %s7 = inlined_call_operand.hbm [shape: f32[1,32], index: 7, kind: input, shape index: {}]
  %s8 = inlined_call_operand.hbm [shape: f32[1,32], index: 8, kind: input, shape index: {}]
  %s9 = inlined_call_operand.hbm [shape: f32[32,512], index: 9, kind: output, shape index: {}]
  %s10 = sld [smem:[#allocation0]]
  $region62: #{tpu_custom_call.1} parent=0
    _
  %s12 = ssub.s32 1, %s10
  %s13 = scalar_select 0, %s12, %s10
  %14 = sst [smem:[#allocation5]] %s6
  $region1: #{tpu_custom_call.1} parent=0
    #allocation6 [shape = 'u8[1572864]{0}', space=vmem, size = 0x180000, scoped, tag = 'input window, operand 1, single buffered']
    #allocation7 [shape = 's32[1]{0}', space=sflag, size = 0x4, scoped, tag = 'scoped memory for tpu_custom_call.1']
    #allocation8 [shape = 's32[1]{0}', space=sflag, size = 0x4, scoped, tag = 'scoped memory for tpu_custom_call.1']
    #allocation9 [shape = 'u8[512]{0}', space=vmem, size = 0x400, scoped, tag = 'input window, operand 4, single buffered']
    #allocation10 [shape = 's32[1]{0}', space=sflag, size = 0x4, scoped, tag = 'scoped memory for tpu_custom_call.1']
    #allocation11 [shape = 'u8[512]{0}', space=vmem, size = 0x400, scoped, tag = 'input window, operand 5, single buffered']
    #allocation12 [shape = 'u8[512]{0}', space=vmem, size = 0x400, scoped, tag = 'input window, operand 7, single buffered']
    #allocation13 [shape = 's32[1]{0}', space=sflag, size = 0x4, scoped, tag = 'scoped memory for tpu_custom_call.1']
    #allocation14 [shape = 'u8[512]{0}', space=vmem, size = 0x400, scoped, tag = 'input window, operand 8, single buffered']
    #allocation15 [shape = 'u8[65536]{0}', space=vmem, size = 0x10000, scoped, tag = 'output window, operand 0, single buffered']
    #allocation17 [shape = 'u32[9]{0}', space=smem, size = 0x24, scoped, tag = 'DMA stride descriptor']
    %15 = vsyncpa [#allocation7], 0
    %16 = vsyncpa [#allocation10], 0
    %17 = vsyncpa [#allocation13], 0
    %18 = vsyncpa [#allocation8], 0
    // Predicated region
    $region2: #{tpu_custom_call.1} parent=1 // pred_check
      _
    $region3: #{tpu_custom_call.1} parent=1 // pred_check_branch
      %20 = sbr.rel (0) target = $region5
    $region4: #{tpu_custom_call.1} parent=1 // pred_region
      _
    $region5: #{tpu_custom_call.1} parent=1 // pred_fallthru
      _
    // Predicated region
    $region6: #{tpu_custom_call.1} parent=1 // pred_check
      _
    $region7: #{tpu_custom_call.1} parent=1 // pred_check_branch
      %22 = sbr.rel (0) target = $region9
    $region8: #{tpu_custom_call.1} parent=1 // pred_region
      %s24 = ssub.s32 49152, 49152
      %25 = vsyncadd [#allocation7], %s24
      %s26 = sshll.u32 [#allocation6], 4
      %s27 = int_to_ptr.vmem [resolvable:$true] %s26
      %32 = dma.hbm_to_vmem [thread:$0]  %s1, 49152, %s27, [#allocation7], 256, 256, 16
    $region9: #{tpu_custom_call.1} parent=1 // pred_fallthru
      _
    // Predicated region
    $region10: #{tpu_custom_call.1} parent=1 // pred_check
      _
    $region11: #{tpu_custom_call.1} parent=1 // pred_check_branch
      %34 = sbr.rel (0) target = $region13
    $region12: #{tpu_custom_call.1} parent=1 // pred_region
      _
    $region13: #{tpu_custom_call.1} parent=1 // pred_fallthru
      _
    // Predicated region
    $region14: #{tpu_custom_call.1} parent=1 // pred_check
      _
    $region15: #{tpu_custom_call.1} parent=1 // pred_check_branch
      %36 = sbr.rel (0) target = $region17
    $region16: #{tpu_custom_call.1} parent=1 // pred_region
      %s38 = ssub.s32 16, 16
      %39 = vsyncadd [#allocation10], %s38
      %s41 = sshll.u32 [#allocation9], 4
      %s42 = int_to_ptr.vmem [resolvable:$true] %s41
      %44 = dma.hbm_to_vmem [thread:$0]  %s4, 16, %s42, [#allocation10]
    $region17: #{tpu_custom_call.1} parent=1 // pred_fallthru
      _
    // Predicated region
    $region18: #{tpu_custom_call.1} parent=1 // pred_check
      _
    $region19: #{tpu_custom_call.1} parent=1 // pred_check_branch
      %46 = sbr.rel (0) target = $region21
    $region20: #{tpu_custom_call.1} parent=1 // pred_region
      %s48 = ssub.s32 16, 16
      %49 = vsyncadd [#allocation10], %s48
      %s51 = sshll.u32 [#allocation11], 4
      %s52 = int_to_ptr.vmem [resolvable:$true] %s51
      %54 = dma.hbm_to_vmem [thread:$0]  %s5, 16, %s52, [#allocation10]
    $region21: #{tpu_custom_call.1} parent=1 // pred_fallthru
      _
    // Predicated region
    $region22: #{tpu_custom_call.1} parent=1 // pred_check
      _
    $region23: #{tpu_custom_call.1} parent=1 // pred_check_branch
      %56 = sbr.rel (0) target = $region25
    $region24: #{tpu_custom_call.1} parent=1 // pred_region
      _
    $region25: #{tpu_custom_call.1} parent=1 // pred_fallthru
      _
    // Predicated region
    $region26: #{tpu_custom_call.1} parent=1 // pred_check
      _
    $region27: #{tpu_custom_call.1} parent=1 // pred_check_branch
      %58 = sbr.rel (0) target = $region29
    $region28: #{tpu_custom_call.1} parent=1 // pred_region
      %s60 = ssub.s32 16, 16
      %61 = vsyncadd [#allocation13], %s60
      %s63 = sshll.u32 [#allocation12], 4
      %s64 = int_to_ptr.vmem [resolvable:$true] %s63
      %66 = dma.hbm_to_vmem [thread:$0]  %s7, 16, %s64, [#allocation13]
    $region29: #{tpu_custom_call.1} parent=1 // pred_fallthru
      _
    // Predicated region
    $region30: #{tpu_custom_call.1} parent=1 // pred_check
      _
    $region31: #{tpu_custom_call.1} parent=1 // pred_check_branch
      %68 = sbr.rel (0) target = $region33
    $region32: #{tpu_custom_call.1} parent=1 // pred_region
      %s70 = ssub.s32 16, 16
      %71 = vsyncadd [#allocation13], %s70
      %s73 = sshll.u32 [#allocation14], 4
      %s74 = int_to_ptr.vmem [resolvable:$true] %s73
      %76 = dma.hbm_to_vmem [thread:$0]  %s8, 16, %s74, [#allocation13]
    $region33: #{tpu_custom_call.1} parent=1 // pred_fallthru
      _
    // Predicated region
    $region34: #{tpu_custom_call.1} parent=1 // pred_check
      _
    $region35: #{tpu_custom_call.1} parent=1 // pred_check_branch
      %78 = sbr.rel (0) target = $region37
    $region36: #{tpu_custom_call.1} parent=1 // pred_region
      %79 = dma.done [#allocation7], 49152
    $region37: #{tpu_custom_call.1} parent=1 // pred_fallthru
      _
    // Predicated region
    $region38: #{tpu_custom_call.1} parent=1 // pred_check
      _
    $region39: #{tpu_custom_call.1} parent=1 // pred_check_branch
      %81 = sbr.rel (0) target = $region41
    $region40: #{tpu_custom_call.1} parent=1 // pred_region
      %82 = dma.done [#allocation10], 16
    $region41: #{tpu_custom_call.1} parent=1 // pred_fallthru
      _
    // Predicated region
    $region42: #{tpu_custom_call.1} parent=1 // pred_check
      _
    $region43: #{tpu_custom_call.1} parent=1 // pred_check_branch
      %84 = sbr.rel (0) target = $region45
    $region44: #{tpu_custom_call.1} parent=1 // pred_region
      %85 = dma.done [#allocation10], 16
    $region45: #{tpu_custom_call.1} parent=1 // pred_fallthru
      _
    // Predicated region
    $region46: #{tpu_custom_call.1} parent=1 // pred_check
      _
    $region47: #{tpu_custom_call.1} parent=1 // pred_check_branch
      %87 = sbr.rel (0) target = $region49
    $region48: #{tpu_custom_call.1} parent=1 // pred_region
      %88 = dma.done [#allocation13], 16
    $region49: #{tpu_custom_call.1} parent=1 // pred_fallthru
      _
    // Predicated region
    $region50: #{tpu_custom_call.1} parent=1 // pred_check
      _
    $region51: #{tpu_custom_call.1} parent=1 // pred_check_branch
      %90 = sbr.rel (0) target = $region53
    $region52: #{tpu_custom_call.1} parent=1 // pred_region
      %91 = dma.done [#allocation13], 16
    $region53: #{tpu_custom_call.1} parent=1 // pred_fallthru
      _
    %s94 = sshll.u32 1, 14
    %s95 = sxor.u32 4294967295, %s94
    %s97 = sld [smem:[#allocation0]]
    %s98 = sadd.s32 2, %s97
    %s100 = sshll.u32 7, 26
    %s101 = sxor.u32 4294967295, %s100
    %s102 = sand.u32 0, %s101
    %s103 = sshll.u32 %s98, 26
    %s104 = sor.u32 %s102, %s103
    %s105 = sshll.u32 [#allocation2], 4
    %s106 = int_to_ptr.vmem [resolvable:$true] %s105
    %109 = sst [smem:[#allocation17]] 512
    %s110 = scalar_lea.smem [#allocation17], 1
    %111 = sst [smem:[%s110]] 512
    %s112 = scalar_lea.smem [#allocation17], 2
    %113 = sst [smem:[%s112]] 4
    %s114 = scalar_lea.smem [#allocation17], 3
    %115 = sst [smem:[%s114]] 64
    %s116 = scalar_lea.smem [#allocation17], 4
    %117 = sst [smem:[%s116]] 128
    %s118 = scalar_lea.smem [#allocation17], 5
    %119 = sst [smem:[%s118]] 2
    %s120 = scalar_lea.smem [#allocation17], 6
    %121 = sst [smem:[%s120]] 256
    %s122 = scalar_lea.smem [#allocation17], 7
    %123 = sst [smem:[%s122]] 64
    %s124 = scalar_lea.smem [#allocation17], 8
    %125 = sst [smem:[%s124]] 4
    %127 = dma.general %s2, 49152, %s106, [#allocation4], [#allocation16], [#allocation17], %s104, 0
    %v128 = vld [vmem:[%s0] sm:$0xff]
    %v129 = vld [vmem:[%s0 + $0x8] sm:$0xff]
    %v130 = vld [vmem:[%s0 + $0x10] sm:$0xff]
    %v131 = vld [vmem:[%s0 + $0x18] sm:$0xff]
    %v132 = vld [vmem:[%s0 + $0x20] sm:$0x11]
    %v133 = vld [vmem:[%s0 + $0x28] sm:$0x11]
    %v134 = vld [vmem:[%s0 + $0x30] sm:$0xff]
    %v135 = vld [vmem:[%s0 + $0x38] sm:$0xff]
    %v136 = vld [vmem:[%s0 + $0x40] sm:$0xff]
    %v137 = vld [vmem:[%s0 + $0x48] sm:$0xff]
    %v138 = vld [vmem:[%s0 + $0x50] sm:$0x11]
    %v139 = vld [vmem:[%s0 + $0x58] sm:$0x11]
    %vm140 = vsmask.f32 3328
    %vm141 = vsmask.f32 7440
    %vm142 = vmor %vm140, %vm141
    %v144 = vshrl.u32 %v128, 16
    %v146 = vrot.slane %v144, 4
    %v147 = vshll.u32 %v128, 16
    %v149 = vrot.slane %v147, 5
    %v150 = vor.u32 %v146, %v149
    %v151 = vrot.slane %v150, 4
    %v153 = vshll.u32 %v130, 16
    %v155 = vrot.slane %v153, 5
    %v156 = vsel %vm142, %v151, %v155
    %v158 = vshrl.u32 %v129, 16
    %v160 = vrot.slane %v158, 4
    %v161 = vshll.u32 %v129, 16
    %v163 = vrot.slane %v161, 5
    %v164 = vor.u32 %v160, %v163
    %v165 = vrot.slane %v164, 4
    %v167 = vshll.u32 %v131, 16
    %v169 = vrot.slane %v167, 5
    %v170 = vsel %vm142, %v165, %v169
    %v171 = vshrl.u32 %v130, 16
    %v173 = vrot.slane %v171, 4
    %v174 = vor.u32 %v173, %v155
    %v175 = vrot.slane %v174, 4
    %v177 = vshll.u32 %v132, 16
    %v179 = vrot.slane %v177, 5
    %v180 = vsel %vm142, %v175, %v179
    %v181 = vshrl.u32 %v131, 16
    %v183 = vrot.slane %v181, 4
    %v184 = vor.u32 %v183, %v169
    %v185 = vrot.slane %v184, 4
    %v187 = vshll.u32 %v133, 16
    %v189 = vrot.slane %v187, 5
    %v190 = vsel %vm142, %v185, %v189
    %v192 = vshrl.u32 %v134, 16
    %v194 = vrot.slane %v192, 4
    %v195 = vshll.u32 %v134, 16
    %v197 = vrot.slane %v195, 5
    %v198 = vor.u32 %v194, %v197
    %v199 = vrot.slane %v198, 4
    %v201 = vshll.u32 %v136, 16
    %v203 = vrot.slane %v201, 5
    %v204 = vsel %vm142, %v199, %v203
    %v206 = vshrl.u32 %v135, 16
    %v208 = vrot.slane %v206, 4
    %v209 = vshll.u32 %v135, 16
    %v211 = vrot.slane %v209, 5
    %v212 = vor.u32 %v208, %v211
    %v213 = vrot.slane %v212, 4
    %v215 = vshll.u32 %v137, 16
    %v217 = vrot.slane %v215, 5
    %v218 = vsel %vm142, %v213, %v217
    %v219 = vshrl.u32 %v136, 16
    %v221 = vrot.slane %v219, 4
    %v222 = vor.u32 %v221, %v203
    %v223 = vrot.slane %v222, 4
    %v225 = vshll.u32 %v138, 16
    %v227 = vrot.slane %v225, 5
    %v228 = vsel %vm142, %v223, %v227
    %v229 = vshrl.u32 %v137, 16
    %v231 = vrot.slane %v229, 4
    %v232 = vor.u32 %v231, %v217
    %v233 = vrot.slane %v232, 4
    %v235 = vshll.u32 %v139, 16
    %v237 = vrot.slane %v235, 5
    %v238 = vsel %vm142, %v233, %v237
    %s239 = scalar_lea.vmem [#allocation6], 1024
    %v240 = vld [vmem:[%s239] sm:$0xff]
    %v241 = vld [vmem:[%s239 + $0x8] sm:$0xff]
    %v242 = vld [vmem:[%s239 + $0x10] sm:$0xff]
    %v243 = vld [vmem:[%s239 + $0x18] sm:$0xff]
    %v244 = vld [vmem:[%s239 + $0x20] sm:$0xff]
    %v245 = vld [vmem:[%s239 + $0x28] sm:$0xff]
    %v246 = vld [vmem:[%s239 + $0x30] sm:$0xff]
    %v247 = vld [vmem:[%s239 + $0x38] sm:$0xff]
    %v248 = vld [vmem:[%s239 + $0x40] sm:$0xff]
    %v249 = vld [vmem:[%s239 + $0x48] sm:$0xff]
    %v250 = vld [vmem:[%s239 + $0x50] sm:$0xff]
    %v251 = vld [vmem:[%s239 + $0x58] sm:$0xff]
    %v252 = vld [vmem:[%s239 + $0x60] sm:$0xff]
    %v253 = vld [vmem:[%s239 + $0x68] sm:$0xff]
    %v254 = vld [vmem:[%s239 + $0x70] sm:$0xff]
    %v255 = vld [vmem:[%s239 + $0x78] sm:$0xff]
    %v256 = vld [vmem:[%s239 + $0x80] sm:$0xff]
    %v257 = vld [vmem:[%s239 + $0x88] sm:$0xff]
    %v258 = vld [vmem:[%s239 + $0x90] sm:$0xff]
    %v259 = vld [vmem:[%s239 + $0x98] sm:$0xff]
    %v260 = vld [vmem:[%s239 + $0xa0] sm:$0xff]
    %v261 = vld [vmem:[%s239 + $0xa8] sm:$0xff]
    %v262 = vld [vmem:[%s239 + $0xb0] sm:$0xff]
    %v263 = vld [vmem:[%s239 + $0xb8] sm:$0xff]
    %v264 = vld [vmem:[%s239 + $0xc0] sm:$0xff]
    %v265 = vld [vmem:[%s239 + $0xc8] sm:$0xff]
    %v266 = vld [vmem:[%s239 + $0xd0] sm:$0xff]
    %v267 = vld [vmem:[%s239 + $0xd8] sm:$0xff]
    %v268 = vld [vmem:[%s239 + $0xe0] sm:$0xff]
    %v269 = vld [vmem:[%s239 + $0xe8] sm:$0xff]
    %v270 = vld [vmem:[%s239 + $0xf0] sm:$0xff]
    %v271 = vld [vmem:[%s239 + $0xf8] sm:$0xff]
    %v272 = vld [vmem:[%s239 + $0x100] sm:$0xff]
    %v273 = vld [vmem:[%s239 + $0x108] sm:$0xff]
    %v274 = vld [vmem:[%s239 + $0x110] sm:$0xff]
    %v275 = vld [vmem:[%s239 + $0x118] sm:$0xff]
    %v276 = vld [vmem:[%s239 + $0x120] sm:$0xff]
    %v277 = vld [vmem:[%s239 + $0x128] sm:$0xff]
    %v278 = vld [vmem:[%s239 + $0x130] sm:$0xff]
    %v279 = vld [vmem:[%s239 + $0x138] sm:$0xff]
    %v280 = vld [vmem:[%s239 + $0x140] sm:$0xff]
    %v281 = vld [vmem:[%s239 + $0x148] sm:$0xff]
    %v282 = vld [vmem:[%s239 + $0x150] sm:$0xff]
    %v283 = vld [vmem:[%s239 + $0x158] sm:$0xff]
    %v284 = vld [vmem:[%s239 + $0x160] sm:$0xff]
    %v285 = vld [vmem:[%s239 + $0x168] sm:$0xff]
    %v286 = vld [vmem:[%s239 + $0x170] sm:$0xff]
    %v287 = vld [vmem:[%s239 + $0x178] sm:$0xff]
    %v288 = vld [vmem:[%s239 + $0x180] sm:$0xff]
    %v289 = vld [vmem:[%s239 + $0x188] sm:$0xff]
    %v290 = vld [vmem:[%s239 + $0x190] sm:$0xff]
    %v291 = vld [vmem:[%s239 + $0x198] sm:$0xff]
    %v292 = vld [vmem:[%s239 + $0x1a0] sm:$0xff]
    %v293 = vld [vmem:[%s239 + $0x1a8] sm:$0xff]
    %v294 = vld [vmem:[%s239 + $0x1b0] sm:$0xff]
    %v295 = vld [vmem:[%s239 + $0x1b8] sm:$0xff]
    %v296 = vld [vmem:[%s239 + $0x1c0] sm:$0xff]
    %v297 = vld [vmem:[%s239 + $0x1c8] sm:$0xff]
    %v298 = vld [vmem:[%s239 + $0x1d0] sm:$0xff]
    %v299 = vld [vmem:[%s239 + $0x1d8] sm:$0xff]
    %v300 = vld [vmem:[%s239 + $0x1e0] sm:$0xff]
    %v301 = vld [vmem:[%s239 + $0x1e8] sm:$0xff]
    %v302 = vld [vmem:[%s239 + $0x1f0] sm:$0xff]
    %v303 = vld [vmem:[%s239 + $0x1f8] sm:$0xff]
    %v304 = vld [vmem:[%s239 + $0x200] sm:$0xff]
    %v305 = vld [vmem:[%s239 + $0x208] sm:$0xff]
    %v306 = vld [vmem:[%s239 + $0x210] sm:$0xff]
    %v307 = vld [vmem:[%s239 + $0x218] sm:$0xff]
    %v308 = vld [vmem:[%s239 + $0x220] sm:$0xff]
    %v309 = vld [vmem:[%s239 + $0x228] sm:$0xff]
    %v310 = vld [vmem:[%s239 + $0x230] sm:$0xff]
    %v311 = vld [vmem:[%s239 + $0x238] sm:$0xff]
    %v312 = vld [vmem:[%s239 + $0x240] sm:$0xff]
    %v313 = vld [vmem:[%s239 + $0x248] sm:$0xff]
    %v314 = vld [vmem:[%s239 + $0x250] sm:$0xff]
    %v315 = vld [vmem:[%s239 + $0x258] sm:$0xff]
    %v316 = vld [vmem:[%s239 + $0x260] sm:$0xff]
    %v317 = vld [vmem:[%s239 + $0x268] sm:$0xff]
    %v318 = vld [vmem:[%s239 + $0x270] sm:$0xff]
    %v319 = vld [vmem:[%s239 + $0x278] sm:$0xff]
    %v320 = vld [vmem:[%s239 + $0x280] sm:$0xff]
    %v321 = vld [vmem:[%s239 + $0x288] sm:$0xff]
    %v322 = vld [vmem:[%s239 + $0x290] sm:$0xff]
    %v323 = vld [vmem:[%s239 + $0x298] sm:$0xff]
    %v324 = vld [vmem:[%s239 + $0x2a0] sm:$0xff]
    %v325 = vld [vmem:[%s239 + $0x2a8] sm:$0xff]
    %v326 = vld [vmem:[%s239 + $0x2b0] sm:$0xff]
    %v327 = vld [vmem:[%s239 + $0x2b8] sm:$0xff]
    %v328 = vld [vmem:[%s239 + $0x2c0] sm:$0xff]
    %v329 = vld [vmem:[%s239 + $0x2c8] sm:$0xff]
    %v330 = vld [vmem:[%s239 + $0x2d0] sm:$0xff]
    %v331 = vld [vmem:[%s239 + $0x2d8] sm:$0xff]
    %v332 = vld [vmem:[%s239 + $0x2e0] sm:$0xff]
    %v333 = vld [vmem:[%s239 + $0x2e8] sm:$0xff]
    %v334 = vld [vmem:[%s239 + $0x2f0] sm:$0xff]
    %v335 = vld [vmem:[%s239 + $0x2f8] sm:$0xff]
    %v336 = vld [vmem:[%s239 + $0x300] sm:$0xff]
    %v337 = vld [vmem:[%s239 + $0x308] sm:$0xff]
    %v338 = vld [vmem:[%s239 + $0x310] sm:$0xff]
    %v339 = vld [vmem:[%s239 + $0x318] sm:$0xff]
    %v340 = vld [vmem:[%s239 + $0x320] sm:$0xff]
    %v341 = vld [vmem:[%s239 + $0x328] sm:$0xff]
    %v342 = vld [vmem:[%s239 + $0x330] sm:$0xff]
    %v343 = vld [vmem:[%s239 + $0x338] sm:$0xff]
    %v344 = vld [vmem:[%s239 + $0x340] sm:$0xff]
    %v345 = vld [vmem:[%s239 + $0x348] sm:$0xff]
    %v346 = vld [vmem:[%s239 + $0x350] sm:$0xff]
    %v347 = vld [vmem:[%s239 + $0x358] sm:$0xff]
    %v348 = vld [vmem:[%s239 + $0x360] sm:$0xff]
    %v349 = vld [vmem:[%s239 + $0x368] sm:$0xff]
    %v350 = vld [vmem:[%s239 + $0x370] sm:$0xff]
    %v351 = vld [vmem:[%s239 + $0x378] sm:$0xff]
    %v352 = vld [vmem:[%s239 + $0x380] sm:$0xff]
    %v353 = vld [vmem:[%s239 + $0x388] sm:$0xff]
    %v354 = vld [vmem:[%s239 + $0x390] sm:$0xff]
    %v355 = vld [vmem:[%s239 + $0x398] sm:$0xff]
    %v356 = vld [vmem:[%s239 + $0x3a0] sm:$0xff]
    %v357 = vld [vmem:[%s239 + $0x3a8] sm:$0xff]
    %v358 = vld [vmem:[%s239 + $0x3b0] sm:$0xff]
    %v359 = vld [vmem:[%s239 + $0x3b8] sm:$0xff]
    %v360 = vld [vmem:[%s239 + $0x3c0] sm:$0xff]
    %v361 = vld [vmem:[%s239 + $0x3c8] sm:$0xff]
    %v362 = vld [vmem:[%s239 + $0x3d0] sm:$0xff]
    %v363 = vld [vmem:[%s239 + $0x3d8] sm:$0xff]
    %v364 = vld [vmem:[%s239 + $0x3e0] sm:$0xff]
    %v365 = vld [vmem:[%s239 + $0x3e8] sm:$0xff]
    %v366 = vld [vmem:[%s239 + $0x3f0] sm:$0xff]
    %v367 = vld [vmem:[%s239 + $0x3f8] sm:$0xff]
    %v368 = vld [vmem:[#allocation6] sm:$0xff]
    %v369 = vld [vmem:[#allocation6 + $0x8] sm:$0xff]
    %v370 = vld [vmem:[#allocation6 + $0x10] sm:$0xff]
    %v371 = vld [vmem:[#allocation6 + $0x18] sm:$0xff]
    %v372 = vld [vmem:[#allocation6 + $0x20] sm:$0xff]
    %v373 = vld [vmem:[#allocation6 + $0x28] sm:$0xff]
    %v374 = vld [vmem:[#allocation6 + $0x30] sm:$0xff]
    %v375 = vld [vmem:[#allocation6 + $0x38] sm:$0xff]
    %v376 = vld [vmem:[#allocation6 + $0x40] sm:$0xff]
    %v377 = vld [vmem:[#allocation6 + $0x48] sm:$0xff]
    %v378 = vld [vmem:[#allocation6 + $0x50] sm:$0xff]
    %v379 = vld [vmem:[#allocation6 + $0x58] sm:$0xff]
    %v380 = vld [vmem:[#allocation6 + $0x60] sm:$0xff]
    %v381 = vld [vmem:[#allocation6 + $0x68] sm:$0xff]
    %v382 = vld [vmem:[#allocation6 + $0x70] sm:$0xff]
    %v383 = vld [vmem:[#allocation6 + $0x78] sm:$0xff]
    %v384 = vld [vmem:[#allocation6 + $0x80] sm:$0xff]
    %v385 = vld [vmem:[#allocation6 + $0x88] sm:$0xff]
    %v386 = vld [vmem:[#allocation6 + $0x90] sm:$0xff]
    %v387 = vld [vmem:[#allocation6 + $0x98] sm:$0xff]
    %v388 = vld [vmem:[#allocation6 + $0xa0] sm:$0xff]
    %v389 = vld [vmem:[#allocation6 + $0xa8] sm:$0xff]
    %v390 = vld [vmem:[#allocation6 + $0xb0] sm:$0xff]
    %v391 = vld [vmem:[#allocation6 + $0xb8] sm:$0xff]
    %v392 = vld [vmem:[#allocation6 + $0xc0] sm:$0xff]
    %v393 = vld [vmem:[#allocation6 + $0xc8] sm:$0xff]
    %v394 = vld [vmem:[#allocation6 + $0xd0] sm:$0xff]
    %v395 = vld [vmem:[#allocation6 + $0xd8] sm:$0xff]
    %v396 = vld [vmem:[#allocation6 + $0xe0] sm:$0xff]
    %v397 = vld [vmem:[#allocation6 + $0xe8] sm:$0xff]
    %v398 = vld [vmem:[#allocation6 + $0xf0] sm:$0xff]
    %v399 = vld [vmem:[#allocation6 + $0xf8] sm:$0xff]
    %v400 = vld [vmem:[#allocation6 + $0x100] sm:$0xff]
    %v401 = vld [vmem:[#allocation6 + $0x108] sm:$0xff]
    %v402 = vld [vmem:[#allocation6 + $0x110] sm:$0xff]
    %v403 = vld [vmem:[#allocation6 + $0x118] sm:$0xff]
    %v404 = vld [vmem:[#allocation6 + $0x120] sm:$0xff]
    %v405 = vld [vmem:[#allocation6 + $0x128] sm:$0xff]
    %v406 = vld [vmem:[#allocation6 + $0x130] sm:$0xff]
    %v407 = vld [vmem:[#allocation6 + $0x138] sm:$0xff]
    %v408 = vld [vmem:[#allocation6 + $0x140] sm:$0xff]
    %v409 = vld [vmem:[#allocation6 + $0x148] sm:$0xff]
    %v410 = vld [vmem:[#allocation6 + $0x150] sm:$0xff]
    %v411 = vld [vmem:[#allocation6 + $0x158] sm:$0xff]
    %v412 = vld [vmem:[#allocation6 + $0x160] sm:$0xff]
    %v413 = vld [vmem:[#allocation6 + $0x168] sm:$0xff]
    %v414 = vld [vmem:[#allocation6 + $0x170] sm:$0xff]
    %v415 = vld [vmem:[#allocation6 + $0x178] sm:$0xff]
    %v416 = vld [vmem:[#allocation6 + $0x180] sm:$0xff]
    %v417 = vld [vmem:[#allocation6 + $0x188] sm:$0xff]
    %v418 = vld [vmem:[#allocation6 + $0x190] sm:$0xff]
    %v419 = vld [vmem:[#allocation6 + $0x198] sm:$0xff]
    %v420 = vld [vmem:[#allocation6 + $0x1a0] sm:$0xff]
    %v421 = vld [vmem:[#allocation6 + $0x1a8] sm:$0xff]
    %v422 = vld [vmem:[#allocation6 + $0x1b0] sm:$0xff]
    %v423 = vld [vmem:[#allocation6 + $0x1b8] sm:$0xff]
    %v424 = vld [vmem:[#allocation6 + $0x1c0] sm:$0xff]
    %v425 = vld [vmem:[#allocation6 + $0x1c8] sm:$0xff]
    %v426 = vld [vmem:[#allocation6 + $0x1d0] sm:$0xff]
    %v427 = vld [vmem:[#allocation6 + $0x1d8] sm:$0xff]
    %v428 = vld [vmem:[#allocation6 + $0x1e0] sm:$0xff]
    %v429 = vld [vmem:[#allocation6 + $0x1e8] sm:$0xff]
    %v430 = vld [vmem:[#allocation6 + $0x1f0] sm:$0xff]
    %v431 = vld [vmem:[#allocation6 + $0x1f8] sm:$0xff]
    %v432 = vld [vmem:[#allocation6 + $0x200] sm:$0xff]
    %v433 = vld [vmem:[#allocation6 + $0x208] sm:$0xff]
    %v434 = vld [vmem:[#allocation6 + $0x210] sm:$0xff]
    %v435 = vld [vmem:[#allocation6 + $0x218] sm:$0xff]
    %v436 = vld [vmem:[#allocation6 + $0x220] sm:$0xff]
    %v437 = vld [vmem:[#allocation6 + $0x228] sm:$0xff]
    %v438 = vld [vmem:[#allocation6 + $0x230] sm:$0xff]
    %v439 = vld [vmem:[#allocation6 + $0x238] sm:$0xff]
    %v440 = vld [vmem:[#allocation6 + $0x240] sm:$0xff]
    %v441 = vld [vmem:[#allocation6 + $0x248] sm:$0xff]
    %v442 = vld [vmem:[#allocation6 + $0x250] sm:$0xff]
    %v443 = vld [vmem:[#allocation6 + $0x258] sm:$0xff]
    %v444 = vld [vmem:[#allocation6 + $0x260] sm:$0xff]
    %v445 = vld [vmem:[#allocation6 + $0x268] sm:$0xff]
    %v446 = vld [vmem:[#allocation6 + $0x270] sm:$0xff]
    %v447 = vld [vmem:[#allocation6 + $0x278] sm:$0xff]
    %v448 = vld [vmem:[#allocation6 + $0x280] sm:$0xff]
    %v449 = vld [vmem:[#allocation6 + $0x288] sm:$0xff]
    %v450 = vld [vmem:[#allocation6 + $0x290] sm:$0xff]
    %v451 = vld [vmem:[#allocation6 + $0x298] sm:$0xff]
    %v452 = vld [vmem:[#allocation6 + $0x2a0] sm:$0xff]
    %v453 = vld [vmem:[#allocation6 + $0x2a8] sm:$0xff]
    %v454 = vld [vmem:[#allocation6 + $0x2b0] sm:$0xff]
    %v455 = vld [vmem:[#allocation6 + $0x2b8] sm:$0xff]
    %v456 = vld [vmem:[#allocation6 + $0x2c0] sm:$0xff]
    %v457 = vld [vmem:[#allocation6 + $0x2c8] sm:$0xff]
    %v458 = vld [vmem:[#allocation6 + $0x2d0] sm:$0xff]
    %v459 = vld [vmem:[#allocation6 + $0x2d8] sm:$0xff]
    %v460 = vld [vmem:[#allocation6 + $0x2e0] sm:$0xff]
    %v461 = vld [vmem:[#allocation6 + $0x2e8] sm:$0xff]
    %v462 = vld [vmem:[#allocation6 + $0x2f0] sm:$0xff]
    %v463 = vld [vmem:[#allocation6 + $0x2f8] sm:$0xff]
    %v464 = vld [vmem:[#allocation6 + $0x300] sm:$0xff]
    %v465 = vld [vmem:[#allocation6 + $0x308] sm:$0xff]
    %v466 = vld [vmem:[#allocation6 + $0x310] sm:$0xff]
    %v467 = vld [vmem:[#allocation6 + $0x318] sm:$0xff]
    %v468 = vld [vmem:[#allocation6 + $0x320] sm:$0xff]
    %v469 = vld [vmem:[#allocation6 + $0x328] sm:$0xff]
    %v470 = vld [vmem:[#allocation6 + $0x330] sm:$0xff]
    %v471 = vld [vmem:[#allocation6 + $0x338] sm:$0xff]
    %v472 = vld [vmem:[#allocation6 + $0x340] sm:$0xff]
    %v473 = vld [vmem:[#allocation6 + $0x348] sm:$0xff]
    %v474 = vld [vmem:[#allocation6 + $0x350] sm:$0xff]
    %v475 = vld [vmem:[#allocation6 + $0x358] sm:$0xff]
    %v476 = vld [vmem:[#allocation6 + $0x360] sm:$0xff]
    %v477 = vld [vmem:[#allocation6 + $0x368] sm:$0xff]
    %v478 = vld [vmem:[#allocation6 + $0x370] sm:$0xff]
    %v479 = vld [vmem:[#allocation6 + $0x378] sm:$0xff]
    %v480 = vld [vmem:[#allocation6 + $0x380] sm:$0xff]
    %v481 = vld [vmem:[#allocation6 + $0x388] sm:$0xff]
    %v482 = vld [vmem:[#allocation6 + $0x390] sm:$0xff]
    %v483 = vld [vmem:[#allocation6 + $0x398] sm:$0xff]
    %v484 = vld [vmem:[#allocation6 + $0x3a0] sm:$0xff]
    %v485 = vld [vmem:[#allocation6 + $0x3a8] sm:$0xff]
    %v486 = vld [vmem:[#allocation6 + $0x3b0] sm:$0xff]
    %v487 = vld [vmem:[#allocation6 + $0x3b8] sm:$0xff]
    %v488 = vld [vmem:[#allocation6 + $0x3c0] sm:$0xff]
    %v489 = vld [vmem:[#allocation6 + $0x3c8] sm:$0xff]
    %v490 = vld [vmem:[#allocation6 + $0x3d0] sm:$0xff]
    %v491 = vld [vmem:[#allocation6 + $0x3d8] sm:$0xff]
    %v492 = vld [vmem:[#allocation6 + $0x3e0] sm:$0xff]
    %v493 = vld [vmem:[#allocation6 + $0x3e8] sm:$0xff]
    %v494 = vld [vmem:[#allocation6 + $0x3f0] sm:$0xff]
    %v495 = vld [vmem:[#allocation6 + $0x3f8] sm:$0xff]
    %v504 = vunpack.c.l.b16 %v128
    %v505 = vunpack.c.h.b16 %v128
    %v506 = vunpack.c.l.b16 %v129
    %v507 = vunpack.c.h.b16 %v129
    %v508 = vunpack.c.l.b16 %v130
    %v509 = vunpack.c.h.b16 %v130
    %v510 = vunpack.c.l.b16 %v131
    %v511 = vunpack.c.h.b16 %v131
    %v512 = vunpack.c.l.b16 %v134
    %v513 = vunpack.c.h.b16 %v134
    %v514 = vunpack.c.l.b16 %v135
    %v515 = vunpack.c.h.b16 %v135
    %v516 = vunpack.c.l.b16 %v136
    %v517 = vunpack.c.h.b16 %v136
    %v518 = vunpack.c.l.b16 %v137
    %v519 = vunpack.c.h.b16 %v137
    %v520 = vpack.c.b16 %v508, %v504
    %v521 = vpack.c.b16 %v509, %v505
    %v522 = vpack.c.b16 %v510, %v506
    %v523 = vpack.c.b16 %v511, %v507
    %v524 = vpack.c.b16 %v516, %v512
    %v525 = vpack.c.b16 %v517, %v513
    %v526 = vpack.c.b16 %v518, %v514
    %v527 = vpack.c.b16 %v519, %v515
    %v664 = vunpack.c.l.b16 %v368
    %v665 = vunpack.c.h.b16 %v368
    %v666 = vunpack.c.l.b16 %v369
    %v667 = vunpack.c.h.b16 %v369
    %v668 = vunpack.c.l.b16 %v370
    %v669 = vunpack.c.h.b16 %v370
    %v670 = vunpack.c.l.b16 %v371
    %v671 = vunpack.c.h.b16 %v371
    %v672 = vunpack.c.l.b16 %v372
    %v673 = vunpack.c.h.b16 %v372
    %v674 = vunpack.c.l.b16 %v373
    %v675 = vunpack.c.h.b16 %v373
    %v676 = vunpack.c.l.b16 %v374
    %v677 = vunpack.c.h.b16 %v374
    %v678 = vunpack.c.l.b16 %v375
    %v679 = vunpack.c.h.b16 %v375
    %v680 = vunpack.c.l.b16 %v376
    %v681 = vunpack.c.h.b16 %v376
    %v682 = vunpack.c.l.b16 %v377
    %v683 = vunpack.c.h.b16 %v377
    %v684 = vunpack.c.l.b16 %v378
    %v685 = vunpack.c.h.b16 %v378
    %v686 = vunpack.c.l.b16 %v379
    %v687 = vunpack.c.h.b16 %v379
    %v688 = vunpack.c.l.b16 %v380
    %v689 = vunpack.c.h.b16 %v380
    %v690 = vunpack.c.l.b16 %v381
    %v691 = vunpack.c.h.b16 %v381
    %v692 = vunpack.c.l.b16 %v382
    %v693 = vunpack.c.h.b16 %v382
    %v694 = vunpack.c.l.b16 %v383
    %v695 = vunpack.c.h.b16 %v383
    %v696 = vunpack.c.l.b16 %v384
    %v697 = vunpack.c.h.b16 %v384
    %v698 = vunpack.c.l.b16 %v385
    %v699 = vunpack.c.h.b16 %v385
    %v700 = vunpack.c.l.b16 %v386
    %v701 = vunpack.c.h.b16 %v386
    %v702 = vunpack.c.l.b16 %v387
    %v703 = vunpack.c.h.b16 %v387
    %v704 = vunpack.c.l.b16 %v388
    %v705 = vunpack.c.h.b16 %v388
    %v706 = vunpack.c.l.b16 %v389
    %v707 = vunpack.c.h.b16 %v389
    %v708 = vunpack.c.l.b16 %v390
    %v709 = vunpack.c.h.b16 %v390
    %v710 = vunpack.c.l.b16 %v391
    %v711 = vunpack.c.h.b16 %v391
    %v712 = vunpack.c.l.b16 %v392
    %v713 = vunpack.c.h.b16 %v392
    %v714 = vunpack.c.l.b16 %v393
    %v715 = vunpack.c.h.b16 %v393
    %v716 = vunpack.c.l.b16 %v394
    %v717 = vunpack.c.h.b16 %v394
    %v718 = vunpack.c.l.b16 %v395
    %v719 = vunpack.c.h.b16 %v395
    %v720 = vunpack.c.l.b16 %v396
    %v721 = vunpack.c.h.b16 %v396
    %v722 = vunpack.c.l.b16 %v397
    %v723 = vunpack.c.h.b16 %v397
    %v724 = vunpack.c.l.b16 %v398
    %v725 = vunpack.c.h.b16 %v398
    %v726 = vunpack.c.l.b16 %v399
    %v727 = vunpack.c.h.b16 %v399
    %v728 = vunpack.c.l.b16 %v400
    %v729 = vunpack.c.h.b16 %v400
    %v730 = vunpack.c.l.b16 %v401
    %v731 = vunpack.c.h.b16 %v401
    %v732 = vunpack.c.l.b16 %v402
    %v733 = vunpack.c.h.b16 %v402
    %v734 = vunpack.c.l.b16 %v403
    %v735 = vunpack.c.h.b16 %v403
    %v736 = vunpack.c.l.b16 %v404
    %v737 = vunpack.c.h.b16 %v404
    %v738 = vunpack.c.l.b16 %v405
    %v739 = vunpack.c.h.b16 %v405
    %v740 = vunpack.c.l.b16 %v406
    %v741 = vunpack.c.h.b16 %v406
    %v742 = vunpack.c.l.b16 %v407
    %v743 = vunpack.c.h.b16 %v407
    %v744 = vunpack.c.l.b16 %v408
    %v745 = vunpack.c.h.b16 %v408
    %v746 = vunpack.c.l.b16 %v409
    %v747 = vunpack.c.h.b16 %v409
    %v748 = vunpack.c.l.b16 %v410
    %v749 = vunpack.c.h.b16 %v410
    %v750 = vunpack.c.l.b16 %v411
    %v751 = vunpack.c.h.b16 %v411
    %v752 = vunpack.c.l.b16 %v412
    %v753 = vunpack.c.h.b16 %v412
    %v754 = vunpack.c.l.b16 %v413
    %v755 = vunpack.c.h.b16 %v413
    %v756 = vunpack.c.l.b16 %v414
    %v757 = vunpack.c.h.b16 %v414
    %v758 = vunpack.c.l.b16 %v415
    %v759 = vunpack.c.h.b16 %v415
    %v760 = vunpack.c.l.b16 %v416
    %v761 = vunpack.c.h.b16 %v416
    %v762 = vunpack.c.l.b16 %v417
    %v763 = vunpack.c.h.b16 %v417
    %v764 = vunpack.c.l.b16 %v418
    %v765 = vunpack.c.h.b16 %v418
    %v766 = vunpack.c.l.b16 %v419
    %v767 = vunpack.c.h.b16 %v419
    %v768 = vunpack.c.l.b16 %v420
    %v769 = vunpack.c.h.b16 %v420
    %v770 = vunpack.c.l.b16 %v421
    %v771 = vunpack.c.h.b16 %v421
    %v772 = vunpack.c.l.b16 %v422
    %v773 = vunpack.c.h.b16 %v422
    %v774 = vunpack.c.l.b16 %v423
    %v775 = vunpack.c.h.b16 %v423
    %v776 = vunpack.c.l.b16 %v424
    %v777 = vunpack.c.h.b16 %v424
    %v778 = vunpack.c.l.b16 %v425
    %v779 = vunpack.c.h.b16 %v425
    %v780 = vunpack.c.l.b16 %v426
    %v781 = vunpack.c.h.b16 %v426
    %v782 = vunpack.c.l.b16 %v427
    %v783 = vunpack.c.h.b16 %v427
    %v784 = vunpack.c.l.b16 %v428
    %v785 = vunpack.c.h.b16 %v428
    %v786 = vunpack.c.l.b16 %v429
    %v787 = vunpack.c.h.b16 %v429
    %v788 = vunpack.c.l.b16 %v430
    %v789 = vunpack.c.h.b16 %v430
    %v790 = vunpack.c.l.b16 %v431
    %v791 = vunpack.c.h.b16 %v431
    %v792 = vunpack.c.l.b16 %v432
    %v793 = vunpack.c.h.b16 %v432
    %v794 = vunpack.c.l.b16 %v433
    %v795 = vunpack.c.h.b16 %v433
    %v796 = vunpack.c.l.b16 %v434
    %v797 = vunpack.c.h.b16 %v434
    %v798 = vunpack.c.l.b16 %v435
    %v799 = vunpack.c.h.b16 %v435
    %v800 = vunpack.c.l.b16 %v436
    %v801 = vunpack.c.h.b16 %v436
    %v802 = vunpack.c.l.b16 %v437
    %v803 = vunpack.c.h.b16 %v437
    %v804 = vunpack.c.l.b16 %v438
    %v805 = vunpack.c.h.b16 %v438
    %v806 = vunpack.c.l.b16 %v439
    %v807 = vunpack.c.h.b16 %v439
    %v808 = vunpack.c.l.b16 %v440
    %v809 = vunpack.c.h.b16 %v440
    %v810 = vunpack.c.l.b16 %v441
    %v811 = vunpack.c.h.b16 %v441
    %v812 = vunpack.c.l.b16 %v442
    %v813 = vunpack.c.h.b16 %v442
    %v814 = vunpack.c.l.b16 %v443
    %v815 = vunpack.c.h.b16 %v443
    %v816 = vunpack.c.l.b16 %v444
    %v817 = vunpack.c.h.b16 %v444
    %v818 = vunpack.c.l.b16 %v445
    %v819 = vunpack.c.h.b16 %v445
    %v820 = vunpack.c.l.b16 %v446
    %v821 = vunpack.c.h.b16 %v446
    %v822 = vunpack.c.l.b16 %v447
    %v823 = vunpack.c.h.b16 %v447
    %v824 = vunpack.c.l.b16 %v448
    %v825 = vunpack.c.h.b16 %v448
    %v826 = vunpack.c.l.b16 %v449
    %v827 = vunpack.c.h.b16 %v449
    %v828 = vunpack.c.l.b16 %v450
    %v829 = vunpack.c.h.b16 %v450
    %v830 = vunpack.c.l.b16 %v451
    %v831 = vunpack.c.h.b16 %v451
    %v832 = vunpack.c.l.b16 %v452
    %v833 = vunpack.c.h.b16 %v452
    %v834 = vunpack.c.l.b16 %v453
    %v835 = vunpack.c.h.b16 %v453
    %v836 = vunpack.c.l.b16 %v454
    %v837 = vunpack.c.h.b16 %v454
    %v838 = vunpack.c.l.b16 %v455
    %v839 = vunpack.c.h.b16 %v455
    %v840 = vunpack.c.l.b16 %v456
    %v841 = vunpack.c.h.b16 %v456
    %v842 = vunpack.c.l.b16 %v457
    %v843 = vunpack.c.h.b16 %v457
    %v844 = vunpack.c.l.b16 %v458
    %v845 = vunpack.c.h.b16 %v458
    %v846 = vunpack.c.l.b16 %v459
    %v847 = vunpack.c.h.b16 %v459
    %v848 = vunpack.c.l.b16 %v460
    %v849 = vunpack.c.h.b16 %v460
    %v850 = vunpack.c.l.b16 %v461
    %v851 = vunpack.c.h.b16 %v461
    %v852 = vunpack.c.l.b16 %v462
    %v853 = vunpack.c.h.b16 %v462
    %v854 = vunpack.c.l.b16 %v463
    %v855 = vunpack.c.h.b16 %v463
    %v856 = vunpack.c.l.b16 %v464
    %v857 = vunpack.c.h.b16 %v464
    %v858 = vunpack.c.l.b16 %v465
    %v859 = vunpack.c.h.b16 %v465
    %v860 = vunpack.c.l.b16 %v466
    %v861 = vunpack.c.h.b16 %v466
    %v862 = vunpack.c.l.b16 %v467
    %v863 = vunpack.c.h.b16 %v467
    %v864 = vunpack.c.l.b16 %v468
    %v865 = vunpack.c.h.b16 %v468
    %v866 = vunpack.c.l.b16 %v469
    %v867 = vunpack.c.h.b16 %v469
    %v868 = vunpack.c.l.b16 %v470
    %v869 = vunpack.c.h.b16 %v470
    %v870 = vunpack.c.l.b16 %v471
    %v871 = vunpack.c.h.b16 %v471
    %v872 = vunpack.c.l.b16 %v472
    %v873 = vunpack.c.h.b16 %v472
    %v874 = vunpack.c.l.b16 %v473
    %v875 = vunpack.c.h.b16 %v473
    %v876 = vunpack.c.l.b16 %v474
    %v877 = vunpack.c.h.b16 %v474
    %v878 = vunpack.c.l.b16 %v475
    %v879 = vunpack.c.h.b16 %v475
    %v880 = vunpack.c.l.b16 %v476
    %v881 = vunpack.c.h.b16 %v476
    %v882 = vunpack.c.l.b16 %v477
    %v883 = vunpack.c.h.b16 %v477
    %v884 = vunpack.c.l.b16 %v478
    %v885 = vunpack.c.h.b16 %v478
    %v886 = vunpack.c.l.b16 %v479
    %v887 = vunpack.c.h.b16 %v479
    %v888 = vunpack.c.l.b16 %v480
    %v889 = vunpack.c.h.b16 %v480
    %v890 = vunpack.c.l.b16 %v481
    %v891 = vunpack.c.h.b16 %v481
    %v892 = vunpack.c.l.b16 %v482
    %v893 = vunpack.c.h.b16 %v482
    %v894 = vunpack.c.l.b16 %v483
    %v895 = vunpack.c.h.b16 %v483
    %v896 = vunpack.c.l.b16 %v484
    %v897 = vunpack.c.h.b16 %v484
    %v898 = vunpack.c.l.b16 %v485
    %v899 = vunpack.c.h.b16 %v485
    %v900 = vunpack.c.l.b16 %v486
    %v901 = vunpack.c.h.b16 %v486
    %v902 = vunpack.c.l.b16 %v487
    %v903 = vunpack.c.h.b16 %v487
    %v904 = vunpack.c.l.b16 %v488
    %v905 = vunpack.c.h.b16 %v488
    %v906 = vunpack.c.l.b16 %v489
    %v907 = vunpack.c.h.b16 %v489
    %v908 = vunpack.c.l.b16 %v490
    %v909 = vunpack.c.h.b16 %v490
    %v910 = vunpack.c.l.b16 %v491
    %v911 = vunpack.c.h.b16 %v491
    %v912 = vunpack.c.l.b16 %v492
    %v913 = vunpack.c.h.b16 %v492
    %v914 = vunpack.c.l.b16 %v493
    %v915 = vunpack.c.h.b16 %v493
    %v916 = vunpack.c.l.b16 %v494
    %v917 = vunpack.c.h.b16 %v494
    %v918 = vunpack.c.l.b16 %v495
    %v919 = vunpack.c.h.b16 %v495
    %v920 = vpack.c.b16 %v668, %v664
    %v921 = vpack.c.b16 %v669, %v665
    %v922 = vpack.c.b16 %v670, %v666
    %v923 = vpack.c.b16 %v671, %v667
    %v924 = vpack.c.b16 %v676, %v672
    %v925 = vpack.c.b16 %v677, %v673
    %v926 = vpack.c.b16 %v678, %v674
    %v927 = vpack.c.b16 %v679, %v675
    %v928 = vpack.c.b16 %v684, %v680
    %v929 = vpack.c.b16 %v685, %v681
    %v930 = vpack.c.b16 %v686, %v682
    %v931 = vpack.c.b16 %v687, %v683
    %v932 = vpack.c.b16 %v692, %v688
    %v933 = vpack.c.b16 %v693, %v689
    %v934 = vpack.c.b16 %v694, %v690
    %v935 = vpack.c.b16 %v695, %v691
    %v936 = vpack.c.b16 %v700, %v696
    %v937 = vpack.c.b16 %v701, %v697
    %v938 = vpack.c.b16 %v702, %v698
    %v939 = vpack.c.b16 %v703, %v699
    %v940 = vpack.c.b16 %v708, %v704
    %v941 = vpack.c.b16 %v709, %v705
    %v942 = vpack.c.b16 %v710, %v706
    %v943 = vpack.c.b16 %v711, %v707
    %v944 = vpack.c.b16 %v716, %v712
    %v945 = vpack.c.b16 %v717, %v713
    %v946 = vpack.c.b16 %v718, %v714
    %v947 = vpack.c.b16 %v719, %v715
    %v948 = vpack.c.b16 %v724, %v720
    %v949 = vpack.c.b16 %v725, %v721
    %v950 = vpack.c.b16 %v726, %v722
    %v951 = vpack.c.b16 %v727, %v723
    %v952 = vpack.c.b16 %v732, %v728
    %v953 = vpack.c.b16 %v733, %v729
    %v954 = vpack.c.b16 %v734, %v730
    %v955 = vpack.c.b16 %v735, %v731
    %v956 = vpack.c.b16 %v740, %v736
    %v957 = vpack.c.b16 %v741, %v737
    %v958 = vpack.c.b16 %v742, %v738
    %v959 = vpack.c.b16 %v743, %v739
    %v960 = vpack.c.b16 %v748, %v744
    %v961 = vpack.c.b16 %v749, %v745
    %v962 = vpack.c.b16 %v750, %v746
    %v963 = vpack.c.b16 %v751, %v747
    %v964 = vpack.c.b16 %v756, %v752
    %v965 = vpack.c.b16 %v757, %v753
    %v966 = vpack.c.b16 %v758, %v754
    %v967 = vpack.c.b16 %v759, %v755
    %v968 = vpack.c.b16 %v764, %v760
    %v969 = vpack.c.b16 %v765, %v761
    %v970 = vpack.c.b16 %v766, %v762
    %v971 = vpack.c.b16 %v767, %v763
    %v972 = vpack.c.b16 %v772, %v768
    %v973 = vpack.c.b16 %v773, %v769
    %v974 = vpack.c.b16 %v774, %v770
    %v975 = vpack.c.b16 %v775, %v771
    %v976 = vpack.c.b16 %v780, %v776
    %v977 = vpack.c.b16 %v781, %v777
    %v978 = vpack.c.b16 %v782, %v778
    %v979 = vpack.c.b16 %v783, %v779
    %v980 = vpack.c.b16 %v788, %v784
    %v981 = vpack.c.b16 %v789, %v785
    %v982 = vpack.c.b16 %v790, %v786
    %v983 = vpack.c.b16 %v791, %v787
    %v984 = vpack.c.b16 %v796, %v792
    %v985 = vpack.c.b16 %v797, %v793
    %v986 = vpack.c.b16 %v798, %v794
    %v987 = vpack.c.b16 %v799, %v795
    %v988 = vpack.c.b16 %v804, %v800
    %v989 = vpack.c.b16 %v805, %v801
    %v990 = vpack.c.b16 %v806, %v802
    %v991 = vpack.c.b16 %v807, %v803
    %v992 = vpack.c.b16 %v812, %v808
    %v993 = vpack.c.b16 %v813, %v809
    %v994 = vpack.c.b16 %v814, %v810
    %v995 = vpack.c.b16 %v815, %v811
    %v996 = vpack.c.b16 %v820, %v816
    %v997 = vpack.c.b16 %v821, %v817
    %v998 = vpack.c.b16 %v822, %v818
    %v999 = vpack.c.b16 %v823, %v819
    %v1000 = vpack.c.b16 %v828, %v824
    %v1001 = vpack.c.b16 %v829, %v825
    %v1002 = vpack.c.b16 %v830, %v826
    %v1003 = vpack.c.b16 %v831, %v827
    %v1004 = vpack.c.b16 %v836, %v832
    %v1005 = vpack.c.b16 %v837, %v833
    %v1006 = vpack.c.b16 %v838, %v834
    %v1007 = vpack.c.b16 %v839, %v835
    %v1008 = vpack.c.b16 %v844, %v840
    %v1009 = vpack.c.b16 %v845, %v841
    %v1010 = vpack.c.b16 %v846, %v842
    %v1011 = vpack.c.b16 %v847, %v843
    %v1012 = vpack.c.b16 %v852, %v848
    %v1013 = vpack.c.b16 %v853, %v849
    %v1014 = vpack.c.b16 %v854, %v850
    %v1015 = vpack.c.b16 %v855, %v851
    %v1016 = vpack.c.b16 %v860, %v856
    %v1017 = vpack.c.b16 %v861, %v857
    %v1018 = vpack.c.b16 %v862, %v858
    %v1019 = vpack.c.b16 %v863, %v859
    %v1020 = vpack.c.b16 %v868, %v864
    %v1021 = vpack.c.b16 %v869, %v865
    %v1022 = vpack.c.b16 %v870, %v866
    %v1023 = vpack.c.b16 %v871, %v867
    %v1024 = vpack.c.b16 %v876, %v872
    %v1025 = vpack.c.b16 %v877, %v873
    %v1026 = vpack.c.b16 %v878, %v874
    %v1027 = vpack.c.b16 %v879, %v875
    %v1028 = vpack.c.b16 %v884, %v880
    %v1029 = vpack.c.b16 %v885, %v881
    %v1030 = vpack.c.b16 %v886, %v882
    %v1031 = vpack.c.b16 %v887, %v883
    %v1032 = vpack.c.b16 %v892, %v888
    %v1033 = vpack.c.b16 %v893, %v889
    %v1034 = vpack.c.b16 %v894, %v890
    %v1035 = vpack.c.b16 %v895, %v891
    %v1036 = vpack.c.b16 %v900, %v896
    %v1037 = vpack.c.b16 %v901, %v897
    %v1038 = vpack.c.b16 %v902, %v898
    %v1039 = vpack.c.b16 %v903, %v899
    %v1040 = vpack.c.b16 %v908, %v904
    %v1041 = vpack.c.b16 %v909, %v905
    %v1042 = vpack.c.b16 %v910, %v906
    %v1043 = vpack.c.b16 %v911, %v907
    %v1044 = vpack.c.b16 %v916, %v912
    %v1045 = vpack.c.b16 %v917, %v913
    %v1046 = vpack.c.b16 %v918, %v914
    %v1047 = vpack.c.b16 %v919, %v915
    %1176 = vmatprep.subr.bf16.mxu0 %v921
    %1177 = vmatpush1.bf16.msra.mxu0 %v920
    %1178 = vmatprep.subr.bf16.mxu0 %v925
    %1179 = vmatpush1.bf16.msra.mxu0 %v924
    %1180 = vmatprep.subr.bf16.mxu0 %v929
    %1181 = vmatpush1.bf16.msra.mxu0 %v928
    %1182 = vmatprep.subr.bf16.mxu0 %v933
    %1183 = vmatpush1.bf16.msra.mxu0 %v932
    %1184 = vmatprep.subr.bf16.mxu0 %v937
    %1185 = vmatpush1.bf16.msra.mxu0 %v936
    %1186 = vmatprep.subr.bf16.mxu0 %v941
    %1187 = vmatpush1.bf16.msra.mxu0 %v940
    %1188 = vmatprep.subr.bf16.mxu0 %v945
    %1189 = vmatpush1.bf16.msra.mxu0 %v944
    %1190 = vmatprep.subr.bf16.mxu0 %v949
    %1191 = vmatpush1.bf16.msra.mxu0 %v948
    %1192 = vmatprep.subr.bf16.mxu0 %v953
    %1193 = vmatpush1.bf16.msra.mxu0 %v952
    %1194 = vmatprep.subr.bf16.mxu0 %v957
    %1195 = vmatpush1.bf16.msra.mxu0 %v956
    %1196 = vmatprep.subr.bf16.mxu0 %v961
    %1197 = vmatpush1.bf16.msra.mxu0 %v960
    %1198 = vmatprep.subr.bf16.mxu0 %v965
    %1199 = vmatpush1.bf16.msra.mxu0 %v964
    %1200 = vmatprep.subr.bf16.mxu0 %v969
    %1201 = vmatpush1.bf16.msra.mxu0 %v968
    %1202 = vmatprep.subr.bf16.mxu0 %v973
    %1203 = vmatpush1.bf16.msra.mxu0 %v972
    %1204 = vmatprep.subr.bf16.mxu0 %v977
    %1205 = vmatpush1.bf16.msra.mxu0 %v976
    %1206 = vmatprep.subr.bf16.mxu0 %v981
    %1207 = vmatpush1.bf16.msra.mxu0 %v980
    %1208 = vmatprep.mubr.bf16.mxu0 %v521
    %1209 = vmatmul.mubr.bf16.gmra.mrb[0].mxu0 %v520
    %v1210 = vpop.f32.mrb[0].mxu0
    %v1211 = vadd.f32 0.0, %v1210
    %v1212 = vpop.f32.mrb[0].mxu0
    %v1213 = vadd.f32 0.0, %v1212
    %v1214 = vpop.f32.mrb[0].mxu0
    %v1215 = vadd.f32 0.0, %v1214
    %v1216 = vpop.f32.mrb[0].mxu0
    %v1217 = vadd.f32 0.0, %v1216
    %1218 = vmatprep.mubr.bf16.mxu0 %v525
    %1219 = vmatmul.mubr.bf16.gmra.mrb[0].mxu0 %v524
    %v1220 = vpop.f32.mrb[0].mxu0
    %v1221 = vadd.f32 0.0, %v1220
    %v1222 = vpop.f32.mrb[0].mxu0
    %v1223 = vadd.f32 0.0, %v1222
    %v1224 = vpop.f32.mrb[0].mxu0
    %v1225 = vadd.f32 0.0, %v1224
    %v1226 = vpop.f32.mrb[0].mxu0
    %v1227 = vadd.f32 0.0, %v1226
    %1228 = vdwg.mxu0
    %1229 = vmatprep.subr.bf16.mxu0 %v985
    %1230 = vmatpush1.bf16.msra.mxu0 %v984
    %1231 = vmatprep.subr.bf16.mxu0 %v989
    %1232 = vmatpush1.bf16.msra.mxu0 %v988
    %1233 = vmatprep.subr.bf16.mxu0 %v993
    %1234 = vmatpush1.bf16.msra.mxu0 %v992
    %1235 = vmatprep.subr.bf16.mxu0 %v997
    %1236 = vmatpush1.bf16.msra.mxu0 %v996
    %1237 = vmatprep.subr.bf16.mxu0 %v1001
    %1238 = vmatpush1.bf16.msra.mxu0 %v1000
    %1239 = vmatprep.subr.bf16.mxu0 %v1005
    %1240 = vmatpush1.bf16.msra.mxu0 %v1004
    %1241 = vmatprep.subr.bf16.mxu0 %v1009
    %1242 = vmatpush1.bf16.msra.mxu0 %v1008
    %1243 = vmatprep.subr.bf16.mxu0 %v1013
    %1244 = vmatpush1.bf16.msra.mxu0 %v1012
    %1245 = vmatprep.subr.bf16.mxu0 %v1017
    %1246 = vmatpush1.bf16.msra.mxu0 %v1016
    %1247 = vmatprep.subr.bf16.mxu0 %v1021
    %1248 = vmatpush1.bf16.msra.mxu0 %v1020
    %1249 = vmatprep.subr.bf16.mxu0 %v1025
    %1250 = vmatpush1.bf16.msra.mxu0 %v1024
    %1251 = vmatprep.subr.bf16.mxu0 %v1029
    %1252 = vmatpush1.bf16.msra.mxu0 %v1028
    %1253 = vmatprep.subr.bf16.mxu0 %v1033
    %1254 = vmatpush1.bf16.msra.mxu0 %v1032
    %1255 = vmatprep.subr.bf16.mxu0 %v1037
    %1256 = vmatpush1.bf16.msra.mxu0 %v1036
    %1257 = vmatprep.subr.bf16.mxu0 %v1041
    %1258 = vmatpush1.bf16.msra.mxu0 %v1040
    %1259 = vmatprep.subr.bf16.mxu0 %v1045
    %1260 = vmatpush1.bf16.msra.mxu0 %v1044
    %1261 = vmatprep.mubr.bf16.mxu0 %v523
    %1262 = vmatmul.mubr.bf16.gmra.mrb[0].mxu0 %v522
    %v1263 = vpop.f32.mrb[0].mxu0
    %v1264 = vadd.f32 %v1211, %v1263
    %v1265 = vpop.f32.mrb[0].mxu0
    %v1266 = vadd.f32 %v1213, %v1265
    %v1267 = vpop.f32.mrb[0].mxu0
    %v1268 = vadd.f32 %v1215, %v1267
    %v1269 = vpop.f32.mrb[0].mxu0
    %v1270 = vadd.f32 %v1217, %v1269
    %1271 = vmatprep.mubr.bf16.mxu0 %v527
    %1272 = vmatmul.mubr.bf16.gmra.mrb[0].mxu0 %v526
    %v1273 = vpop.f32.mrb[0].mxu0
    %v1274 = vadd.f32 %v1221, %v1273
    %v1275 = vpop.f32.mrb[0].mxu0
    %v1276 = vadd.f32 %v1223, %v1275
    %v1277 = vpop.f32.mrb[0].mxu0
    %v1278 = vadd.f32 %v1225, %v1277
    %v1279 = vpop.f32.mrb[0].mxu0
    %v1280 = vadd.f32 %v1227, %v1279
    %1281 = vdwg.mxu0
    %1282 = vmatprep.subr.bf16.mxu0 %v923
    %1283 = vmatpush1.bf16.msra.mxu0 %v922
    %1284 = vmatprep.subr.bf16.mxu0 %v927
    %1285 = vmatpush1.bf16.msra.mxu0 %v926
    %1286 = vmatprep.subr.bf16.mxu0 %v931
    %1287 = vmatpush1.bf16.msra.mxu0 %v930
    %1288 = vmatprep.subr.bf16.mxu0 %v935
    %1289 = vmatpush1.bf16.msra.mxu0 %v934
    %1290 = vmatprep.subr.bf16.mxu0 %v939
    %1291 = vmatpush1.bf16.msra.mxu0 %v938
    %1292 = vmatprep.subr.bf16.mxu0 %v943
    %1293 = vmatpush1.bf16.msra.mxu0 %v942
    %1294 = vmatprep.subr.bf16.mxu0 %v947
    %1295 = vmatpush1.bf16.msra.mxu0 %v946
    %1296 = vmatprep.subr.bf16.mxu0 %v951
    %1297 = vmatpush1.bf16.msra.mxu0 %v950
    %1298 = vmatprep.subr.bf16.mxu0 %v955
    %1299 = vmatpush1.bf16.msra.mxu0 %v954
    %1300 = vmatprep.subr.bf16.mxu0 %v959
    %1301 = vmatpush1.bf16.msra.mxu0 %v958
    %1302 = vmatprep.subr.bf16.mxu0 %v963
    %1303 = vmatpush1.bf16.msra.mxu0 %v962
    %1304 = vmatprep.subr.bf16.mxu0 %v967
    %1305 = vmatpush1.bf16.msra.mxu0 %v966
    %1306 = vmatprep.subr.bf16.mxu0 %v971
    %1307 = vmatpush1.bf16.msra.mxu0 %v970
    %1308 = vmatprep.subr.bf16.mxu0 %v975
    %1309 = vmatpush1.bf16.msra.mxu0 %v974
    %1310 = vmatprep.subr.bf16.mxu0 %v979
    %1311 = vmatpush1.bf16.msra.mxu0 %v978
    %1312 = vmatprep.subr.bf16.mxu0 %v983
    %1313 = vmatpush1.bf16.msra.mxu0 %v982
    %1314 = vmatprep.mubr.bf16.mxu0 %v521
    %1315 = vmatmul.mubr.bf16.gmra.mrb[0].mxu0 %v520
    %v1316 = vpop.f32.mrb[0].mxu0
    %v1317 = vadd.f32 0.0, %v1316
    %v1318 = vpop.f32.mrb[0].mxu0
    %v1319 = vadd.f32 0.0, %v1318
    %v1320 = vpop.f32.mrb[0].mxu0
    %v1321 = vadd.f32 0.0, %v1320
    %v1322 = vpop.f32.mrb[0].mxu0
    %v1323 = vadd.f32 0.0, %v1322
    %1324 = vmatprep.mubr.bf16.mxu0 %v525
    %1325 = vmatmul.mubr.bf16.gmra.mrb[0].mxu0 %v524
    %v1326 = vpop.f32.mrb[0].mxu0
    %v1327 = vadd.f32 0.0, %v1326
    %v1328 = vpop.f32.mrb[0].mxu0
    %v1329 = vadd.f32 0.0, %v1328
    %v1330 = vpop.f32.mrb[0].mxu0
    %v1331 = vadd.f32 0.0, %v1330
    %v1332 = vpop.f32.mrb[0].mxu0
    %v1333 = vadd.f32 0.0, %v1332
    %1334 = vdwg.mxu0
    %1335 = vmatprep.subr.bf16.mxu0 %v987
    %1336 = vmatpush1.bf16.msra.mxu0 %v986
    %1337 = vmatprep.subr.bf16.mxu0 %v991
    %1338 = vmatpush1.bf16.msra.mxu0 %v990
    %1339 = vmatprep.subr.bf16.mxu0 %v995
    %1340 = vmatpush1.bf16.msra.mxu0 %v994
    %1341 = vmatprep.subr.bf16.mxu0 %v999
    %1342 = vmatpush1.bf16.msra.mxu0 %v998
    %1343 = vmatprep.subr.bf16.mxu0 %v1003
    %1344 = vmatpush1.bf16.msra.mxu0 %v1002
    %1345 = vmatprep.subr.bf16.mxu0 %v1007
    %1346 = vmatpush1.bf16.msra.mxu0 %v1006
    %1347 = vmatprep.subr.bf16.mxu0 %v1011
    %1348 = vmatpush1.bf16.msra.mxu0 %v1010
    %1349 = vmatprep.subr.bf16.mxu0 %v1015
    %1350 = vmatpush1.bf16.msra.mxu0 %v1014
    %1351 = vmatprep.subr.bf16.mxu0 %v1019
    %1352 = vmatpush1.bf16.msra.mxu0 %v1018
    %1353 = vmatprep.subr.bf16.mxu0 %v1023
    %1354 = vmatpush1.bf16.msra.mxu0 %v1022
    %1355 = vmatprep.subr.bf16.mxu0 %v1027
    %1356 = vmatpush1.bf16.msra.mxu0 %v1026
    %1357 = vmatprep.subr.bf16.mxu0 %v1031
    %1358 = vmatpush1.bf16.msra.mxu0 %v1030
    %1359 = vmatprep.subr.bf16.mxu0 %v1035
    %1360 = vmatpush1.bf16.msra.mxu0 %v1034
    %1361 = vmatprep.subr.bf16.mxu0 %v1039
    %1362 = vmatpush1.bf16.msra.mxu0 %v1038
    %1363 = vmatprep.subr.bf16.mxu0 %v1043
    %1364 = vmatpush1.bf16.msra.mxu0 %v1042
    %1365 = vmatprep.subr.bf16.mxu0 %v1047
    %1366 = vmatpush1.bf16.msra.mxu0 %v1046
    %1367 = vmatprep.mubr.bf16.mxu0 %v523
    %1368 = vmatmul.mubr.bf16.gmra.mrb[0].mxu0 %v522
    %v1369 = vpop.f32.mrb[0].mxu0
    %v1370 = vadd.f32 %v1317, %v1369
    %v1371 = vpop.f32.mrb[0].mxu0
    %v1372 = vadd.f32 %v1319, %v1371
    %v1373 = vpop.f32.mrb[0].mxu0
    %v1374 = vadd.f32 %v1321, %v1373
    %v1375 = vpop.f32.mrb[0].mxu0
    %v1376 = vadd.f32 %v1323, %v1375
    %1377 = vmatprep.mubr.bf16.mxu0 %v527
    %1378 = vmatmul.mubr.bf16.gmra.mrb[0].mxu0 %v526
    %v1379 = vpop.f32.mrb[0].mxu0
    %v1380 = vadd.f32 %v1327, %v1379
    %v1381 = vpop.f32.mrb[0].mxu0
    %v1382 = vadd.f32 %v1329, %v1381
    %v1383 = vpop.f32.mrb[0].mxu0
    %v1384 = vadd.f32 %v1331, %v1383
    %v1385 = vpop.f32.mrb[0].mxu0
    %v1386 = vadd.f32 %v1333, %v1385
    %1387 = vdwg.mxu0
    %v1388 = vunpack.c.l.b16 %v156
    %v1389 = vunpack.c.h.b16 %v156
    %v1390 = vunpack.c.l.b16 %v170
    %v1391 = vunpack.c.h.b16 %v170
    %v1392 = vunpack.c.l.b16 %v180
    %v1393 = vunpack.c.h.b16 %v180
    %v1394 = vunpack.c.l.b16 %v190
    %v1395 = vunpack.c.h.b16 %v190
    %v1396 = vunpack.c.l.b16 %v204
    %v1397 = vunpack.c.h.b16 %v204
    %v1398 = vunpack.c.l.b16 %v218
    %v1399 = vunpack.c.h.b16 %v218
    %v1400 = vunpack.c.l.b16 %v228
    %v1401 = vunpack.c.h.b16 %v228
    %v1402 = vunpack.c.l.b16 %v238
    %v1403 = vunpack.c.h.b16 %v238
    %v1404 = vpack.c.b16 %v1392, %v1388
    %v1405 = vpack.c.b16 %v1393, %v1389
    %v1406 = vpack.c.b16 %v1394, %v1390
    %v1407 = vpack.c.b16 %v1395, %v1391
    %v1408 = vpack.c.b16 %v1400, %v1396
    %v1409 = vpack.c.b16 %v1401, %v1397
    %v1410 = vpack.c.b16 %v1402, %v1398
    %v1411 = vpack.c.b16 %v1403, %v1399
    %v1548 = vunpack.c.l.b16 %v240
    %v1549 = vunpack.c.h.b16 %v240
    %v1550 = vunpack.c.l.b16 %v241
    %v1551 = vunpack.c.h.b16 %v241
    %v1552 = vunpack.c.l.b16 %v242
    %v1553 = vunpack.c.h.b16 %v242
    %v1554 = vunpack.c.l.b16 %v243
    %v1555 = vunpack.c.h.b16 %v243
    %v1556 = vunpack.c.l.b16 %v244
    %v1557 = vunpack.c.h.b16 %v244
    %v1558 = vunpack.c.l.b16 %v245
    %v1559 = vunpack.c.h.b16 %v245
    %v1560 = vunpack.c.l.b16 %v246
    %v1561 = vunpack.c.h.b16 %v246
    %v1562 = vunpack.c.l.b16 %v247
    %v1563 = vunpack.c.h.b16 %v247
    %v1564 = vunpack.c.l.b16 %v248
    %v1565 = vunpack.c.h.b16 %v248
    %v1566 = vunpack.c.l.b16 %v249
    %v1567 = vunpack.c.h.b16 %v249
    %v1568 = vunpack.c.l.b16 %v250
    %v1569 = vunpack.c.h.b16 %v250
    %v1570 = vunpack.c.l.b16 %v251
    %v1571 = vunpack.c.h.b16 %v251
    %v1572 = vunpack.c.l.b16 %v252
    %v1573 = vunpack.c.h.b16 %v252
    %v1574 = vunpack.c.l.b16 %v253
    %v1575 = vunpack.c.h.b16 %v253
    %v1576 = vunpack.c.l.b16 %v254
    %v1577 = vunpack.c.h.b16 %v254
    %v1578 = vunpack.c.l.b16 %v255
    %v1579 = vunpack.c.h.b16 %v255
    %v1580 = vunpack.c.l.b16 %v256
    %v1581 = vunpack.c.h.b16 %v256
    %v1582 = vunpack.c.l.b16 %v257
    %v1583 = vunpack.c.h.b16 %v257
    %v1584 = vunpack.c.l.b16 %v258
    %v1585 = vunpack.c.h.b16 %v258
    %v1586 = vunpack.c.l.b16 %v259
    %v1587 = vunpack.c.h.b16 %v259
    %v1588 = vunpack.c.l.b16 %v260
    %v1589 = vunpack.c.h.b16 %v260
    %v1590 = vunpack.c.l.b16 %v261
    %v1591 = vunpack.c.h.b16 %v261
    %v1592 = vunpack.c.l.b16 %v262
    %v1593 = vunpack.c.h.b16 %v262
    %v1594 = vunpack.c.l.b16 %v263
    %v1595 = vunpack.c.h.b16 %v263
    %v1596 = vunpack.c.l.b16 %v264
    %v1597 = vunpack.c.h.b16 %v264
    %v1598 = vunpack.c.l.b16 %v265
    %v1599 = vunpack.c.h.b16 %v265
    %v1600 = vunpack.c.l.b16 %v266
    %v1601 = vunpack.c.h.b16 %v266
    %v1602 = vunpack.c.l.b16 %v267
    %v1603 = vunpack.c.h.b16 %v267
    %v1604 = vunpack.c.l.b16 %v268
    %v1605 = vunpack.c.h.b16 %v268
    %v1606 = vunpack.c.l.b16 %v269
    %v1607 = vunpack.c.h.b16 %v269
    %v1608 = vunpack.c.l.b16 %v270
    %v1609 = vunpack.c.h.b16 %v270
    %v1610 = vunpack.c.l.b16 %v271
    %v1611 = vunpack.c.h.b16 %v271
    %v1612 = vunpack.c.l.b16 %v272
    %v1613 = vunpack.c.h.b16 %v272
    %v1614 = vunpack.c.l.b16 %v273
    %v1615 = vunpack.c.h.b16 %v273
    %v1616 = vunpack.c.l.b16 %v274
    %v1617 = vunpack.c.h.b16 %v274
    %v1618 = vunpack.c.l.b16 %v275
    %v1619 = vunpack.c.h.b16 %v275
    %v1620 = vunpack.c.l.b16 %v276
    %v1621 = vunpack.c.h.b16 %v276
    %v1622 = vunpack.c.l.b16 %v277
    %v1623 = vunpack.c.h.b16 %v277
    %v1624 = vunpack.c.l.b16 %v278
    %v1625 = vunpack.c.h.b16 %v278
    %v1626 = vunpack.c.l.b16 %v279
    %v1627 = vunpack.c.h.b16 %v279
    %v1628 = vunpack.c.l.b16 %v280
    %v1629 = vunpack.c.h.b16 %v280
    %v1630 = vunpack.c.l.b16 %v281
    %v1631 = vunpack.c.h.b16 %v281
    %v1632 = vunpack.c.l.b16 %v282
    %v1633 = vunpack.c.h.b16 %v282
    %v1634 = vunpack.c.l.b16 %v283
    %v1635 = vunpack.c.h.b16 %v283
    %v1636 = vunpack.c.l.b16 %v284
    %v1637 = vunpack.c.h.b16 %v284
    %v1638 = vunpack.c.l.b16 %v285
    %v1639 = vunpack.c.h.b16 %v285
    %v1640 = vunpack.c.l.b16 %v286
    %v1641 = vunpack.c.h.b16 %v286
    %v1642 = vunpack.c.l.b16 %v287
    %v1643 = vunpack.c.h.b16 %v287
    %v1644 = vunpack.c.l.b16 %v288
    %v1645 = vunpack.c.h.b16 %v288
    %v1646 = vunpack.c.l.b16 %v289
    %v1647 = vunpack.c.h.b16 %v289
    %v1648 = vunpack.c.l.b16 %v290
    %v1649 = vunpack.c.h.b16 %v290
    %v1650 = vunpack.c.l.b16 %v291
    %v1651 = vunpack.c.h.b16 %v291
    %v1652 = vunpack.c.l.b16 %v292
    %v1653 = vunpack.c.h.b16 %v292
    %v1654 = vunpack.c.l.b16 %v293
    %v1655 = vunpack.c.h.b16 %v293
    %v1656 = vunpack.c.l.b16 %v294
    %v1657 = vunpack.c.h.b16 %v294
    %v1658 = vunpack.c.l.b16 %v295
    %v1659 = vunpack.c.h.b16 %v295
    %v1660 = vunpack.c.l.b16 %v296
    %v1661 = vunpack.c.h.b16 %v296
    %v1662 = vunpack.c.l.b16 %v297
    %v1663 = vunpack.c.h.b16 %v297
    %v1664 = vunpack.c.l.b16 %v298
    %v1665 = vunpack.c.h.b16 %v298
    %v1666 = vunpack.c.l.b16 %v299
    %v1667 = vunpack.c.h.b16 %v299
    %v1668 = vunpack.c.l.b16 %v300
    %v1669 = vunpack.c.h.b16 %v300
    %v1670 = vunpack.c.l.b16 %v301
    %v1671 = vunpack.c.h.b16 %v301
    %v1672 = vunpack.c.l.b16 %v302
    %v1673 = vunpack.c.h.b16 %v302
    %v1674 = vunpack.c.l.b16 %v303
    %v1675 = vunpack.c.h.b16 %v303
    %v1676 = vunpack.c.l.b16 %v304
    %v1677 = vunpack.c.h.b16 %v304
    %v1678 = vunpack.c.l.b16 %v305
    %v1679 = vunpack.c.h.b16 %v305
    %v1680 = vunpack.c.l.b16 %v306
    %v1681 = vunpack.c.h.b16 %v306
    %v1682 = vunpack.c.l.b16 %v307
    %v1683 = vunpack.c.h.b16 %v307
    %v1684 = vunpack.c.l.b16 %v308
    %v1685 = vunpack.c.h.b16 %v308
    %v1686 = vunpack.c.l.b16 %v309
    %v1687 = vunpack.c.h.b16 %v309
    %v1688 = vunpack.c.l.b16 %v310
    %v1689 = vunpack.c.h.b16 %v310
    %v1690 = vunpack.c.l.b16 %v311
    %v1691 = vunpack.c.h.b16 %v311
    %v1692 = vunpack.c.l.b16 %v312
    %v1693 = vunpack.c.h.b16 %v312
    %v1694 = vunpack.c.l.b16 %v313
    %v1695 = vunpack.c.h.b16 %v313
    %v1696 = vunpack.c.l.b16 %v314
    %v1697 = vunpack.c.h.b16 %v314
    %v1698 = vunpack.c.l.b16 %v315
    %v1699 = vunpack.c.h.b16 %v315
    %v1700 = vunpack.c.l.b16 %v316
    %v1701 = vunpack.c.h.b16 %v316
    %v1702 = vunpack.c.l.b16 %v317
    %v1703 = vunpack.c.h.b16 %v317
    %v1704 = vunpack.c.l.b16 %v318
    %v1705 = vunpack.c.h.b16 %v318
    %v1706 = vunpack.c.l.b16 %v319
    %v1707 = vunpack.c.h.b16 %v319
    %v1708 = vunpack.c.l.b16 %v320
    %v1709 = vunpack.c.h.b16 %v320
    %v1710 = vunpack.c.l.b16 %v321
    %v1711 = vunpack.c.h.b16 %v321
    %v1712 = vunpack.c.l.b16 %v322
    %v1713 = vunpack.c.h.b16 %v322
    %v1714 = vunpack.c.l.b16 %v323
    %v1715 = vunpack.c.h.b16 %v323
    %v1716 = vunpack.c.l.b16 %v324
    %v1717 = vunpack.c.h.b16 %v324
    %v1718 = vunpack.c.l.b16 %v325
    %v1719 = vunpack.c.h.b16 %v325
    %v1720 = vunpack.c.l.b16 %v326
    %v1721 = vunpack.c.h.b16 %v326
    %v1722 = vunpack.c.l.b16 %v327
    %v1723 = vunpack.c.h.b16 %v327
    %v1724 = vunpack.c.l.b16 %v328
    %v1725 = vunpack.c.h.b16 %v328
    %v1726 = vunpack.c.l.b16 %v329
    %v1727 = vunpack.c.h.b16 %v329
    %v1728 = vunpack.c.l.b16 %v330
    %v1729 = vunpack.c.h.b16 %v330
    %v1730 = vunpack.c.l.b16 %v331
    %v1731 = vunpack.c.h.b16 %v331
    %v1732 = vunpack.c.l.b16 %v332
    %v1733 = vunpack.c.h.b16 %v332
    %v1734 = vunpack.c.l.b16 %v333
    %v1735 = vunpack.c.h.b16 %v333
    %v1736 = vunpack.c.l.b16 %v334
    %v1737 = vunpack.c.h.b16 %v334
    %v1738 = vunpack.c.l.b16 %v335
    %v1739 = vunpack.c.h.b16 %v335
    %v1740 = vunpack.c.l.b16 %v336
    %v1741 = vunpack.c.h.b16 %v336
    %v1742 = vunpack.c.l.b16 %v337
    %v1743 = vunpack.c.h.b16 %v337
    %v1744 = vunpack.c.l.b16 %v338
    %v1745 = vunpack.c.h.b16 %v338
    %v1746 = vunpack.c.l.b16 %v339
    %v1747 = vunpack.c.h.b16 %v339
    %v1748 = vunpack.c.l.b16 %v340
    %v1749 = vunpack.c.h.b16 %v340
    %v1750 = vunpack.c.l.b16 %v341
    %v1751 = vunpack.c.h.b16 %v341
    %v1752 = vunpack.c.l.b16 %v342
    %v1753 = vunpack.c.h.b16 %v342
    %v1754 = vunpack.c.l.b16 %v343
    %v1755 = vunpack.c.h.b16 %v343
    %v1756 = vunpack.c.l.b16 %v344
    %v1757 = vunpack.c.h.b16 %v344
    %v1758 = vunpack.c.l.b16 %v345
    %v1759 = vunpack.c.h.b16 %v345
    %v1760 = vunpack.c.l.b16 %v346
    %v1761 = vunpack.c.h.b16 %v346
    %v1762 = vunpack.c.l.b16 %v347
    %v1763 = vunpack.c.h.b16 %v347
    %v1764 = vunpack.c.l.b16 %v348
    %v1765 = vunpack.c.h.b16 %v348
    %v1766 = vunpack.c.l.b16 %v349
    %v1767 = vunpack.c.h.b16 %v349
    %v1768 = vunpack.c.l.b16 %v350
    %v1769 = vunpack.c.h.b16 %v350
    %v1770 = vunpack.c.l.b16 %v351
    %v1771 = vunpack.c.h.b16 %v351
    %v1772 = vunpack.c.l.b16 %v352
    %v1773 = vunpack.c.h.b16 %v352
    %v1774 = vunpack.c.l.b16 %v353
    %v1775 = vunpack.c.h.b16 %v353
    %v1776 = vunpack.c.l.b16 %v354
    %v1777 = vunpack.c.h.b16 %v354
    %v1778 = vunpack.c.l.b16 %v355
    %v1779 = vunpack.c.h.b16 %v355
    %v1780 = vunpack.c.l.b16 %v356
    %v1781 = vunpack.c.h.b16 %v356
    %v1782 = vunpack.c.l.b16 %v357
    %v1783 = vunpack.c.h.b16 %v357
    %v1784 = vunpack.c.l.b16 %v358
    %v1785 = vunpack.c.h.b16 %v358
    %v1786 = vunpack.c.l.b16 %v359
    %v1787 = vunpack.c.h.b16 %v359
    %v1788 = vunpack.c.l.b16 %v360
    %v1789 = vunpack.c.h.b16 %v360
    %v1790 = vunpack.c.l.b16 %v361
    %v1791 = vunpack.c.h.b16 %v361
    %v1792 = vunpack.c.l.b16 %v362
    %v1793 = vunpack.c.h.b16 %v362
    %v1794 = vunpack.c.l.b16 %v363
    %v1795 = vunpack.c.h.b16 %v363
    %v1796 = vunpack.c.l.b16 %v364
    %v1797 = vunpack.c.h.b16 %v364
    %v1798 = vunpack.c.l.b16 %v365
    %v1799 = vunpack.c.h.b16 %v365
    %v1800 = vunpack.c.l.b16 %v366
    %v1801 = vunpack.c.h.b16 %v366
    %v1802 = vunpack.c.l.b16 %v367
    %v1803 = vunpack.c.h.b16 %v367
    %v1804 = vpack.c.b16 %v1552, %v1548
    %v1805 = vpack.c.b16 %v1553, %v1549
    %v1806 = vpack.c.b16 %v1554, %v1550
    %v1807 = vpack.c.b16 %v1555, %v1551
    %v1808 = vpack.c.b16 %v1560, %v1556
    %v1809 = vpack.c.b16 %v1561, %v1557
    %v1810 = vpack.c.b16 %v1562, %v1558
    %v1811 = vpack.c.b16 %v1563, %v1559
    %v1812 = vpack.c.b16 %v1568, %v1564
    %v1813 = vpack.c.b16 %v1569, %v1565
    %v1814 = vpack.c.b16 %v1570, %v1566
    %v1815 = vpack.c.b16 %v1571, %v1567
    %v1816 = vpack.c.b16 %v1576, %v1572
    %v1817 = vpack.c.b16 %v1577, %v1573
    %v1818 = vpack.c.b16 %v1578, %v1574
    %v1819 = vpack.c.b16 %v1579, %v1575
    %v1820 = vpack.c.b16 %v1584, %v1580
    %v1821 = vpack.c.b16 %v1585, %v1581
    %v1822 = vpack.c.b16 %v1586, %v1582
    %v1823 = vpack.c.b16 %v1587, %v1583
    %v1824 = vpack.c.b16 %v1592, %v1588
    %v1825 = vpack.c.b16 %v1593, %v1589
    %v1826 = vpack.c.b16 %v1594, %v1590
    %v1827 = vpack.c.b16 %v1595, %v1591
    %v1828 = vpack.c.b16 %v1600, %v1596
    %v1829 = vpack.c.b16 %v1601, %v1597
    %v1830 = vpack.c.b16 %v1602, %v1598
    %v1831 = vpack.c.b16 %v1603, %v1599
    %v1832 = vpack.c.b16 %v1608, %v1604
    %v1833 = vpack.c.b16 %v1609, %v1605
    %v1834 = vpack.c.b16 %v1610, %v1606
    %v1835 = vpack.c.b16 %v1611, %v1607
    %v1836 = vpack.c.b16 %v1616, %v1612
    %v1837 = vpack.c.b16 %v1617, %v1613
    %v1838 = vpack.c.b16 %v1618, %v1614
    %v1839 = vpack.c.b16 %v1619, %v1615
    %v1840 = vpack.c.b16 %v1624, %v1620
    %v1841 = vpack.c.b16 %v1625, %v1621
    %v1842 = vpack.c.b16 %v1626, %v1622
    %v1843 = vpack.c.b16 %v1627, %v1623
    %v1844 = vpack.c.b16 %v1632, %v1628
    %v1845 = vpack.c.b16 %v1633, %v1629
    %v1846 = vpack.c.b16 %v1634, %v1630
    %v1847 = vpack.c.b16 %v1635, %v1631
    %v1848 = vpack.c.b16 %v1640, %v1636
    %v1849 = vpack.c.b16 %v1641, %v1637
    %v1850 = vpack.c.b16 %v1642, %v1638
    %v1851 = vpack.c.b16 %v1643, %v1639
    %v1852 = vpack.c.b16 %v1648, %v1644
    %v1853 = vpack.c.b16 %v1649, %v1645
    %v1854 = vpack.c.b16 %v1650, %v1646
    %v1855 = vpack.c.b16 %v1651, %v1647
    %v1856 = vpack.c.b16 %v1656, %v1652
    %v1857 = vpack.c.b16 %v1657, %v1653
    %v1858 = vpack.c.b16 %v1658, %v1654
    %v1859 = vpack.c.b16 %v1659, %v1655
    %v1860 = vpack.c.b16 %v1664, %v1660
    %v1861 = vpack.c.b16 %v1665, %v1661
    %v1862 = vpack.c.b16 %v1666, %v1662
    %v1863 = vpack.c.b16 %v1667, %v1663
    %v1864 = vpack.c.b16 %v1672, %v1668
    %v1865 = vpack.c.b16 %v1673, %v1669
    %v1866 = vpack.c.b16 %v1674, %v1670
    %v1867 = vpack.c.b16 %v1675, %v1671
    %v1868 = vpack.c.b16 %v1680, %v1676
    %v1869 = vpack.c.b16 %v1681, %v1677
    %v1870 = vpack.c.b16 %v1682, %v1678
    %v1871 = vpack.c.b16 %v1683, %v1679
    %v1872 = vpack.c.b16 %v1688, %v1684
    %v1873 = vpack.c.b16 %v1689, %v1685
    %v1874 = vpack.c.b16 %v1690, %v1686
    %v1875 = vpack.c.b16 %v1691, %v1687
    %v1876 = vpack.c.b16 %v1696, %v1692
    %v1877 = vpack.c.b16 %v1697, %v1693
    %v1878 = vpack.c.b16 %v1698, %v1694
    %v1879 = vpack.c.b16 %v1699, %v1695
    %v1880 = vpack.c.b16 %v1704, %v1700
    %v1881 = vpack.c.b16 %v1705, %v1701
    %v1882 = vpack.c.b16 %v1706, %v1702
    %v1883 = vpack.c.b16 %v1707, %v1703
    %v1884 = vpack.c.b16 %v1712, %v1708
    %v1885 = vpack.c.b16 %v1713, %v1709
    %v1886 = vpack.c.b16 %v1714, %v1710
    %v1887 = vpack.c.b16 %v1715, %v1711
    %v1888 = vpack.c.b16 %v1720, %v1716
    %v1889 = vpack.c.b16 %v1721, %v1717
    %v1890 = vpack.c.b16 %v1722, %v1718
    %v1891 = vpack.c.b16 %v1723, %v1719
    %v1892 = vpack.c.b16 %v1728, %v1724
    %v1893 = vpack.c.b16 %v1729, %v1725
    %v1894 = vpack.c.b16 %v1730, %v1726
    %v1895 = vpack.c.b16 %v1731, %v1727
    %v1896 = vpack.c.b16 %v1736, %v1732
    %v1897 = vpack.c.b16 %v1737, %v1733
    %v1898 = vpack.c.b16 %v1738, %v1734
    %v1899 = vpack.c.b16 %v1739, %v1735
    %v1900 = vpack.c.b16 %v1744, %v1740
    %v1901 = vpack.c.b16 %v1745, %v1741
    %v1902 = vpack.c.b16 %v1746, %v1742
    %v1903 = vpack.c.b16 %v1747, %v1743
    %v1904 = vpack.c.b16 %v1752, %v1748
    %v1905 = vpack.c.b16 %v1753, %v1749
    %v1906 = vpack.c.b16 %v1754, %v1750
    %v1907 = vpack.c.b16 %v1755, %v1751
    %v1908 = vpack.c.b16 %v1760, %v1756
    %v1909 = vpack.c.b16 %v1761, %v1757
    %v1910 = vpack.c.b16 %v1762, %v1758
    %v1911 = vpack.c.b16 %v1763, %v1759
    %v1912 = vpack.c.b16 %v1768, %v1764
    %v1913 = vpack.c.b16 %v1769, %v1765
    %v1914 = vpack.c.b16 %v1770, %v1766
    %v1915 = vpack.c.b16 %v1771, %v1767
    %v1916 = vpack.c.b16 %v1776, %v1772
    %v1917 = vpack.c.b16 %v1777, %v1773
    %v1918 = vpack.c.b16 %v1778, %v1774
    %v1919 = vpack.c.b16 %v1779, %v1775
    %v1920 = vpack.c.b16 %v1784, %v1780
    %v1921 = vpack.c.b16 %v1785, %v1781
    %v1922 = vpack.c.b16 %v1786, %v1782
    %v1923 = vpack.c.b16 %v1787, %v1783
    %v1924 = vpack.c.b16 %v1792, %v1788
    %v1925 = vpack.c.b16 %v1793, %v1789
    %v1926 = vpack.c.b16 %v1794, %v1790
    %v1927 = vpack.c.b16 %v1795, %v1791
    %v1928 = vpack.c.b16 %v1800, %v1796
    %v1929 = vpack.c.b16 %v1801, %v1797
    %v1930 = vpack.c.b16 %v1802, %v1798
    %v1931 = vpack.c.b16 %v1803, %v1799
    %2060 = vmatprep.subr.bf16.mxu0 %v1805
    %2061 = vmatpush1.bf16.msra.mxu0 %v1804
    %2062 = vmatprep.subr.bf16.mxu0 %v1809
    %2063 = vmatpush1.bf16.msra.mxu0 %v1808
    %2064 = vmatprep.subr.bf16.mxu0 %v1813
    %2065 = vmatpush1.bf16.msra.mxu0 %v1812
    %2066 = vmatprep.subr.bf16.mxu0 %v1817
    %2067 = vmatpush1.bf16.msra.mxu0 %v1816
    %2068 = vmatprep.subr.bf16.mxu0 %v1821
    %2069 = vmatpush1.bf16.msra.mxu0 %v1820
    %2070 = vmatprep.subr.bf16.mxu0 %v1825
    %2071 = vmatpush1.bf16.msra.mxu0 %v1824
    %2072 = vmatprep.subr.bf16.mxu0 %v1829
    %2073 = vmatpush1.bf16.msra.mxu0 %v1828
    %2074 = vmatprep.subr.bf16.mxu0 %v1833
    %2075 = vmatpush1.bf16.msra.mxu0 %v1832
    %2076 = vmatprep.subr.bf16.mxu0 %v1837
    %2077 = vmatpush1.bf16.msra.mxu0 %v1836
    %2078 = vmatprep.subr.bf16.mxu0 %v1841
    %2079 = vmatpush1.bf16.msra.mxu0 %v1840
    %2080 = vmatprep.subr.bf16.mxu0 %v1845
    %2081 = vmatpush1.bf16.msra.mxu0 %v1844
    %2082 = vmatprep.subr.bf16.mxu0 %v1849
    %2083 = vmatpush1.bf16.msra.mxu0 %v1848
    %2084 = vmatprep.subr.bf16.mxu0 %v1853
    %2085 = vmatpush1.bf16.msra.mxu0 %v1852
    %2086 = vmatprep.subr.bf16.mxu0 %v1857
    %2087 = vmatpush1.bf16.msra.mxu0 %v1856
    %2088 = vmatprep.subr.bf16.mxu0 %v1861
    %2089 = vmatpush1.bf16.msra.mxu0 %v1860
    %2090 = vmatprep.subr.bf16.mxu0 %v1865
    %2091 = vmatpush1.bf16.msra.mxu0 %v1864
    %2092 = vmatprep.mubr.bf16.mxu0 %v1405
    %2093 = vmatmul.mubr.bf16.gmra.mrb[0].mxu0 %v1404
    %v2094 = vpop.f32.mrb[0].mxu0
    %v2095 = vadd.f32 %v1264, %v2094
    %v2096 = vpop.f32.mrb[0].mxu0
    %v2097 = vadd.f32 %v1266, %v2096
    %v2098 = vpop.f32.mrb[0].mxu0
    %v2099 = vadd.f32 %v1268, %v2098
    %v2100 = vpop.f32.mrb[0].mxu0
    %v2101 = vadd.f32 %v1270, %v2100
    %2102 = vmatprep.mubr.bf16.mxu0 %v1409
    %2103 = vmatmul.mubr.bf16.gmra.mrb[0].mxu0 %v1408
    %v2104 = vpop.f32.mrb[0].mxu0
    %v2105 = vadd.f32 %v1274, %v2104
    %v2106 = vpop.f32.mrb[0].mxu0
    %v2107 = vadd.f32 %v1276, %v2106
    %v2108 = vpop.f32.mrb[0].mxu0
    %v2109 = vadd.f32 %v1278, %v2108
    %v2110 = vpop.f32.mrb[0].mxu0
    %v2111 = vadd.f32 %v1280, %v2110
    %2112 = vdwg.mxu0
    %2113 = vmatprep.subr.bf16.mxu0 %v1869
    %2114 = vmatpush1.bf16.msra.mxu0 %v1868
    %2115 = vmatprep.subr.bf16.mxu0 %v1873
    %2116 = vmatpush1.bf16.msra.mxu0 %v1872
    %2117 = vmatprep.subr.bf16.mxu0 %v1877
    %2118 = vmatpush1.bf16.msra.mxu0 %v1876
    %2119 = vmatprep.subr.bf16.mxu0 %v1881
    %2120 = vmatpush1.bf16.msra.mxu0 %v1880
    %2121 = vmatprep.subr.bf16.mxu0 %v1885
    %2122 = vmatpush1.bf16.msra.mxu0 %v1884
    %2123 = vmatprep.subr.bf16.mxu0 %v1889
    %2124 = vmatpush1.bf16.msra.mxu0 %v1888
    %2125 = vmatprep.subr.bf16.mxu0 %v1893
    %2126 = vmatpush1.bf16.msra.mxu0 %v1892
    %2127 = vmatprep.subr.bf16.mxu0 %v1897
    %2128 = vmatpush1.bf16.msra.mxu0 %v1896
    %2129 = vmatprep.subr.bf16.mxu0 %v1901
    %2130 = vmatpush1.bf16.msra.mxu0 %v1900
    %2131 = vmatprep.subr.bf16.mxu0 %v1905
    %2132 = vmatpush1.bf16.msra.mxu0 %v1904
    %2133 = vmatprep.subr.bf16.mxu0 %v1909
    %2134 = vmatpush1.bf16.msra.mxu0 %v1908
    %2135 = vmatprep.subr.bf16.mxu0 %v1913
    %2136 = vmatpush1.bf16.msra.mxu0 %v1912
    %2137 = vmatprep.subr.bf16.mxu0 %v1917
    %2138 = vmatpush1.bf16.msra.mxu0 %v1916
    %2139 = vmatprep.subr.bf16.mxu0 %v1921
    %2140 = vmatpush1.bf16.msra.mxu0 %v1920
    %2141 = vmatprep.subr.bf16.mxu0 %v1925
    %2142 = vmatpush1.bf16.msra.mxu0 %v1924
    %2143 = vmatprep.subr.bf16.mxu0 %v1929
    %2144 = vmatpush1.bf16.msra.mxu0 %v1928
    %2145 = vmatprep.mubr.bf16.mxu0 %v1407
    %2146 = vmatmul.mubr.bf16.gmra.mrb[0].mxu0 %v1406
    %v2147 = vpop.f32.mrb[0].mxu0
    %v2148 = vadd.f32 %v2095, %v2147
    %v2149 = vpop.f32.mrb[0].mxu0
    %v2150 = vadd.f32 %v2097, %v2149
    %v2151 = vpop.f32.mrb[0].mxu0
    %v2152 = vadd.f32 %v2099, %v2151
    %v2153 = vpop.f32.mrb[0].mxu0
    %v2154 = vadd.f32 %v2101, %v2153
    %2155 = vmatprep.mubr.bf16.mxu0 %v1411
    %2156 = vmatmul.mubr.bf16.gmra.mrb[0].mxu0 %v1410
    %v2157 = vpop.f32.mrb[0].mxu0
    %v2158 = vadd.f32 %v2105, %v2157
    %v2159 = vpop.f32.mrb[0].mxu0
    %v2160 = vadd.f32 %v2107, %v2159
    %v2161 = vpop.f32.mrb[0].mxu0
    %v2162 = vadd.f32 %v2109, %v2161
    %v2163 = vpop.f32.mrb[0].mxu0
    %v2164 = vadd.f32 %v2111, %v2163
    %2165 = vdwg.mxu0
    %2166 = vmatprep.subr.bf16.mxu0 %v1807
    %2167 = vmatpush1.bf16.msra.mxu0 %v1806
    %2168 = vmatprep.subr.bf16.mxu0 %v1811
    %2169 = vmatpush1.bf16.msra.mxu0 %v1810
    %2170 = vmatprep.subr.bf16.mxu0 %v1815
    %2171 = vmatpush1.bf16.msra.mxu0 %v1814
    %2172 = vmatprep.subr.bf16.mxu0 %v1819
    %2173 = vmatpush1.bf16.msra.mxu0 %v1818
    %2174 = vmatprep.subr.bf16.mxu0 %v1823
    %2175 = vmatpush1.bf16.msra.mxu0 %v1822
    %2176 = vmatprep.subr.bf16.mxu0 %v1827
    %2177 = vmatpush1.bf16.msra.mxu0 %v1826
    %2178 = vmatprep.subr.bf16.mxu0 %v1831
    %2179 = vmatpush1.bf16.msra.mxu0 %v1830
    %2180 = vmatprep.subr.bf16.mxu0 %v1835
    %2181 = vmatpush1.bf16.msra.mxu0 %v1834
    %2182 = vmatprep.subr.bf16.mxu0 %v1839
    %2183 = vmatpush1.bf16.msra.mxu0 %v1838
    %2184 = vmatprep.subr.bf16.mxu0 %v1843
    %2185 = vmatpush1.bf16.msra.mxu0 %v1842
    %2186 = vmatprep.subr.bf16.mxu0 %v1847
    %2187 = vmatpush1.bf16.msra.mxu0 %v1846
    %2188 = vmatprep.subr.bf16.mxu0 %v1851
    %2189 = vmatpush1.bf16.msra.mxu0 %v1850
    %2190 = vmatprep.subr.bf16.mxu0 %v1855
    %2191 = vmatpush1.bf16.msra.mxu0 %v1854
    %2192 = vmatprep.subr.bf16.mxu0 %v1859
    %2193 = vmatpush1.bf16.msra.mxu0 %v1858
    %2194 = vmatprep.subr.bf16.mxu0 %v1863
    %2195 = vmatpush1.bf16.msra.mxu0 %v1862
    %2196 = vmatprep.subr.bf16.mxu0 %v1867
    %2197 = vmatpush1.bf16.msra.mxu0 %v1866
    %2198 = vmatprep.mubr.bf16.mxu0 %v1405
    %2199 = vmatmul.mubr.bf16.gmra.mrb[0].mxu0 %v1404
    %v2200 = vpop.f32.mrb[0].mxu0
    %v2201 = vadd.f32 %v1370, %v2200
    %v2202 = vpop.f32.mrb[0].mxu0
    %v2203 = vadd.f32 %v1372, %v2202
    %v2204 = vpop.f32.mrb[0].mxu0
    %v2205 = vadd.f32 %v1374, %v2204
    %v2206 = vpop.f32.mrb[0].mxu0
    %v2207 = vadd.f32 %v1376, %v2206
    %2208 = vmatprep.mubr.bf16.mxu0 %v1409
    %2209 = vmatmul.mubr.bf16.gmra.mrb[0].mxu0 %v1408
    %v2210 = vpop.f32.mrb[0].mxu0
    %v2211 = vadd.f32 %v1380, %v2210
    %v2212 = vpop.f32.mrb[0].mxu0
    %v2213 = vadd.f32 %v1382, %v2212
    %v2214 = vpop.f32.mrb[0].mxu0
    %v2215 = vadd.f32 %v1384, %v2214
    %v2216 = vpop.f32.mrb[0].mxu0
    %v2217 = vadd.f32 %v1386, %v2216
    %2218 = vdwg.mxu0
    %2219 = vmatprep.subr.bf16.mxu0 %v1871
    %2220 = vmatpush1.bf16.msra.mxu0 %v1870
    %2221 = vmatprep.subr.bf16.mxu0 %v1875
    %2222 = vmatpush1.bf16.msra.mxu0 %v1874
    %2223 = vmatprep.subr.bf16.mxu0 %v1879
    %2224 = vmatpush1.bf16.msra.mxu0 %v1878
    %2225 = vmatprep.subr.bf16.mxu0 %v1883
    %2226 = vmatpush1.bf16.msra.mxu0 %v1882
    %2227 = vmatprep.subr.bf16.mxu0 %v1887
    %2228 = vmatpush1.bf16.msra.mxu0 %v1886
    %2229 = vmatprep.subr.bf16.mxu0 %v1891
    %2230 = vmatpush1.bf16.msra.mxu0 %v1890
    %2231 = vmatprep.subr.bf16.mxu0 %v1895
    %2232 = vmatpush1.bf16.msra.mxu0 %v1894
    %2233 = vmatprep.subr.bf16.mxu0 %v1899
    %2234 = vmatpush1.bf16.msra.mxu0 %v1898
    %2235 = vmatprep.subr.bf16.mxu0 %v1903
    %2236 = vmatpush1.bf16.msra.mxu0 %v1902
    %2237 = vmatprep.subr.bf16.mxu0 %v1907
    %2238 = vmatpush1.bf16.msra.mxu0 %v1906
    %2239 = vmatprep.subr.bf16.mxu0 %v1911
    %2240 = vmatpush1.bf16.msra.mxu0 %v1910
    %2241 = vmatprep.subr.bf16.mxu0 %v1915
    %2242 = vmatpush1.bf16.msra.mxu0 %v1914
    %2243 = vmatprep.subr.bf16.mxu0 %v1919
    %2244 = vmatpush1.bf16.msra.mxu0 %v1918
    %2245 = vmatprep.subr.bf16.mxu0 %v1923
    %2246 = vmatpush1.bf16.msra.mxu0 %v1922
    %2247 = vmatprep.subr.bf16.mxu0 %v1927
    %2248 = vmatpush1.bf16.msra.mxu0 %v1926
    %2249 = vmatprep.subr.bf16.mxu0 %v1931
    %2250 = vmatpush1.bf16.msra.mxu0 %v1930
    %2251 = vmatprep.mubr.bf16.mxu0 %v1407
    %2252 = vmatmul.mubr.bf16.gmra.mrb[0].mxu0 %v1406
    %v2253 = vpop.f32.mrb[0].mxu0
    %v2254 = vadd.f32 %v2201, %v2253
    %v2255 = vpop.f32.mrb[0].mxu0
    %v2256 = vadd.f32 %v2203, %v2255
    %v2257 = vpop.f32.mrb[0].mxu0
    %v2258 = vadd.f32 %v2205, %v2257
    %v2259 = vpop.f32.mrb[0].mxu0
    %v2260 = vadd.f32 %v2207, %v2259
    %2261 = vmatprep.mubr.bf16.mxu0 %v1411
    %2262 = vmatmul.mubr.bf16.gmra.mrb[0].mxu0 %v1410
    %v2263 = vpop.f32.mrb[0].mxu0
    %v2264 = vadd.f32 %v2211, %v2263
    %v2265 = vpop.f32.mrb[0].mxu0
    %v2266 = vadd.f32 %v2213, %v2265
    %v2267 = vpop.f32.mrb[0].mxu0
    %v2268 = vadd.f32 %v2215, %v2267
    %v2269 = vpop.f32.mrb[0].mxu0
    %v2270 = vadd.f32 %v2217, %v2269
    %2271 = vdwg.mxu0
    %v2272 = vld [vmem:[%s0] sm:$0xee]
    %v2273 = vld [vmem:[%s0 + $0x8] sm:$0xee]
    %v2274 = vld [vmem:[%s0 + $0x30] sm:$0xee]
    %v2275 = vld [vmem:[%s0 + $0x38] sm:$0xee]
    %vm2284 = vcmask 1042432
    %vm2285 = vcmask 1046532
    %vm2286 = vmor %vm2284, %vm2285
    %v2287 = vrot.slane %v2272, 5
    %v2288 = vrot.slane %v2287, 4
    %v2289 = vrot.slane %v130, 5
    %v2290 = vsel %vm2286, %v2288, %v2289
    %v2291 = vrot.slane %v2273, 5
    %v2292 = vrot.slane %v2291, 4
    %v2293 = vrot.slane %v131, 5
    %v2294 = vsel %vm2286, %v2292, %v2293
    %v2295 = vrot.slane %v2289, 4
    %v2296 = vrot.slane %v132, 5
    %v2297 = vsel %vm2286, %v2295, %v2296
    %v2298 = vrot.slane %v2293, 4
    %v2299 = vrot.slane %v133, 5
    %v2300 = vsel %vm2286, %v2298, %v2299
    %v2301 = vrot.slane %v2274, 5
    %v2302 = vrot.slane %v2301, 4
    %v2303 = vrot.slane %v136, 5
    %v2304 = vsel %vm2286, %v2302, %v2303
    %v2305 = vrot.slane %v2275, 5
    %v2306 = vrot.slane %v2305, 4
    %v2307 = vrot.slane %v137, 5
    %v2308 = vsel %vm2286, %v2306, %v2307
    %v2309 = vrot.slane %v2303, 4
    %v2310 = vrot.slane %v138, 5
    %v2311 = vsel %vm2286, %v2309, %v2310
    %v2312 = vrot.slane %v2307, 4
    %v2313 = vrot.slane %v139, 5
    %v2314 = vsel %vm2286, %v2312, %v2313
    %s2315 = scalar_lea.vmem [#allocation6], 2048
    %v2316 = vld [vmem:[%s2315] sm:$0xff]
    %v2317 = vld [vmem:[%s2315 + $0x8] sm:$0xff]
    %v2318 = vld [vmem:[%s2315 + $0x10] sm:$0xff]
    %v2319 = vld [vmem:[%s2315 + $0x18] sm:$0xff]
    %v2320 = vld [vmem:[%s2315 + $0x20] sm:$0xff]
    %v2321 = vld [vmem:[%s2315 + $0x28] sm:$0xff]
    %v2322 = vld [vmem:[%s2315 + $0x30] sm:$0xff]
    %v2323 = vld [vmem:[%s2315 + $0x38] sm:$0xff]
    %v2324 = vld [vmem:[%s2315 + $0x40] sm:$0xff]
    %v2325 = vld [vmem:[%s2315 + $0x48] sm:$0xff]
    %v2326 = vld [vmem:[%s2315 + $0x50] sm:$0xff]
    %v2327 = vld [vmem:[%s2315 + $0x58] sm:$0xff]
    %v2328 = vld [vmem:[%s2315 + $0x60] sm:$0xff]
    %v2329 = vld [vmem:[%s2315 + $0x68] sm:$0xff]
    %v2330 = vld [vmem:[%s2315 + $0x70] sm:$0xff]
    %v2331 = vld [vmem:[%s2315 + $0x78] sm:$0xff]
    %v2332 = vld [vmem:[%s2315 + $0x80] sm:$0xff]
    %v2333 = vld [vmem:[%s2315 + $0x88] sm:$0xff]
    %v2334 = vld [vmem:[%s2315 + $0x90] sm:$0xff]
    %v2335 = vld [vmem:[%s2315 + $0x98] sm:$0xff]
    %v2336 = vld [vmem:[%s2315 + $0xa0] sm:$0xff]
    %v2337 = vld [vmem:[%s2315 + $0xa8] sm:$0xff]
    %v2338 = vld [vmem:[%s2315 + $0xb0] sm:$0xff]
    %v2339 = vld [vmem:[%s2315 + $0xb8] sm:$0xff]
    %v2340 = vld [vmem:[%s2315 + $0xc0] sm:$0xff]
    %v2341 = vld [vmem:[%s2315 + $0xc8] sm:$0xff]
    %v2342 = vld [vmem:[%s2315 + $0xd0] sm:$0xff]
    %v2343 = vld [vmem:[%s2315 + $0xd8] sm:$0xff]
    %v2344 = vld [vmem:[%s2315 + $0xe0] sm:$0xff]
    %v2345 = vld [vmem:[%s2315 + $0xe8] sm:$0xff]
    %v2346 = vld [vmem:[%s2315 + $0xf0] sm:$0xff]
    %v2347 = vld [vmem:[%s2315 + $0xf8] sm:$0xff]
    %v2348 = vld [vmem:[%s2315 + $0x100] sm:$0xff]
    %v2349 = vld [vmem:[%s2315 + $0x108] sm:$0xff]
    %v2350 = vld [vmem:[%s2315 + $0x110] sm:$0xff]
    %v2351 = vld [vmem:[%s2315 + $0x118] sm:$0xff]
    %v2352 = vld [vmem:[%s2315 + $0x120] sm:$0xff]
    %v2353 = vld [vmem:[%s2315 + $0x128] sm:$0xff]
    %v2354 = vld [vmem:[%s2315 + $0x130] sm:$0xff]
    %v2355 = vld [vmem:[%s2315 + $0x138] sm:$0xff]
    %v2356 = vld [vmem:[%s2315 + $0x140] sm:$0xff]
    %v2357 = vld [vmem:[%s2315 + $0x148] sm:$0xff]
    %v2358 = vld [vmem:[%s2315 + $0x150] sm:$0xff]
    %v2359 = vld [vmem:[%s2315 + $0x158] sm:$0xff]
    %v2360 = vld [vmem:[%s2315 + $0x160] sm:$0xff]
    %v2361 = vld [vmem:[%s2315 + $0x168] sm:$0xff]
    %v2362 = vld [vmem:[%s2315 + $0x170] sm:$0xff]
    %v2363 = vld [vmem:[%s2315 + $0x178] sm:$0xff]
    %v2364 = vld [vmem:[%s2315 + $0x180] sm:$0xff]
    %v2365 = vld [vmem:[%s2315 + $0x188] sm:$0xff]
    %v2366 = vld [vmem:[%s2315 + $0x190] sm:$0xff]
    %v2367 = vld [vmem:[%s2315 + $0x198] sm:$0xff]
    %v2368 = vld [vmem:[%s2315 + $0x1a0] sm:$0xff]
    %v2369 = vld [vmem:[%s2315 + $0x1a8] sm:$0xff]
    %v2370 = vld [vmem:[%s2315 + $0x1b0] sm:$0xff]
    %v2371 = vld [vmem:[%s2315 + $0x1b8] sm:$0xff]
    %v2372 = vld [vmem:[%s2315 + $0x1c0] sm:$0xff]
    %v2373 = vld [vmem:[%s2315 + $0x1c8] sm:$0xff]
    %v2374 = vld [vmem:[%s2315 + $0x1d0] sm:$0xff]
    %v2375 = vld [vmem:[%s2315 + $0x1d8] sm:$0xff]
    %v2376 = vld [vmem:[%s2315 + $0x1e0] sm:$0xff]
    %v2377 = vld [vmem:[%s2315 + $0x1e8] sm:$0xff]
    %v2378 = vld [vmem:[%s2315 + $0x1f0] sm:$0xff]
    %v2379 = vld [vmem:[%s2315 + $0x1f8] sm:$0xff]
    %v2380 = vld [vmem:[%s2315 + $0x200] sm:$0xff]
    %v2381 = vld [vmem:[%s2315 + $0x208] sm:$0xff]
    %v2382 = vld [vmem:[%s2315 + $0x210] sm:$0xff]
    %v2383 = vld [vmem:[%s2315 + $0x218] sm:$0xff]
    %v2384 = vld [vmem:[%s2315 + $0x220] sm:$0xff]
    %v2385 = vld [vmem:[%s2315 + $0x228] sm:$0xff]
    %v2386 = vld [vmem:[%s2315 + $0x230] sm:$0xff]
    %v2387 = vld [vmem:[%s2315 + $0x238] sm:$0xff]
    %v2388 = vld [vmem:[%s2315 + $0x240] sm:$0xff]
    %v2389 = vld [vmem:[%s2315 + $0x248] sm:$0xff]
    %v2390 = vld [vmem:[%s2315 + $0x250] sm:$0xff]
    %v2391 = vld [vmem:[%s2315 + $0x258] sm:$0xff]
    %v2392 = vld [vmem:[%s2315 + $0x260] sm:$0xff]
    %v2393 = vld [vmem:[%s2315 + $0x268] sm:$0xff]
    %v2394 = vld [vmem:[%s2315 + $0x270] sm:$0xff]
    %v2395 = vld [vmem:[%s2315 + $0x278] sm:$0xff]
    %v2396 = vld [vmem:[%s2315 + $0x280] sm:$0xff]
    %v2397 = vld [vmem:[%s2315 + $0x288] sm:$0xff]
    %v2398 = vld [vmem:[%s2315 + $0x290] sm:$0xff]
    %v2399 = vld [vmem:[%s2315 + $0x298] sm:$0xff]
    %v2400 = vld [vmem:[%s2315 + $0x2a0] sm:$0xff]
    %v2401 = vld [vmem:[%s2315 + $0x2a8] sm:$0xff]
    %v2402 = vld [vmem:[%s2315 + $0x2b0] sm:$0xff]
    %v2403 = vld [vmem:[%s2315 + $0x2b8] sm:$0xff]
    %v2404 = vld [vmem:[%s2315 + $0x2c0] sm:$0xff]
    %v2405 = vld [vmem:[%s2315 + $0x2c8] sm:$0xff]
    %v2406 = vld [vmem:[%s2315 + $0x2d0] sm:$0xff]
    %v2407 = vld [vmem:[%s2315 + $0x2d8] sm:$0xff]
    %v2408 = vld [vmem:[%s2315 + $0x2e0] sm:$0xff]
    %v2409 = vld [vmem:[%s2315 + $0x2e8] sm:$0xff]
    %v2410 = vld [vmem:[%s2315 + $0x2f0] sm:$0xff]
    %v2411 = vld [vmem:[%s2315 + $0x2f8] sm:$0xff]
    %v2412 = vld [vmem:[%s2315 + $0x300] sm:$0xff]
    %v2413 = vld [vmem:[%s2315 + $0x308] sm:$0xff]
    %v2414 = vld [vmem:[%s2315 + $0x310] sm:$0xff]
    %v2415 = vld [vmem:[%s2315 + $0x318] sm:$0xff]
    %v2416 = vld [vmem:[%s2315 + $0x320] sm:$0xff]
    %v2417 = vld [vmem:[%s2315 + $0x328] sm:$0xff]
    %v2418 = vld [vmem:[%s2315 + $0x330] sm:$0xff]
    %v2419 = vld [vmem:[%s2315 + $0x338] sm:$0xff]
    %v2420 = vld [vmem:[%s2315 + $0x340] sm:$0xff]
    %v2421 = vld [vmem:[%s2315 + $0x348] sm:$0xff]
    %v2422 = vld [vmem:[%s2315 + $0x350] sm:$0xff]
    %v2423 = vld [vmem:[%s2315 + $0x358] sm:$0xff]
    %v2424 = vld [vmem:[%s2315 + $0x360] sm:$0xff]
    %v2425 = vld [vmem:[%s2315 + $0x368] sm:$0xff]
    %v2426 = vld [vmem:[%s2315 + $0x370] sm:$0xff]
    %v2427 = vld [vmem:[%s2315 + $0x378] sm:$0xff]
    %v2428 = vld [vmem:[%s2315 + $0x380] sm:$0xff]
    %v2429 = vld [vmem:[%s2315 + $0x388] sm:$0xff]
    %v2430 = vld [vmem:[%s2315 + $0x390] sm:$0xff]
    %v2431 = vld [vmem:[%s2315 + $0x398] sm:$0xff]
    %v2432 = vld [vmem:[%s2315 + $0x3a0] sm:$0xff]
    %v2433 = vld [vmem:[%s2315 + $0x3a8] sm:$0xff]
    %v2434 = vld [vmem:[%s2315 + $0x3b0] sm:$0xff]
    %v2435 = vld [vmem:[%s2315 + $0x3b8] sm:$0xff]
    %v2436 = vld [vmem:[%s2315 + $0x3c0] sm:$0xff]
    %v2437 = vld [vmem:[%s2315 + $0x3c8] sm:$0xff]
    %v2438 = vld [vmem:[%s2315 + $0x3d0] sm:$0xff]
    %v2439 = vld [vmem:[%s2315 + $0x3d8] sm:$0xff]
    %v2440 = vld [vmem:[%s2315 + $0x3e0] sm:$0xff]
    %v2441 = vld [vmem:[%s2315 + $0x3e8] sm:$0xff]
    %v2442 = vld [vmem:[%s2315 + $0x3f0] sm:$0xff]
    %v2443 = vld [vmem:[%s2315 + $0x3f8] sm:$0xff]
    %v2444 = vunpack.c.l.b16 %v2290
    %v2445 = vunpack.c.h.b16 %v2290
    %v2446 = vunpack.c.l.b16 %v2294
    %v2447 = vunpack.c.h.b16 %v2294
    %v2448 = vunpack.c.l.b16 %v2297
    %v2449 = vunpack.c.h.b16 %v2297
    %v2450 = vunpack.c.l.b16 %v2300
    %v2451 = vunpack.c.h.b16 %v2300
    %v2452 = vunpack.c.l.b16 %v2304
    %v2453 = vunpack.c.h.b16 %v2304
    %v2454 = vunpack.c.l.b16 %v2308
    %v2455 = vunpack.c.h.b16 %v2308
    %v2456 = vunpack.c.l.b16 %v2311
    %v2457 = vunpack.c.h.b16 %v2311
    %v2458 = vunpack.c.l.b16 %v2314
    %v2459 = vunpack.c.h.b16 %v2314
    %v2460 = vpack.c.b16 %v2448, %v2444
    %v2461 = vpack.c.b16 %v2449, %v2445
    %v2462 = vpack.c.b16 %v2450, %v2446
    %v2463 = vpack.c.b16 %v2451, %v2447
    %v2464 = vpack.c.b16 %v2456, %v2452
    %v2465 = vpack.c.b16 %v2457, %v2453
    %v2466 = vpack.c.b16 %v2458, %v2454
    %v2467 = vpack.c.b16 %v2459, %v2455
    %v2604 = vunpack.c.l.b16 %v2316
    %v2605 = vunpack.c.h.b16 %v2316
    %v2606 = vunpack.c.l.b16 %v2317
    %v2607 = vunpack.c.h.b16 %v2317
    %v2608 = vunpack.c.l.b16 %v2318
    %v2609 = vunpack.c.h.b16 %v2318
    %v2610 = vunpack.c.l.b16 %v2319
    %v2611 = vunpack.c.h.b16 %v2319
    %v2612 = vunpack.c.l.b16 %v2320
    %v2613 = vunpack.c.h.b16 %v2320
    %v2614 = vunpack.c.l.b16 %v2321
    %v2615 = vunpack.c.h.b16 %v2321
    %v2616 = vunpack.c.l.b16 %v2322
    %v2617 = vunpack.c.h.b16 %v2322
    %v2618 = vunpack.c.l.b16 %v2323
    %v2619 = vunpack.c.h.b16 %v2323
    %v2620 = vunpack.c.l.b16 %v2324
    %v2621 = vunpack.c.h.b16 %v2324
    %v2622 = vunpack.c.l.b16 %v2325
    %v2623 = vunpack.c.h.b16 %v2325
    %v2624 = vunpack.c.l.b16 %v2326
    %v2625 = vunpack.c.h.b16 %v2326
    %v2626 = vunpack.c.l.b16 %v2327
    %v2627 = vunpack.c.h.b16 %v2327
    %v2628 = vunpack.c.l.b16 %v2328
    %v2629 = vunpack.c.h.b16 %v2328
    %v2630 = vunpack.c.l.b16 %v2329
    %v2631 = vunpack.c.h.b16 %v2329
    %v2632 = vunpack.c.l.b16 %v2330
    %v2633 = vunpack.c.h.b16 %v2330
    %v2634 = vunpack.c.l.b16 %v2331
    %v2635 = vunpack.c.h.b16 %v2331
    %v2636 = vunpack.c.l.b16 %v2332
    %v2637 = vunpack.c.h.b16 %v2332
    %v2638 = vunpack.c.l.b16 %v2333
    %v2639 = vunpack.c.h.b16 %v2333
    %v2640 = vunpack.c.l.b16 %v2334
    %v2641 = vunpack.c.h.b16 %v2334
    %v2642 = vunpack.c.l.b16 %v2335
    %v2643 = vunpack.c.h.b16 %v2335
    %v2644 = vunpack.c.l.b16 %v2336
    %v2645 = vunpack.c.h.b16 %v2336
    %v2646 = vunpack.c.l.b16 %v2337
    %v2647 = vunpack.c.h.b16 %v2337
    %v2648 = vunpack.c.l.b16 %v2338
    %v2649 = vunpack.c.h.b16 %v2338
    %v2650 = vunpack.c.l.b16 %v2339
    %v2651 = vunpack.c.h.b16 %v2339
    %v2652 = vunpack.c.l.b16 %v2340
    %v2653 = vunpack.c.h.b16 %v2340
    %v2654 = vunpack.c.l.b16 %v2341
    %v2655 = vunpack.c.h.b16 %v2341
    %v2656 = vunpack.c.l.b16 %v2342
    %v2657 = vunpack.c.h.b16 %v2342
    %v2658 = vunpack.c.l.b16 %v2343
    %v2659 = vunpack.c.h.b16 %v2343
    %v2660 = vunpack.c.l.b16 %v2344
    %v2661 = vunpack.c.h.b16 %v2344
    %v2662 = vunpack.c.l.b16 %v2345
    %v2663 = vunpack.c.h.b16 %v2345
    %v2664 = vunpack.c.l.b16 %v2346
    %v2665 = vunpack.c.h.b16 %v2346
    %v2666 = vunpack.c.l.b16 %v2347
    %v2667 = vunpack.c.h.b16 %v2347
    %v2668 = vunpack.c.l.b16 %v2348
    %v2669 = vunpack.c.h.b16 %v2348
    %v2670 = vunpack.c.l.b16 %v2349
    %v2671 = vunpack.c.h.b16 %v2349
    %v2672 = vunpack.c.l.b16 %v2350
    %v2673 = vunpack.c.h.b16 %v2350
    %v2674 = vunpack.c.l.b16 %v2351
    %v2675 = vunpack.c.h.b16 %v2351
    %v2676 = vunpack.c.l.b16 %v2352
    %v2677 = vunpack.c.h.b16 %v2352
    %v2678 = vunpack.c.l.b16 %v2353
    %v2679 = vunpack.c.h.b16 %v2353
    %v2680 = vunpack.c.l.b16 %v2354
    %v2681 = vunpack.c.h.b16 %v2354
    %v2682 = vunpack.c.l.b16 %v2355
    %v2683 = vunpack.c.h.b16 %v2355
    %v2684 = vunpack.c.l.b16 %v2356
    %v2685 = vunpack.c.h.b16 %v2356
    %v2686 = vunpack.c.l.b16 %v2357
    %v2687 = vunpack.c.h.b16 %v2357
    %v2688 = vunpack.c.l.b16 %v2358
    %v2689 = vunpack.c.h.b16 %v2358
    %v2690 = vunpack.c.l.b16 %v2359
    %v2691 = vunpack.c.h.b16 %v2359
    %v2692 = vunpack.c.l.b16 %v2360
    %v2693 = vunpack.c.h.b16 %v2360
    %v2694 = vunpack.c.l.b16 %v2361
    %v2695 = vunpack.c.h.b16 %v2361
    %v2696 = vunpack.c.l.b16 %v2362
    %v2697 = vunpack.c.h.b16 %v2362
    %v2698 = vunpack.c.l.b16 %v2363
    %v2699 = vunpack.c.h.b16 %v2363
    %v2700 = vunpack.c.l.b16 %v2364
    %v2701 = vunpack.c.h.b16 %v2364
    %v2702 = vunpack.c.l.b16 %v2365
    %v2703 = vunpack.c.h.b16 %v2365
    %v2704 = vunpack.c.l.b16 %v2366
    %v2705 = vunpack.c.h.b16 %v2366
    %v2706 = vunpack.c.l.b16 %v2367
    %v2707 = vunpack.c.h.b16 %v2367
    %v2708 = vunpack.c.l.b16 %v2368
    %v2709 = vunpack.c.h.b16 %v2368
    %v2710 = vunpack.c.l.b16 %v2369
    %v2711 = vunpack.c.h.b16 %v2369
    %v2712 = vunpack.c.l.b16 %v2370
    %v2713 = vunpack.c.h.b16 %v2370
    %v2714 = vunpack.c.l.b16 %v2371
    %v2715 = vunpack.c.h.b16 %v2371
    %v2716 = vunpack.c.l.b16 %v2372
    %v2717 = vunpack.c.h.b16 %v2372
    %v2718 = vunpack.c.l.b16 %v2373
    %v2719 = vunpack.c.h.b16 %v2373
    %v2720 = vunpack.c.l.b16 %v2374
    %v2721 = vunpack.c.h.b16 %v2374
    %v2722 = vunpack.c.l.b16 %v2375
    %v2723 = vunpack.c.h.b16 %v2375
    %v2724 = vunpack.c.l.b16 %v2376
    %v2725 = vunpack.c.h.b16 %v2376
    %v2726 = vunpack.c.l.b16 %v2377
    %v2727 = vunpack.c.h.b16 %v2377
    %v2728 = vunpack.c.l.b16 %v2378
    %v2729 = vunpack.c.h.b16 %v2378
    %v2730 = vunpack.c.l.b16 %v2379
    %v2731 = vunpack.c.h.b16 %v2379
    %v2732 = vunpack.c.l.b16 %v2380
    %v2733 = vunpack.c.h.b16 %v2380
    %v2734 = vunpack.c.l.b16 %v2381
    %v2735 = vunpack.c.h.b16 %v2381
    %v2736 = vunpack.c.l.b16 %v2382
    %v2737 = vunpack.c.h.b16 %v2382
    %v2738 = vunpack.c.l.b16 %v2383
    %v2739 = vunpack.c.h.b16 %v2383
    %v2740 = vunpack.c.l.b16 %v2384
    %v2741 = vunpack.c.h.b16 %v2384
    %v2742 = vunpack.c.l.b16 %v2385
    %v2743 = vunpack.c.h.b16 %v2385
    %v2744 = vunpack.c.l.b16 %v2386
    %v2745 = vunpack.c.h.b16 %v2386
    %v2746 = vunpack.c.l.b16 %v2387
    %v2747 = vunpack.c.h.b16 %v2387
    %v2748 = vunpack.c.l.b16 %v2388
    %v2749 = vunpack.c.h.b16 %v2388
    %v2750 = vunpack.c.l.b16 %v2389
    %v2751 = vunpack.c.h.b16 %v2389
    %v2752 = vunpack.c.l.b16 %v2390
    %v2753 = vunpack.c.h.b16 %v2390
    %v2754 = vunpack.c.l.b16 %v2391
    %v2755 = vunpack.c.h.b16 %v2391
    %v2756 = vunpack.c.l.b16 %v2392
    %v2757 = vunpack.c.h.b16 %v2392
    %v2758 = vunpack.c.l.b16 %v2393
    %v2759 = vunpack.c.h.b16 %v2393
    %v2760 = vunpack.c.l.b16 %v2394
    %v2761 = vunpack.c.h.b16 %v2394
    %v2762 = vunpack.c.l.b16 %v2395
    %v2763 = vunpack.c.h.b16 %v2395
    %v2764 = vunpack.c.l.b16 %v2396
    %v2765 = vunpack.c.h.b16 %v2396
    %v2766 = vunpack.c.l.b16 %v2397
    %v2767 = vunpack.c.h.b16 %v2397
    %v2768 = vunpack.c.l.b16 %v2398
    %v2769 = vunpack.c.h.b16 %v2398
    %v2770 = vunpack.c.l.b16 %v2399
    %v2771 = vunpack.c.h.b16 %v2399
    %v2772 = vunpack.c.l.b16 %v2400
    %v2773 = vunpack.c.h.b16 %v2400
    %v2774 = vunpack.c.l.b16 %v2401
    %v2775 = vunpack.c.h.b16 %v2401
    %v2776 = vunpack.c.l.b16 %v2402
    %v2777 = vunpack.c.h.b16 %v2402
    %v2778 = vunpack.c.l.b16 %v2403
    %v2779 = vunpack.c.h.b16 %v2403
    %v2780 = vunpack.c.l.b16 %v2404
    %v2781 = vunpack.c.h.b16 %v2404
    %v2782 = vunpack.c.l.b16 %v2405
    %v2783 = vunpack.c.h.b16 %v2405
    %v2784 = vunpack.c.l.b16 %v2406
    %v2785 = vunpack.c.h.b16 %v2406
    %v2786 = vunpack.c.l.b16 %v2407
    %v2787 = vunpack.c.h.b16 %v2407
    %v2788 = vunpack.c.l.b16 %v2408
    %v2789 = vunpack.c.h.b16 %v2408
    %v2790 = vunpack.c.l.b16 %v2409
    %v2791 = vunpack.c.h.b16 %v2409
    %v2792 = vunpack.c.l.b16 %v2410
    %v2793 = vunpack.c.h.b16 %v2410
    %v2794 = vunpack.c.l.b16 %v2411
    %v2795 = vunpack.c.h.b16 %v2411
    %v2796 = vunpack.c.l.b16 %v2412
    %v2797 = vunpack.c.h.b16 %v2412
    %v2798 = vunpack.c.l.b16 %v2413
    %v2799 = vunpack.c.h.b16 %v2413
    %v2800 = vunpack.c.l.b16 %v2414
    %v2801 = vunpack.c.h.b16 %v2414
    %v2802 = vunpack.c.l.b16 %v2415
    %v2803 = vunpack.c.h.b16 %v2415
    %v2804 = vunpack.c.l.b16 %v2416
    %v2805 = vunpack.c.h.b16 %v2416
    %v2806 = vunpack.c.l.b16 %v2417
    %v2807 = vunpack.c.h.b16 %v2417
    %v2808 = vunpack.c.l.b16 %v2418
    %v2809 = vunpack.c.h.b16 %v2418
    %v2810 = vunpack.c.l.b16 %v2419
    %v2811 = vunpack.c.h.b16 %v2419
    %v2812 = vunpack.c.l.b16 %v2420
    %v2813 = vunpack.c.h.b16 %v2420
    %v2814 = vunpack.c.l.b16 %v2421
    %v2815 = vunpack.c.h.b16 %v2421
    %v2816 = vunpack.c.l.b16 %v2422
    %v2817 = vunpack.c.h.b16 %v2422
    %v2818 = vunpack.c.l.b16 %v2423
    %v2819 = vunpack.c.h.b16 %v2423
    %v2820 = vunpack.c.l.b16 %v2424
    %v2821 = vunpack.c.h.b16 %v2424
    %v2822 = vunpack.c.l.b16 %v2425
    %v2823 = vunpack.c.h.b16 %v2425
    %v2824 = vunpack.c.l.b16 %v2426
    %v2825 = vunpack.c.h.b16 %v2426
    %v2826 = vunpack.c.l.b16 %v2427
    %v2827 = vunpack.c.h.b16 %v2427
    %v2828 = vunpack.c.l.b16 %v2428
    %v2829 = vunpack.c.h.b16 %v2428
    %v2830 = vunpack.c.l.b16 %v2429
    %v2831 = vunpack.c.h.b16 %v2429
    %v2832 = vunpack.c.l.b16 %v2430
    %v2833 = vunpack.c.h.b16 %v2430
    %v2834 = vunpack.c.l.b16 %v2431
    %v2835 = vunpack.c.h.b16 %v2431
    %v2836 = vunpack.c.l.b16 %v2432
    %v2837 = vunpack.c.h.b16 %v2432
    %v2838 = vunpack.c.l.b16 %v2433
    %v2839 = vunpack.c.h.b16 %v2433
    %v2840 = vunpack.c.l.b16 %v2434
    %v2841 = vunpack.c.h.b16 %v2434
    %v2842 = vunpack.c.l.b16 %v2435
    %v2843 = vunpack.c.h.b16 %v2435
    %v2844 = vunpack.c.l.b16 %v2436
    %v2845 = vunpack.c.h.b16 %v2436
    %v2846 = vunpack.c.l.b16 %v2437
    %v2847 = vunpack.c.h.b16 %v2437
    %v2848 = vunpack.c.l.b16 %v2438
    %v2849 = vunpack.c.h.b16 %v2438
    %v2850 = vunpack.c.l.b16 %v2439
    %v2851 = vunpack.c.h.b16 %v2439
    %v2852 = vunpack.c.l.b16 %v2440
    %v2853 = vunpack.c.h.b16 %v2440
    %v2854 = vunpack.c.l.b16 %v2441
    %v2855 = vunpack.c.h.b16 %v2441
    %v2856 = vunpack.c.l.b16 %v2442
    %v2857 = vunpack.c.h.b16 %v2442
    %v2858 = vunpack.c.l.b16 %v2443
    %v2859 = vunpack.c.h.b16 %v2443
    %v2860 = vpack.c.b16 %v2608, %v2604
    %v2861 = vpack.c.b16 %v2609, %v2605
    %v2862 = vpack.c.b16 %v2610, %v2606
    %v2863 = vpack.c.b16 %v2611, %v2607
    %v2864 = vpack.c.b16 %v2616, %v2612
    %v2865 = vpack.c.b16 %v2617, %v2613
    %v2866 = vpack.c.b16 %v2618, %v2614
    %v2867 = vpack.c.b16 %v2619, %v2615
    %v2868 = vpack.c.b16 %v2624, %v2620
    %v2869 = vpack.c.b16 %v2625, %v2621
    %v2870 = vpack.c.b16 %v2626, %v2622
    %v2871 = vpack.c.b16 %v2627, %v2623
    %v2872 = vpack.c.b16 %v2632, %v2628
    %v2873 = vpack.c.b16 %v2633, %v2629
    %v2874 = vpack.c.b16 %v2634, %v2630
    %v2875 = vpack.c.b16 %v2635, %v2631
    %v2876 = vpack.c.b16 %v2640, %v2636
    %v2877 = vpack.c.b16 %v2641, %v2637
    %v2878 = vpack.c.b16 %v2642, %v2638
    %v2879 = vpack.c.b16 %v2643, %v2639
    %v2880 = vpack.c.b16 %v2648, %v2644
    %v2881 = vpack.c.b16 %v2649, %v2645
    %v2882 = vpack.c.b16 %v2650, %v2646
    %v2883 = vpack.c.b16 %v2651, %v2647
    %v2884 = vpack.c.b16 %v2656, %v2652
    %v2885 = vpack.c.b16 %v2657, %v2653
    %v2886 = vpack.c.b16 %v2658, %v2654
    %v2887 = vpack.c.b16 %v2659, %v2655
    %v2888 = vpack.c.b16 %v2664, %v2660
    %v2889 = vpack.c.b16 %v2665, %v2661
    %v2890 = vpack.c.b16 %v2666, %v2662
    %v2891 = vpack.c.b16 %v2667, %v2663
    %v2892 = vpack.c.b16 %v2672, %v2668
    %v2893 = vpack.c.b16 %v2673, %v2669
    %v2894 = vpack.c.b16 %v2674, %v2670
    %v2895 = vpack.c.b16 %v2675, %v2671
    %v2896 = vpack.c.b16 %v2680, %v2676
    %v2897 = vpack.c.b16 %v2681, %v2677
    %v2898 = vpack.c.b16 %v2682, %v2678
    %v2899 = vpack.c.b16 %v2683, %v2679
    %v2900 = vpack.c.b16 %v2688, %v2684
    %v2901 = vpack.c.b16 %v2689, %v2685
    %v2902 = vpack.c.b16 %v2690, %v2686
    %v2903 = vpack.c.b16 %v2691, %v2687
    %v2904 = vpack.c.b16 %v2696, %v2692
    %v2905 = vpack.c.b16 %v2697, %v2693
    %v2906 = vpack.c.b16 %v2698, %v2694
    %v2907 = vpack.c.b16 %v2699, %v2695
    %v2908 = vpack.c.b16 %v2704, %v2700
    %v2909 = vpack.c.b16 %v2705, %v2701
    %v2910 = vpack.c.b16 %v2706, %v2702
    %v2911 = vpack.c.b16 %v2707, %v2703
    %v2912 = vpack.c.b16 %v2712, %v2708
    %v2913 = vpack.c.b16 %v2713, %v2709
    %v2914 = vpack.c.b16 %v2714, %v2710
    %v2915 = vpack.c.b16 %v2715, %v2711
    %v2916 = vpack.c.b16 %v2720, %v2716
    %v2917 = vpack.c.b16 %v2721, %v2717
    %v2918 = vpack.c.b16 %v2722, %v2718
    %v2919 = vpack.c.b16 %v2723, %v2719
    %v2920 = vpack.c.b16 %v2728, %v2724
    %v2921 = vpack.c.b16 %v2729, %v2725
    %v2922 = vpack.c.b16 %v2730, %v2726
    %v2923 = vpack.c.b16 %v2731, %v2727
    %v2924 = vpack.c.b16 %v2736, %v2732
    %v2925 = vpack.c.b16 %v2737, %v2733
    %v2926 = vpack.c.b16 %v2738, %v2734
    %v2927 = vpack.c.b16 %v2739, %v2735
    %v2928 = vpack.c.b16 %v2744, %v2740
    %v2929 = vpack.c.b16 %v2745, %v2741
    %v2930 = vpack.c.b16 %v2746, %v2742
    %v2931 = vpack.c.b16 %v2747, %v2743
    %v2932 = vpack.c.b16 %v2752, %v2748
    %v2933 = vpack.c.b16 %v2753, %v2749
    %v2934 = vpack.c.b16 %v2754, %v2750
    %v2935 = vpack.c.b16 %v2755, %v2751
    %v2936 = vpack.c.b16 %v2760, %v2756
    %v2937 = vpack.c.b16 %v2761, %v2757
    %v2938 = vpack.c.b16 %v2762, %v2758
    %v2939 = vpack.c.b16 %v2763, %v2759
    %v2940 = vpack.c.b16 %v2768, %v2764
    %v2941 = vpack.c.b16 %v2769, %v2765
    %v2942 = vpack.c.b16 %v2770, %v2766
    %v2943 = vpack.c.b16 %v2771, %v2767
    %v2944 = vpack.c.b16 %v2776, %v2772
    %v2945 = vpack.c.b16 %v2777, %v2773
    %v2946 = vpack.c.b16 %v2778, %v2774
    %v2947 = vpack.c.b16 %v2779, %v2775
    %v2948 = vpack.c.b16 %v2784, %v2780
    %v2949 = vpack.c.b16 %v2785, %v2781
    %v2950 = vpack.c.b16 %v2786, %v2782
    %v2951 = vpack.c.b16 %v2787, %v2783
    %v2952 = vpack.c.b16 %v2792, %v2788
    %v2953 = vpack.c.b16 %v2793, %v2789
    %v2954 = vpack.c.b16 %v2794, %v2790
    %v2955 = vpack.c.b16 %v2795, %v2791
    %v2956 = vpack.c.b16 %v2800, %v2796
    %v2957 = vpack.c.b16 %v2801, %v2797
    %v2958 = vpack.c.b16 %v2802, %v2798
    %v2959 = vpack.c.b16 %v2803, %v2799
    %v2960 = vpack.c.b16 %v2808, %v2804
    %v2961 = vpack.c.b16 %v2809, %v2805
    %v2962 = vpack.c.b16 %v2810, %v2806
    %v2963 = vpack.c.b16 %v2811, %v2807
    %v2964 = vpack.c.b16 %v2816, %v2812
    %v2965 = vpack.c.b16 %v2817, %v2813
    %v2966 = vpack.c.b16 %v2818, %v2814
    %v2967 = vpack.c.b16 %v2819, %v2815
    %v2968 = vpack.c.b16 %v2824, %v2820
    %v2969 = vpack.c.b16 %v2825, %v2821
    %v2970 = vpack.c.b16 %v2826, %v2822
    %v2971 = vpack.c.b16 %v2827, %v2823
    %v2972 = vpack.c.b16 %v2832, %v2828
    %v2973 = vpack.c.b16 %v2833, %v2829
    %v2974 = vpack.c.b16 %v2834, %v2830
    %v2975 = vpack.c.b16 %v2835, %v2831
    %v2976 = vpack.c.b16 %v2840, %v2836
    %v2977 = vpack.c.b16 %v2841, %v2837
    %v2978 = vpack.c.b16 %v2842, %v2838
    %v2979 = vpack.c.b16 %v2843, %v2839
    %v2980 = vpack.c.b16 %v2848, %v2844
    %v2981 = vpack.c.b16 %v2849, %v2845
    %v2982 = vpack.c.b16 %v2850, %v2846
    %v2983 = vpack.c.b16 %v2851, %v2847
    %v2984 = vpack.c.b16 %v2856, %v2852
    %v2985 = vpack.c.b16 %v2857, %v2853
    %v2986 = vpack.c.b16 %v2858, %v2854
    %v2987 = vpack.c.b16 %v2859, %v2855
    %3116 = vmatprep.subr.bf16.mxu0 %v2861
    %3117 = vmatpush1.bf16.msra.mxu0 %v2860
    %3118 = vmatprep.subr.bf16.mxu0 %v2865
    %3119 = vmatpush1.bf16.msra.mxu0 %v2864
    %3120 = vmatprep.subr.bf16.mxu0 %v2869
    %3121 = vmatpush1.bf16.msra.mxu0 %v2868
    %3122 = vmatprep.subr.bf16.mxu0 %v2873
    %3123 = vmatpush1.bf16.msra.mxu0 %v2872
    %3124 = vmatprep.subr.bf16.mxu0 %v2877
    %3125 = vmatpush1.bf16.msra.mxu0 %v2876
    %3126 = vmatprep.subr.bf16.mxu0 %v2881
    %3127 = vmatpush1.bf16.msra.mxu0 %v2880
    %3128 = vmatprep.subr.bf16.mxu0 %v2885
    %3129 = vmatpush1.bf16.msra.mxu0 %v2884
    %3130 = vmatprep.subr.bf16.mxu0 %v2889
    %3131 = vmatpush1.bf16.msra.mxu0 %v2888
    %3132 = vmatprep.subr.bf16.mxu0 %v2893
    %3133 = vmatpush1.bf16.msra.mxu0 %v2892
    %3134 = vmatprep.subr.bf16.mxu0 %v2897
    %3135 = vmatpush1.bf16.msra.mxu0 %v2896
    %3136 = vmatprep.subr.bf16.mxu0 %v2901
    %3137 = vmatpush1.bf16.msra.mxu0 %v2900
    %3138 = vmatprep.subr.bf16.mxu0 %v2905
    %3139 = vmatpush1.bf16.msra.mxu0 %v2904
    %3140 = vmatprep.subr.bf16.mxu0 %v2909
    %3141 = vmatpush1.bf16.msra.mxu0 %v2908
    %3142 = vmatprep.subr.bf16.mxu0 %v2913
    %3143 = vmatpush1.bf16.msra.mxu0 %v2912
    %3144 = vmatprep.subr.bf16.mxu0 %v2917
    %3145 = vmatpush1.bf16.msra.mxu0 %v2916
    %3146 = vmatprep.subr.bf16.mxu0 %v2921
    %3147 = vmatpush1.bf16.msra.mxu0 %v2920
    %3148 = vmatprep.mubr.bf16.mxu0 %v2461
    %3149 = vmatmul.mubr.bf16.gmra.mrb[0].mxu0 %v2460
    %v3150 = vpop.f32.mrb[0].mxu0
    %v3151 = vadd.f32 0.0, %v3150
    %v3152 = vpop.f32.mrb[0].mxu0
    %v3153 = vadd.f32 0.0, %v3152
    %v3154 = vpop.f32.mrb[0].mxu0
    %v3155 = vadd.f32 0.0, %v3154
    %v3156 = vpop.f32.mrb[0].mxu0
    %v3157 = vadd.f32 0.0, %v3156
    %3158 = vmatprep.mubr.bf16.mxu0 %v2465
    %3159 = vmatmul.mubr.bf16.gmra.mrb[0].mxu0 %v2464
    %v3160 = vpop.f32.mrb[0].mxu0
    %v3161 = vadd.f32 0.0, %v3160
    %v3162 = vpop.f32.mrb[0].mxu0
    %v3163 = vadd.f32 0.0, %v3162
    %v3164 = vpop.f32.mrb[0].mxu0
    %v3165 = vadd.f32 0.0, %v3164
    %v3166 = vpop.f32.mrb[0].mxu0
    %v3167 = vadd.f32 0.0, %v3166
    %3168 = vdwg.mxu0
    %3169 = vmatprep.subr.bf16.mxu0 %v2925
    %3170 = vmatpush1.bf16.msra.mxu0 %v2924
    %3171 = vmatprep.subr.bf16.mxu0 %v2929
    %3172 = vmatpush1.bf16.msra.mxu0 %v2928
    %3173 = vmatprep.subr.bf16.mxu0 %v2933
    %3174 = vmatpush1.bf16.msra.mxu0 %v2932
    %3175 = vmatprep.subr.bf16.mxu0 %v2937
    %3176 = vmatpush1.bf16.msra.mxu0 %v2936
    %3177 = vmatprep.subr.bf16.mxu0 %v2941
    %3178 = vmatpush1.bf16.msra.mxu0 %v2940
    %3179 = vmatprep.subr.bf16.mxu0 %v2945
    %3180 = vmatpush1.bf16.msra.mxu0 %v2944
    %3181 = vmatprep.subr.bf16.mxu0 %v2949
    %3182 = vmatpush1.bf16.msra.mxu0 %v2948
    %3183 = vmatprep.subr.bf16.mxu0 %v2953
    %3184 = vmatpush1.bf16.msra.mxu0 %v2952
    %3185 = vmatprep.subr.bf16.mxu0 %v2957
    %3186 = vmatpush1.bf16.msra.mxu0 %v2956
    %3187 = vmatprep.subr.bf16.mxu0 %v2961
    %3188 = vmatpush1.bf16.msra.mxu0 %v2960
    %3189 = vmatprep.subr.bf16.mxu0 %v2965
    %3190 = vmatpush1.bf16.msra.mxu0 %v2964
    %3191 = vmatprep.subr.bf16.mxu0 %v2969
    %3192 = vmatpush1.bf16.msra.mxu0 %v2968
    %3193 = vmatprep.subr.bf16.mxu0 %v2973
    %3194 = vmatpush1.bf16.msra.mxu0 %v2972
    %3195 = vmatprep.subr.bf16.mxu0 %v2977
    %3196 = vmatpush1.bf16.msra.mxu0 %v2976
    %3197 = vmatprep.subr.bf16.mxu0 %v2981
    %3198 = vmatpush1.bf16.msra.mxu0 %v2980
    %3199 = vmatprep.subr.bf16.mxu0 %v2985
    %3200 = vmatpush1.bf16.msra.mxu0 %v2984
    %3201 = vmatprep.mubr.bf16.mxu0 %v2463
    %3202 = vmatmul.mubr.bf16.gmra.mrb[0].mxu0 %v2462
    %v3203 = vpop.f32.mrb[0].mxu0
    %v3204 = vadd.f32 %v3151, %v3203
    %v3205 = vpop.f32.mrb[0].mxu0
    %v3206 = vadd.f32 %v3153, %v3205
    %v3207 = vpop.f32.mrb[0].mxu0
    %v3208 = vadd.f32 %v3155, %v3207
    %v3209 = vpop.f32.mrb[0].mxu0
    %v3210 = vadd.f32 %v3157, %v3209
    %3211 = vmatprep.mubr.bf16.mxu0 %v2467
    %3212 = vmatmul.mubr.bf16.gmra.mrb[0].mxu0 %v2466
    %v3213 = vpop.f32.mrb[0].mxu0
    %v3214 = vadd.f32 %v3161, %v3213
    %v3215 = vpop.f32.mrb[0].mxu0
    %v3216 = vadd.f32 %v3163, %v3215
    %v3217 = vpop.f32.mrb[0].mxu0
    %v3218 = vadd.f32 %v3165, %v3217
    %v3219 = vpop.f32.mrb[0].mxu0
    %v3220 = vadd.f32 %v3167, %v3219
    %3221 = vdwg.mxu0
    %3222 = vmatprep.subr.bf16.mxu0 %v2863
    %3223 = vmatpush1.bf16.msra.mxu0 %v2862
    %3224 = vmatprep.subr.bf16.mxu0 %v2867
    %3225 = vmatpush1.bf16.msra.mxu0 %v2866
    %3226 = vmatprep.subr.bf16.mxu0 %v2871
    %3227 = vmatpush1.bf16.msra.mxu0 %v2870
    %3228 = vmatprep.subr.bf16.mxu0 %v2875
    %3229 = vmatpush1.bf16.msra.mxu0 %v2874
    %3230 = vmatprep.subr.bf16.mxu0 %v2879
    %3231 = vmatpush1.bf16.msra.mxu0 %v2878
    %3232 = vmatprep.subr.bf16.mxu0 %v2883
    %3233 = vmatpush1.bf16.msra.mxu0 %v2882
    %3234 = vmatprep.subr.bf16.mxu0 %v2887
    %3235 = vmatpush1.bf16.msra.mxu0 %v2886
    %3236 = vmatprep.subr.bf16.mxu0 %v2891
    %3237 = vmatpush1.bf16.msra.mxu0 %v2890
    %3238 = vmatprep.subr.bf16.mxu0 %v2895
    %3239 = vmatpush1.bf16.msra.mxu0 %v2894
    %3240 = vmatprep.subr.bf16.mxu0 %v2899
    %3241 = vmatpush1.bf16.msra.mxu0 %v2898
    %3242 = vmatprep.subr.bf16.mxu0 %v2903
    %3243 = vmatpush1.bf16.msra.mxu0 %v2902
    %3244 = vmatprep.subr.bf16.mxu0 %v2907
    %3245 = vmatpush1.bf16.msra.mxu0 %v2906
    %3246 = vmatprep.subr.bf16.mxu0 %v2911
    %3247 = vmatpush1.bf16.msra.mxu0 %v2910
    %3248 = vmatprep.subr.bf16.mxu0 %v2915
    %3249 = vmatpush1.bf16.msra.mxu0 %v2914
    %3250 = vmatprep.subr.bf16.mxu0 %v2919
    %3251 = vmatpush1.bf16.msra.mxu0 %v2918
    %3252 = vmatprep.subr.bf16.mxu0 %v2923
    %3253 = vmatpush1.bf16.msra.mxu0 %v2922
    %3254 = vmatprep.mubr.bf16.mxu0 %v2461
    %3255 = vmatmul.mubr.bf16.gmra.mrb[0].mxu0 %v2460
    %v3256 = vpop.f32.mrb[0].mxu0
    %v3257 = vadd.f32 0.0, %v3256
    %v3258 = vpop.f32.mrb[0].mxu0
    %v3259 = vadd.f32 0.0, %v3258
    %v3260 = vpop.f32.mrb[0].mxu0
    %v3261 = vadd.f32 0.0, %v3260
    %v3262 = vpop.f32.mrb[0].mxu0
    %v3263 = vadd.f32 0.0, %v3262
    %3264 = vmatprep.mubr.bf16.mxu0 %v2465
    %3265 = vmatmul.mubr.bf16.gmra.mrb[0].mxu0 %v2464
    %v3266 = vpop.f32.mrb[0].mxu0
    %v3267 = vadd.f32 0.0, %v3266
    %v3268 = vpop.f32.mrb[0].mxu0
    %v3269 = vadd.f32 0.0, %v3268
    %v3270 = vpop.f32.mrb[0].mxu0
    %v3271 = vadd.f32 0.0, %v3270
    %v3272 = vpop.f32.mrb[0].mxu0
    %v3273 = vadd.f32 0.0, %v3272
    %3274 = vdwg.mxu0
    %3275 = vmatprep.subr.bf16.mxu0 %v2927
    %3276 = vmatpush1.bf16.msra.mxu0 %v2926
    %3277 = vmatprep.subr.bf16.mxu0 %v2931
    %3278 = vmatpush1.bf16.msra.mxu0 %v2930
    %3279 = vmatprep.subr.bf16.mxu0 %v2935
    %3280 = vmatpush1.bf16.msra.mxu0 %v2934
    %3281 = vmatprep.subr.bf16.mxu0 %v2939
    %3282 = vmatpush1.bf16.msra.mxu0 %v2938
    %3283 = vmatprep.subr.bf16.mxu0 %v2943
    %3284 = vmatpush1.bf16.msra.mxu0 %v2942
    %3285 = vmatprep.subr.bf16.mxu0 %v2947
    %3286 = vmatpush1.bf16.msra.mxu0 %v2946
    %3287 = vmatprep.subr.bf16.mxu0 %v2951
    %3288 = vmatpush1.bf16.msra.mxu0 %v2950
    %3289 = vmatprep.subr.bf16.mxu0 %v2955
    %3290 = vmatpush1.bf16.msra.mxu0 %v2954
    %3291 = vmatprep.subr.bf16.mxu0 %v2959
    %3292 = vmatpush1.bf16.msra.mxu0 %v2958
    %3293 = vmatprep.subr.bf16.mxu0 %v2963
    %3294 = vmatpush1.bf16.msra.mxu0 %v2962
    %3295 = vmatprep.subr.bf16.mxu0 %v2967
    %3296 = vmatpush1.bf16.msra.mxu0 %v2966
    %3297 = vmatprep.subr.bf16.mxu0 %v2971
    %3298 = vmatpush1.bf16.msra.mxu0 %v2970
    %3299 = vmatprep.subr.bf16.mxu0 %v2975
    %3300 = vmatpush1.bf16.msra.mxu0 %v2974
    %3301 = vmatprep.subr.bf16.mxu0 %v2979
    %3302 = vmatpush1.bf16.msra.mxu0 %v2978
    %3303 = vmatprep.subr.bf16.mxu0 %v2983
    %3304 = vmatpush1.bf16.msra.mxu0 %v2982
    %3305 = vmatprep.subr.bf16.mxu0 %v2987
    %3306 = vmatpush1.bf16.msra.mxu0 %v2986
    %3307 = vmatprep.mubr.bf16.mxu0 %v2463
    %3308 = vmatmul.mubr.bf16.gmra.mrb[0].mxu0 %v2462
    %v3309 = vpop.f32.mrb[0].mxu0
    %v3310 = vadd.f32 %v3257, %v3309
    %v3311 = vpop.f32.mrb[0].mxu0
    %v3312 = vadd.f32 %v3259, %v3311
    %v3313 = vpop.f32.mrb[0].mxu0
    %v3314 = vadd.f32 %v3261, %v3313
    %v3315 = vpop.f32.mrb[0].mxu0
    %v3316 = vadd.f32 %v3263, %v3315
    %3317 = vmatprep.mubr.bf16.mxu0 %v2467
    %3318 = vmatmul.mubr.bf16.gmra.mrb[0].mxu0 %v2466
    %v3319 = vpop.f32.mrb[0].mxu0
    %v3320 = vadd.f32 %v3267, %v3319
    %v3321 = vpop.f32.mrb[0].mxu0
    %v3322 = vadd.f32 %v3269, %v3321
    %v3323 = vpop.f32.mrb[0].mxu0
    %v3324 = vadd.f32 %v3271, %v3323
    %v3325 = vpop.f32.mrb[0].mxu0
    %v3326 = vadd.f32 %v3273, %v3325
    %3327 = vdwg.mxu0
    %v3328 = vadd.f32 %v2148, %v3204
    %v3329 = vadd.f32 %v2150, %v3206
    %v3330 = vadd.f32 %v2254, %v3310
    %v3331 = vadd.f32 %v2256, %v3312
    %v3332 = vadd.f32 %v2152, %v3208
    %v3333 = vadd.f32 %v2154, %v3210
    %v3334 = vadd.f32 %v2258, %v3314
    %v3335 = vadd.f32 %v2260, %v3316
    %v3336 = vadd.f32 %v2158, %v3214
    %v3337 = vadd.f32 %v2160, %v3216
    %v3338 = vadd.f32 %v2264, %v3320
    %v3339 = vadd.f32 %v2266, %v3322
    %v3340 = vadd.f32 %v2162, %v3218
    %v3341 = vadd.f32 %v2164, %v3220
    %v3342 = vadd.f32 %v2268, %v3324
    %v3343 = vadd.f32 %v2270, %v3326
    %v3344 = vld [vmem:[%s3] sm:$0xff]
    %v3345 = vld [vmem:[%s3 + $0x8] sm:$0xff]
    %v3346 = vld [vmem:[%s3 + $0x10] sm:$0xff]
    %v3347 = vld [vmem:[%s3 + $0x18] sm:$0xff]
    %v3348 = vld [vmem:[%s3 + $0x20] sm:$0xff]
    %v3349 = vld [vmem:[%s3 + $0x28] sm:$0xff]
    %v3350 = vld [vmem:[%s3 + $0x30] sm:$0xff]
    %v3351 = vld [vmem:[%s3 + $0x38] sm:$0xff]
    %v3352 = vld [vmem:[%s3 + $0x40] sm:$0xff]
    %v3353 = vld [vmem:[%s3 + $0x48] sm:$0xff]
    %v3354 = vld [vmem:[%s3 + $0x50] sm:$0xff]
    %v3355 = vld [vmem:[%s3 + $0x58] sm:$0xff]
    %v3356 = vld [vmem:[%s3 + $0x60] sm:$0xff]
    %v3357 = vld [vmem:[%s3 + $0x68] sm:$0xff]
    %v3358 = vld [vmem:[%s3 + $0x70] sm:$0xff]
    %v3359 = vld [vmem:[%s3 + $0x78] sm:$0xff]
    %v3360 = vld [vmem:[%s3 + $0x80] sm:$0xff]
    %v3361 = vld [vmem:[%s3 + $0x88] sm:$0xff]
    %v3362 = vld [vmem:[%s3 + $0x90] sm:$0xff]
    %v3363 = vld [vmem:[%s3 + $0x98] sm:$0xff]
    %v3364 = vld [vmem:[%s3 + $0xa0] sm:$0xff]
    %v3365 = vld [vmem:[%s3 + $0xa8] sm:$0xff]
    %v3366 = vld [vmem:[%s3 + $0xb0] sm:$0xff]
    %v3367 = vld [vmem:[%s3 + $0xb8] sm:$0xff]
    %v3368 = vld [vmem:[%s3 + $0xc0] sm:$0xff]
    %v3369 = vld [vmem:[%s3 + $0xc8] sm:$0xff]
    %v3370 = vld [vmem:[%s3 + $0xd0] sm:$0xff]
    %v3371 = vld [vmem:[%s3 + $0xd8] sm:$0xff]
    %v3372 = vld [vmem:[%s3 + $0xe0] sm:$0xff]
    %v3373 = vld [vmem:[%s3 + $0xe8] sm:$0xff]
    %v3374 = vld [vmem:[%s3 + $0xf0] sm:$0xff]
    %v3375 = vld [vmem:[%s3 + $0xf8] sm:$0xff]
    %v3376 = vld [vmem:[%s3 + $0x100] sm:$0xff]
    %v3377 = vld [vmem:[%s3 + $0x108] sm:$0xff]
    %v3378 = vld [vmem:[%s3 + $0x110] sm:$0xff]
    %v3379 = vld [vmem:[%s3 + $0x118] sm:$0xff]
    %v3380 = vld [vmem:[%s3 + $0x120] sm:$0xff]
    %v3381 = vld [vmem:[%s3 + $0x128] sm:$0xff]
    %v3382 = vld [vmem:[%s3 + $0x130] sm:$0xff]
    %v3383 = vld [vmem:[%s3 + $0x138] sm:$0xff]
    %v3384 = vld [vmem:[%s3 + $0x140] sm:$0xff]
    %v3385 = vld [vmem:[%s3 + $0x148] sm:$0xff]
    %v3386 = vld [vmem:[%s3 + $0x150] sm:$0xff]
    %v3387 = vld [vmem:[%s3 + $0x158] sm:$0xff]
    %v3388 = vld [vmem:[%s3 + $0x160] sm:$0xff]
    %v3389 = vld [vmem:[%s3 + $0x168] sm:$0xff]
    %v3390 = vld [vmem:[%s3 + $0x170] sm:$0xff]
    %v3391 = vld [vmem:[%s3 + $0x178] sm:$0xff]
    %v3392 = vld [vmem:[%s3 + $0x180] sm:$0xff]
    %v3393 = vld [vmem:[%s3 + $0x188] sm:$0xff]
    %v3394 = vld [vmem:[%s3 + $0x190] sm:$0xff]
    %v3395 = vld [vmem:[%s3 + $0x198] sm:$0xff]
    %v3396 = vld [vmem:[%s3 + $0x1a0] sm:$0xff]
    %v3397 = vld [vmem:[%s3 + $0x1a8] sm:$0xff]
    %v3398 = vld [vmem:[%s3 + $0x1b0] sm:$0xff]
    %v3399 = vld [vmem:[%s3 + $0x1b8] sm:$0xff]
    %v3400 = vld [vmem:[%s3 + $0x1c0] sm:$0xff]
    %v3401 = vld [vmem:[%s3 + $0x1c8] sm:$0xff]
    %v3402 = vld [vmem:[%s3 + $0x1d0] sm:$0xff]
    %v3403 = vld [vmem:[%s3 + $0x1d8] sm:$0xff]
    %v3404 = vld [vmem:[%s3 + $0x1e0] sm:$0xff]
    %v3405 = vld [vmem:[%s3 + $0x1e8] sm:$0xff]
    %v3406 = vld [vmem:[%s3 + $0x1f0] sm:$0xff]
    %v3407 = vld [vmem:[%s3 + $0x1f8] sm:$0xff]
    %v3408 = vadd.f32 %v3328, %v3332
    %v3409 = vadd.f32 %v3408, %v3336
    %v3410 = vadd.f32 %v3409, %v3340
    %v3411 = vrot.slane %v3410, 4
    %v3412 = vadd.f32 %v3410, %v3411
    %v3413 = vrot.slane %v3412, 2
    %v3414 = vadd.f32 %v3412, %v3413
    %v3415 = vrot.slane %v3414, 1
    %v3416 = vadd.f32 %v3414, %v3415
    %v3417 = vadd.f32 %v3329, %v3333
    %v3418 = vadd.f32 %v3417, %v3337
    %v3419 = vadd.f32 %v3418, %v3341
    %v3420 = vrot.slane %v3419, 4
    %v3421 = vadd.f32 %v3419, %v3420
    %v3422 = vrot.slane %v3421, 2
    %v3423 = vadd.f32 %v3421, %v3422
    %v3424 = vrot.slane %v3423, 1
    %v3425 = vadd.f32 %v3423, %v3424
    %v3426 = vadd.f32 %v3330, %v3334
    %v3427 = vadd.f32 %v3426, %v3338
    %v3428 = vadd.f32 %v3427, %v3342
    %v3429 = vrot.slane %v3428, 4
    %v3430 = vadd.f32 %v3428, %v3429
    %v3431 = vrot.slane %v3430, 2
    %v3432 = vadd.f32 %v3430, %v3431
    %v3433 = vrot.slane %v3432, 1
    %v3434 = vadd.f32 %v3432, %v3433
    %v3435 = vadd.f32 %v3331, %v3335
    %v3436 = vadd.f32 %v3435, %v3339
    %v3437 = vadd.f32 %v3436, %v3343
    %v3438 = vrot.slane %v3437, 4
    %v3439 = vadd.f32 %v3437, %v3438
    %v3440 = vrot.slane %v3439, 2
    %v3441 = vadd.f32 %v3439, %v3440
    %v3442 = vrot.slane %v3441, 1
    %v3443 = vadd.f32 %v3441, %v3442
    %v3444 = vmul.f32 %v3328, %v3328
    %v3445 = vmul.f32 %v3329, %v3329
    %v3446 = vmul.f32 %v3330, %v3330
    %v3447 = vmul.f32 %v3331, %v3331
    %v3448 = vmul.f32 %v3332, %v3332
    %v3449 = vmul.f32 %v3333, %v3333
    %v3450 = vmul.f32 %v3334, %v3334
    %v3451 = vmul.f32 %v3335, %v3335
    %v3452 = vmul.f32 %v3336, %v3336
    %v3453 = vmul.f32 %v3337, %v3337
    %v3454 = vmul.f32 %v3338, %v3338
    %v3455 = vmul.f32 %v3339, %v3339
    %v3456 = vmul.f32 %v3340, %v3340
    %v3457 = vmul.f32 %v3341, %v3341
    %v3458 = vmul.f32 %v3342, %v3342
    %v3459 = vmul.f32 %v3343, %v3343
    %v3460 = vadd.f32 %v3444, %v3448
    %v3461 = vadd.f32 %v3460, %v3452
    %v3462 = vadd.f32 %v3461, %v3456
    %v3463 = vrot.slane %v3462, 4
    %v3464 = vadd.f32 %v3462, %v3463
    %v3465 = vrot.slane %v3464, 2
    %v3466 = vadd.f32 %v3464, %v3465
    %v3467 = vrot.slane %v3466, 1
    %v3468 = vadd.f32 %v3466, %v3467
    %v3469 = vadd.f32 %v3445, %v3449
    %v3470 = vadd.f32 %v3469, %v3453
    %v3471 = vadd.f32 %v3470, %v3457
    %v3472 = vrot.slane %v3471, 4
    %v3473 = vadd.f32 %v3471, %v3472
    %v3474 = vrot.slane %v3473, 2
    %v3475 = vadd.f32 %v3473, %v3474
    %v3476 = vrot.slane %v3475, 1
    %v3477 = vadd.f32 %v3475, %v3476
    %v3478 = vadd.f32 %v3446, %v3450
    %v3479 = vadd.f32 %v3478, %v3454
    %v3480 = vadd.f32 %v3479, %v3458
    %v3481 = vrot.slane %v3480, 4
    %v3482 = vadd.f32 %v3480, %v3481
    %v3483 = vrot.slane %v3482, 2
    %v3484 = vadd.f32 %v3482, %v3483
    %v3485 = vrot.slane %v3484, 1
    %v3486 = vadd.f32 %v3484, %v3485
    %v3487 = vadd.f32 %v3447, %v3451
    %v3488 = vadd.f32 %v3487, %v3455
    %v3489 = vadd.f32 %v3488, %v3459
    %v3490 = vrot.slane %v3489, 4
    %v3491 = vadd.f32 %v3489, %v3490
    %v3492 = vrot.slane %v3491, 2
    %v3493 = vadd.f32 %v3491, %v3492
    %v3494 = vrot.slane %v3493, 1
    %v3495 = vadd.f32 %v3493, %v3494
    %vm3496 = vcmask 1040384
    %v3497 = vsel %vm3496, %v3416, %v3468
    %v3498 = vsel %vm3496, %v3425, %v3477
    %v3499 = vsel %vm3496, %v3434, %v3486
    %v3500 = vsel %vm3496, %v3443, %v3495
    %3501 = vmatprep.subr.mxu0 0.0
    %3502 = vmatpush1.msra.mxu0 %v3344
    %3503 = vmatprep.subr.mxu0 0.0
    %3504 = vmatpush1.msra.mxu0 %v3345
    %3505 = vmatprep.subr.mxu0 0.0
    %3506 = vmatpush1.msra.mxu0 %v3346
    %3507 = vmatprep.subr.mxu0 0.0
    %3508 = vmatpush1.msra.mxu0 %v3347
    %3509 = vmatprep.subr.mxu0 0.0
    %3510 = vmatpush1.msra.mxu0 %v3348
    %3511 = vmatprep.subr.mxu0 0.0
    %3512 = vmatpush1.msra.mxu0 %v3349
    %3513 = vmatprep.subr.mxu0 0.0
    %3514 = vmatpush1.msra.mxu0 %v3350
    %3515 = vmatprep.subr.mxu0 0.0
    %3516 = vmatpush1.msra.mxu0 %v3351
    %3517 = vmatprep.subr.mxu0 0.0
    %3518 = vmatpush1.msra.mxu0 %v3352
    %3519 = vmatprep.subr.mxu0 0.0
    %3520 = vmatpush1.msra.mxu0 %v3353
    %3521 = vmatprep.subr.mxu0 0.0
    %3522 = vmatpush1.msra.mxu0 %v3354
    %3523 = vmatprep.subr.mxu0 0.0
    %3524 = vmatpush1.msra.mxu0 %v3355
    %3525 = vmatprep.subr.mxu0 0.0
    %3526 = vmatpush1.msra.mxu0 %v3356
    %3527 = vmatprep.subr.mxu0 0.0
    %3528 = vmatpush1.msra.mxu0 %v3357
    %3529 = vmatprep.subr.mxu0 0.0
    %3530 = vmatpush1.msra.mxu0 %v3358
    %3531 = vmatprep.subr.mxu0 0.0
    %3532 = vmatpush1.msra.mxu0 %v3359
    %3533 = vmatprep.subr.mxu0 0.0
    %3534 = vmatpush1.msra.mxu0 %v3360
    %3535 = vmatprep.subr.mxu0 0.0
    %3536 = vmatpush1.msra.mxu0 %v3361
    %3537 = vmatprep.subr.mxu0 0.0
    %3538 = vmatpush1.msra.mxu0 %v3362
    %3539 = vmatprep.subr.mxu0 0.0
    %3540 = vmatpush1.msra.mxu0 %v3363
    %3541 = vmatprep.subr.mxu0 0.0
    %3542 = vmatpush1.msra.mxu0 %v3364
    %3543 = vmatprep.subr.mxu0 0.0
    %3544 = vmatpush1.msra.mxu0 %v3365
    %3545 = vmatprep.subr.mxu0 0.0
    %3546 = vmatpush1.msra.mxu0 %v3366
    %3547 = vmatprep.subr.mxu0 0.0
    %3548 = vmatpush1.msra.mxu0 %v3367
    %3549 = vmatprep.subr.mxu0 0.0
    %3550 = vmatpush1.msra.mxu0 %v3368
    %3551 = vmatprep.subr.mxu0 0.0
    %3552 = vmatpush1.msra.mxu0 %v3369
    %3553 = vmatprep.subr.mxu0 0.0
    %3554 = vmatpush1.msra.mxu0 %v3370
    %3555 = vmatprep.subr.mxu0 0.0
    %3556 = vmatpush1.msra.mxu0 %v3371
    %3557 = vmatprep.subr.mxu0 0.0
    %3558 = vmatpush1.msra.mxu0 %v3372
    %3559 = vmatprep.subr.mxu0 0.0
    %3560 = vmatpush1.msra.mxu0 %v3373
    %3561 = vmatprep.subr.mxu0 0.0
    %3562 = vmatpush1.msra.mxu0 %v3374
    %3563 = vmatprep.subr.mxu0 0.0
    %3564 = vmatpush1.msra.mxu0 %v3375
    %3565 = vmatprep.mubr.f32.mxu0 %v3498
    %3566 = vmatmul.mubr.f32.gmra.mrb[0].mxu0 %v3497
    %v3567 = vpop.f32.mrb[0].mxu0
    %v3568 = vadd.f32 0.0, %v3567
    %v3569 = vpop.f32.mrb[0].mxu0
    %3570 = vdwg.mxu0
    %3571 = vmatprep.subr.mxu0 0.0
    %3572 = vmatpush1.msra.mxu0 %v3376
    %3573 = vmatprep.subr.mxu0 0.0
    %3574 = vmatpush1.msra.mxu0 %v3377
    %3575 = vmatprep.subr.mxu0 0.0
    %3576 = vmatpush1.msra.mxu0 %v3378
    %3577 = vmatprep.subr.mxu0 0.0
    %3578 = vmatpush1.msra.mxu0 %v3379
    %3579 = vmatprep.subr.mxu0 0.0
    %3580 = vmatpush1.msra.mxu0 %v3380
    %3581 = vmatprep.subr.mxu0 0.0
    %3582 = vmatpush1.msra.mxu0 %v3381
    %3583 = vmatprep.subr.mxu0 0.0
    %3584 = vmatpush1.msra.mxu0 %v3382
    %3585 = vmatprep.subr.mxu0 0.0
    %3586 = vmatpush1.msra.mxu0 %v3383
    %3587 = vmatprep.subr.mxu0 0.0
    %3588 = vmatpush1.msra.mxu0 %v3384
    %3589 = vmatprep.subr.mxu0 0.0
    %3590 = vmatpush1.msra.mxu0 %v3385
    %3591 = vmatprep.subr.mxu0 0.0
    %3592 = vmatpush1.msra.mxu0 %v3386
    %3593 = vmatprep.subr.mxu0 0.0
    %3594 = vmatpush1.msra.mxu0 %v3387
    %3595 = vmatprep.subr.mxu0 0.0
    %3596 = vmatpush1.msra.mxu0 %v3388
    %3597 = vmatprep.subr.mxu0 0.0
    %3598 = vmatpush1.msra.mxu0 %v3389
    %3599 = vmatprep.subr.mxu0 0.0
    %3600 = vmatpush1.msra.mxu0 %v3390
    %3601 = vmatprep.subr.mxu0 0.0
    %3602 = vmatpush1.msra.mxu0 %v3391
    %3603 = vmatprep.subr.mxu0 0.0
    %3604 = vmatpush1.msra.mxu0 %v3392
    %3605 = vmatprep.subr.mxu0 0.0
    %3606 = vmatpush1.msra.mxu0 %v3393
    %3607 = vmatprep.subr.mxu0 0.0
    %3608 = vmatpush1.msra.mxu0 %v3394
    %3609 = vmatprep.subr.mxu0 0.0
    %3610 = vmatpush1.msra.mxu0 %v3395
    %3611 = vmatprep.subr.mxu0 0.0
    %3612 = vmatpush1.msra.mxu0 %v3396
    %3613 = vmatprep.subr.mxu0 0.0
    %3614 = vmatpush1.msra.mxu0 %v3397
    %3615 = vmatprep.subr.mxu0 0.0
    %3616 = vmatpush1.msra.mxu0 %v3398
    %3617 = vmatprep.subr.mxu0 0.0
    %3618 = vmatpush1.msra.mxu0 %v3399
    %3619 = vmatprep.subr.mxu0 0.0
    %3620 = vmatpush1.msra.mxu0 %v3400
    %3621 = vmatprep.subr.mxu0 0.0
    %3622 = vmatpush1.msra.mxu0 %v3401
    %3623 = vmatprep.subr.mxu0 0.0
    %3624 = vmatpush1.msra.mxu0 %v3402
    %3625 = vmatprep.subr.mxu0 0.0
    %3626 = vmatpush1.msra.mxu0 %v3403
    %3627 = vmatprep.subr.mxu0 0.0
    %3628 = vmatpush1.msra.mxu0 %v3404
    %3629 = vmatprep.subr.mxu0 0.0
    %3630 = vmatpush1.msra.mxu0 %v3405
    %3631 = vmatprep.subr.mxu0 0.0
    %3632 = vmatpush1.msra.mxu0 %v3406
    %3633 = vmatprep.subr.mxu0 0.0
    %3634 = vmatpush1.msra.mxu0 %v3407
    %3635 = vmatprep.mubr.f32.mxu0 %v3500
    %3636 = vmatmul.mubr.f32.gmra.mrb[0].mxu0 %v3499
    %v3637 = vpop.f32.mrb[0].mxu0
    %v3638 = vadd.f32 %v3568, %v3637
    %v3639 = vpop.f32.mrb[0].mxu0
    %3640 = vdwg.mxu0
    %v3641 = vrcp.pop 512.0
    %v3642 = vmul.f32 %v3638, %v3641
    %v3643 = vmul.f32 %v3642, %v3642
    %v3645 = vrot.slane %v3643, 7
    %v3647 = vsub.f32 %v3642, %v3645
    %v3648 = vld [vmem:[#allocation9] sm:$0x1]
    %v3649 = vadd.f32 %v3647, 1e-05
    %v3650 = vrsqrt.pop %v3649
    %v3653 = vunpack.c.l.s4 1966171168
    %v3654 = vunpack.c.0.s8 %v3653
    %v3655 = vlaneseq
    %v3656 = vshrl.u32 %v3655, 7
    %v3657 = vsub.s32 %v3654, %v3656
    %v3658 = vrot.slane %v3650, %v3657
    %v3659 = vcombine.high %v3658, %v3658
    %v3661 = vunpack.c.l.s4 1966171168
    %v3662 = vunpack.c.0.s8 %v3661
    %v3663 = vlaneseq
    %v3664 = vshrl.u32 %v3663, 7
    %v3665 = vsub.s32 %v3662, %v3664
    %v3666 = vrot.slane %v3659, %v3665
    %v3668 = vmul.f32 %v3648, %v3666
    %v3669 = vld [vmem:[#allocation11] sm:$0x1]
    %v3670 = vmul.f32 %v3642, %v3668
    %v3671 = vsub.f32 %v3669, %v3670
    %v3673 = vlaneseq
    %v3674 = vshrl.u32 %v3673, 7
    %v3675 = vsub.s32 0, %v3674
    %v3676 = vrot.slane %v3668, %v3675
    %3677 = vrot.lane.b32.xlu0 %v3676, 32
    %v3678 = vpop.permute.xlu0 %3677
    %3680 = vrot.lane.b32.xlu0 %v3676, 64
    %v3681 = vpop.permute.xlu0 %3680
    %3683 = vrot.lane.b32.xlu0 %v3676, 96
    %v3684 = vpop.permute.xlu0 %3683
    %vm3686 = vcmask 261120
    %v3687 = vsel %vm3686, %v3668, %v3678
    %vm3688 = vcmask 523264
    %v3689 = vsel %vm3688, %v3687, %v3681
    %vm3690 = vcmask 785408
    %v3691 = vsel %vm3690, %v3689, %v3684
    %v3693 = vlaneseq
    %v3694 = vshrl.u32 %v3693, 7
    %v3695 = vsub.s32 0, %v3694
    %v3696 = vrot.slane %v3671, %v3695
    %3697 = vrot.lane.b32.xlu0 %v3696, 32
    %v3698 = vpop.permute.xlu0 %3697
    %3700 = vrot.lane.b32.xlu0 %v3696, 64
    %v3701 = vpop.permute.xlu0 %3700
    %3703 = vrot.lane.b32.xlu0 %v3696, 96
    %v3704 = vpop.permute.xlu0 %3703
    %v3706 = vsel %vm3686, %v3671, %v3698
    %v3707 = vsel %vm3688, %v3706, %v3701
    %v3708 = vsel %vm3690, %v3707, %v3704
    %s3709 = sld [smem:[#allocation5]]
    %v3710 = vlaneseq
    %v3711 = vshrl.u32 %v3710, 7
    %v3712 = vsub.s32 0, %v3711
    %v3713 = vrot.slane %v3691, %v3712
    %v3714 = vmul.f32 %v3328, %v3713
    %v3715 = vmul.f32 %v3329, %v3713
    %v3716 = vmul.f32 %v3330, %v3713
    %v3717 = vmul.f32 %v3331, %v3713
    %v3718 = vmul.f32 %v3332, %v3713
    %v3719 = vmul.f32 %v3333, %v3713
    %v3720 = vmul.f32 %v3334, %v3713
    %v3721 = vmul.f32 %v3335, %v3713
    %v3722 = vmul.f32 %v3336, %v3713
    %v3723 = vmul.f32 %v3337, %v3713
    %v3724 = vmul.f32 %v3338, %v3713
    %v3725 = vmul.f32 %v3339, %v3713
    %v3726 = vmul.f32 %v3340, %v3713
    %v3727 = vmul.f32 %v3341, %v3713
    %v3728 = vmul.f32 %v3342, %v3713
    %v3729 = vmul.f32 %v3343, %v3713
    %v3730 = vlaneseq
    %v3731 = vshrl.u32 %v3730, 7
    %v3732 = vsub.s32 0, %v3731
    %v3733 = vrot.slane %v3708, %v3732
    %v3734 = vadd.f32 %v3714, %v3733
    %v3735 = vadd.f32 %v3715, %v3733
    %v3736 = vadd.f32 %v3716, %v3733
    %v3737 = vadd.f32 %v3717, %v3733
    %v3738 = vadd.f32 %v3718, %v3733
    %v3739 = vadd.f32 %v3719, %v3733
    %v3740 = vadd.f32 %v3720, %v3733
    %v3741 = vadd.f32 %v3721, %v3733
    %v3742 = vadd.f32 %v3722, %v3733
    %v3743 = vadd.f32 %v3723, %v3733
    %v3744 = vadd.f32 %v3724, %v3733
    %v3745 = vadd.f32 %v3725, %v3733
    %v3746 = vadd.f32 %v3726, %v3733
    %v3747 = vadd.f32 %v3727, %v3733
    %v3748 = vadd.f32 %v3728, %v3733
    %v3749 = vadd.f32 %v3729, %v3733
    %vm3750 = vcmp.ge.f32.partialorder %v3734, 0.0
    %vm3751 = vcmp.ge.f32.partialorder %v3735, 0.0
    %vm3752 = vcmp.ge.f32.partialorder %v3736, 0.0
    %vm3753 = vcmp.ge.f32.partialorder %v3737, 0.0
    %vm3754 = vcmp.ge.f32.partialorder %v3738, 0.0
    %vm3755 = vcmp.ge.f32.partialorder %v3739, 0.0
    %vm3756 = vcmp.ge.f32.partialorder %v3740, 0.0
    %vm3757 = vcmp.ge.f32.partialorder %v3741, 0.0
    %vm3758 = vcmp.ge.f32.partialorder %v3742, 0.0
    %vm3759 = vcmp.ge.f32.partialorder %v3743, 0.0
    %vm3760 = vcmp.ge.f32.partialorder %v3744, 0.0
    %vm3761 = vcmp.ge.f32.partialorder %v3745, 0.0
    %vm3762 = vcmp.ge.f32.partialorder %v3746, 0.0
    %vm3763 = vcmp.ge.f32.partialorder %v3747, 0.0
    %vm3764 = vcmp.ge.f32.partialorder %v3748, 0.0
    %vm3765 = vcmp.ge.f32.partialorder %v3749, 0.0
    %v3766 = vstv %s3709
    %v3767 = vmul.f32 %v3766, %v3734
    %v3768 = vmul.f32 %v3766, %v3735
    %v3769 = vmul.f32 %v3766, %v3736
    %v3770 = vmul.f32 %v3766, %v3737
    %v3771 = vmul.f32 %v3766, %v3738
    %v3772 = vmul.f32 %v3766, %v3739
    %v3773 = vmul.f32 %v3766, %v3740
    %v3774 = vmul.f32 %v3766, %v3741
    %v3775 = vmul.f32 %v3766, %v3742
    %v3776 = vmul.f32 %v3766, %v3743
    %v3777 = vmul.f32 %v3766, %v3744
    %v3778 = vmul.f32 %v3766, %v3745
    %v3779 = vmul.f32 %v3766, %v3746
    %v3780 = vmul.f32 %v3766, %v3747
    %v3781 = vmul.f32 %v3766, %v3748
    %v3782 = vmul.f32 %v3766, %v3749
    %v3783 = vsel %vm3750, %v3734, %v3767
    %v3784 = vsel %vm3751, %v3735, %v3768
    %v3785 = vsel %vm3752, %v3736, %v3769
    %v3786 = vsel %vm3753, %v3737, %v3770
    %v3787 = vsel %vm3754, %v3738, %v3771
    %v3788 = vsel %vm3755, %v3739, %v3772
    %v3789 = vsel %vm3756, %v3740, %v3773
    %v3790 = vsel %vm3757, %v3741, %v3774
    %v3791 = vsel %vm3758, %v3742, %v3775
    %v3792 = vsel %vm3759, %v3743, %v3776
    %v3793 = vsel %vm3760, %v3744, %v3777
    %v3794 = vsel %vm3761, %v3745, %v3778
    %v3795 = vsel %vm3762, %v3746, %v3779
    %v3796 = vsel %vm3763, %v3747, %v3780
    %v3797 = vsel %vm3764, %v3748, %v3781
    %v3798 = vsel %vm3765, %v3749, %v3782
    %vm3799 = vcmask 1040384
    %vm3800 = vsmask.f32 256
    %vm3801 = vmand %vm3799, %vm3800
    %vm3802 = vcmask 1044484
    %vm3803 = vsmask.f32 4352
    %vm3804 = vmand %vm3802, %vm3803
    %vm3805 = vmor %vm3804, %vm3801
    %v3806 = vld [vmem:[#allocation3] sm:$0x11]
    %v3807 = vsel %vm3805, 0, %v3806
    %3808 = vst [vmem:[#allocation3] sm:$0x11] %v3807
    %v3809 = vld [vmem:[#allocation3 + $0x8] sm:$0x11]
    %v3810 = vsel %vm3805, 0, %v3809
    %3811 = vst [vmem:[#allocation3 + $0x8] sm:$0x11] %v3810
    %v3812 = vld [vmem:[#allocation3 + $0x30] sm:$0x11]
    %v3813 = vsel %vm3805, 0, %v3812
    %3814 = vst [vmem:[#allocation3 + $0x30] sm:$0x11] %v3813
    %v3815 = vld [vmem:[#allocation3 + $0x38] sm:$0x11]
    %v3816 = vsel %vm3805, 0, %v3815
    %3817 = vst [vmem:[#allocation3 + $0x38] sm:$0x11] %v3816
    %vm3818 = vsmask.f32 7938
    %vm3819 = vmand %vm3799, %vm3818
    %vm3820 = vsmask.f32 7954
    %vm3821 = vmand %vm3802, %vm3820
    %vm3822 = vmor %vm3821, %vm3819
    %v3823 = vld [vmem:[#allocation3 + $0x20] sm:$0x11]
    %v3824 = vsel %vm3822, 0, %v3823
    %3825 = vst [vmem:[#allocation3 + $0x20] sm:$0x11] %v3824
    %v3826 = vld [vmem:[#allocation3 + $0x28] sm:$0x11]
    %v3827 = vsel %vm3822, 0, %v3826
    %3828 = vst [vmem:[#allocation3 + $0x28] sm:$0x11] %v3827
    %v3829 = vld [vmem:[#allocation3 + $0x50] sm:$0x11]
    %v3830 = vsel %vm3822, 0, %v3829
    %3831 = vst [vmem:[#allocation3 + $0x50] sm:$0x11] %v3830
    %v3832 = vld [vmem:[#allocation3 + $0x58] sm:$0x11]
    %v3833 = vsel %vm3822, 0, %v3832
    %3834 = vst [vmem:[#allocation3 + $0x58] sm:$0x11] %v3833
    %v3835 = vpack.c.bf16 %v3787, %v3783
    %v3836 = vpack.c.bf16 %v3788, %v3784
    %v3837 = vpack.c.bf16 %v3789, %v3785
    %v3838 = vpack.c.bf16 %v3790, %v3786
    %v3839 = vpack.c.bf16 %v3795, %v3791
    %v3840 = vpack.c.bf16 %v3796, %v3792
    %v3841 = vpack.c.bf16 %v3797, %v3793
    %v3842 = vpack.c.bf16 %v3798, %v3794
    %v3851 = vunpack.c.l.b16 %v3835
    %v3852 = vunpack.c.l.b16 %v3836
    %v3853 = vunpack.c.l.b16 %v3837
    %v3854 = vunpack.c.l.b16 %v3838
    %v3855 = vunpack.c.h.b16 %v3835
    %v3856 = vunpack.c.h.b16 %v3836
    %v3857 = vunpack.c.h.b16 %v3837
    %v3858 = vunpack.c.h.b16 %v3838
    %v3859 = vunpack.c.l.b16 %v3839
    %v3860 = vunpack.c.l.b16 %v3840
    %v3861 = vunpack.c.l.b16 %v3841
    %v3862 = vunpack.c.l.b16 %v3842
    %v3863 = vunpack.c.h.b16 %v3839
    %v3864 = vunpack.c.h.b16 %v3840
    %v3865 = vunpack.c.h.b16 %v3841
    %v3866 = vunpack.c.h.b16 %v3842
    %v3867 = vpack.c.b16 %v3852, %v3851
    %v3868 = vpack.c.b16 %v3854, %v3853
    %v3869 = vpack.c.b16 %v3856, %v3855
    %v3870 = vpack.c.b16 %v3858, %v3857
    %v3871 = vpack.c.b16 %v3860, %v3859
    %v3872 = vpack.c.b16 %v3862, %v3861
    %v3873 = vpack.c.b16 %v3864, %v3863
    %v3874 = vpack.c.b16 %v3866, %v3865
    %vm3875 = vsmask.f32 4368
    %vm3876 = vmor %vm3800, %vm3875
    %v3878 = vshrl.u32 %v3867, 16
    %v3880 = vrot.slane %v3878, 7
    %v3881 = vshll.u32 %v3867, 16
    %v3883 = vor.u32 %v3880, %v3881
    %v3885 = vshrl.u32 %v3868, 16
    %v3887 = vrot.slane %v3885, 7
    %v3888 = vshll.u32 %v3868, 16
    %v3890 = vor.u32 %v3887, %v3888
    %v3891 = vrot.slane %v3880, 4
    %v3893 = vshrl.u32 %v3869, 16
    %v3895 = vrot.slane %v3893, 7
    %v3896 = vshll.u32 %v3869, 16
    %v3898 = vor.u32 %v3895, %v3896
    %v3899 = vsel %vm3876, %v3891, %v3898
    %v3900 = vrot.slane %v3887, 4
    %v3902 = vshrl.u32 %v3870, 16
    %v3904 = vrot.slane %v3902, 7
    %v3905 = vshll.u32 %v3870, 16
    %v3907 = vor.u32 %v3904, %v3905
    %v3908 = vsel %vm3876, %v3900, %v3907
    %v3909 = vrot.slane %v3895, 4
    %v3910 = vrot.slane %v3904, 4
    %v3912 = vshrl.u32 %v3871, 16
    %v3914 = vrot.slane %v3912, 7
    %v3915 = vshll.u32 %v3871, 16
    %v3917 = vor.u32 %v3914, %v3915
    %v3919 = vshrl.u32 %v3872, 16
    %v3921 = vrot.slane %v3919, 7
    %v3922 = vshll.u32 %v3872, 16
    %v3924 = vor.u32 %v3921, %v3922
    %v3925 = vrot.slane %v3914, 4
    %v3927 = vshrl.u32 %v3873, 16
    %v3929 = vrot.slane %v3927, 7
    %v3930 = vshll.u32 %v3873, 16
    %v3932 = vor.u32 %v3929, %v3930
    %v3933 = vsel %vm3876, %v3925, %v3932
    %v3934 = vrot.slane %v3921, 4
    %v3936 = vshrl.u32 %v3874, 16
    %v3938 = vrot.slane %v3936, 7
    %v3939 = vshll.u32 %v3874, 16
    %v3941 = vor.u32 %v3938, %v3939
    %v3942 = vsel %vm3876, %v3934, %v3941
    %v3943 = vrot.slane %v3929, 4
    %v3944 = vrot.slane %v3938, 4
    %vm3957 = vcmask 1043456
    %vm3958 = vmand %vm3957, %vm3818
    %vm3959 = vcmask 1047556
    %vm3960 = vmand %vm3959, %vm3820
    %vm3961 = vmor %vm3960, %vm3958
    %v3962 = vld [vmem:[#allocation3] sm:$0xff]
    %v3963 = vsel %vm3961, %v3883, %v3962
    %3964 = vst [vmem:[#allocation3] sm:$0xff] %v3963
    %v3965 = vld [vmem:[#allocation3 + $0x8] sm:$0xff]
    %v3966 = vsel %vm3961, %v3890, %v3965
    %3967 = vst [vmem:[#allocation3 + $0x8] sm:$0xff] %v3966
    %3968 = vst [vmem:[#allocation3 + $0x10] sm:$0xff] %v3899
    %3969 = vst [vmem:[#allocation3 + $0x18] sm:$0xff] %v3908
    %v3970 = vld [vmem:[#allocation3 + $0x20] sm:$0x11]
    %v3971 = vsel %vm3805, %v3909, %v3970
    %3972 = vst [vmem:[#allocation3 + $0x20] sm:$0x11] %v3971
    %v3973 = vld [vmem:[#allocation3 + $0x28] sm:$0x11]
    %v3974 = vsel %vm3805, %v3910, %v3973
    %3975 = vst [vmem:[#allocation3 + $0x28] sm:$0x11] %v3974
    %v3976 = vld [vmem:[#allocation3 + $0x30] sm:$0xff]
    %v3977 = vsel %vm3961, %v3917, %v3976
    %3978 = vst [vmem:[#allocation3 + $0x30] sm:$0xff] %v3977
    %v3979 = vld [vmem:[#allocation3 + $0x38] sm:$0xff]
    %v3980 = vsel %vm3961, %v3924, %v3979
    %3981 = vst [vmem:[#allocation3 + $0x38] sm:$0xff] %v3980
    %3982 = vst [vmem:[#allocation3 + $0x40] sm:$0xff] %v3933
    %3983 = vst [vmem:[#allocation3 + $0x48] sm:$0xff] %v3942
    %v3984 = vld [vmem:[#allocation3 + $0x50] sm:$0x11]
    %v3985 = vsel %vm3805, %v3943, %v3984
    %3986 = vst [vmem:[#allocation3 + $0x50] sm:$0x11] %v3985
    %v3987 = vld [vmem:[#allocation3 + $0x58] sm:$0x11]
    %v3988 = vsel %vm3805, %v3944, %v3987
    %3989 = vst [vmem:[#allocation3 + $0x58] sm:$0x11] %v3988
    %s3990 = smul.u32 4, 3
    %s3991 = smul.u32 %s3990, 64
    %s3992 = smul.u32 %s3991, 4
    %s3993 = sshll.u32 %s3992, 4
    %3994 = dma.done [#allocation4], %s3993
    %v3995 = vld [vmem:[#allocation3] sm:$0xff]
    %v3996 = vld [vmem:[#allocation3 + $0x8] sm:$0xff]
    %v3997 = vld [vmem:[#allocation3 + $0x10] sm:$0xff]
    %v3998 = vld [vmem:[#allocation3 + $0x18] sm:$0xff]
    %v3999 = vld [vmem:[#allocation3 + $0x20] sm:$0x11]
    %v4000 = vld [vmem:[#allocation3 + $0x28] sm:$0x11]
    %v4001 = vld [vmem:[#allocation3 + $0x30] sm:$0xff]
    %v4002 = vld [vmem:[#allocation3 + $0x38] sm:$0xff]
    %v4003 = vld [vmem:[#allocation3 + $0x40] sm:$0xff]
    %v4004 = vld [vmem:[#allocation3 + $0x48] sm:$0xff]
    %v4005 = vld [vmem:[#allocation3 + $0x50] sm:$0x11]
    %v4006 = vld [vmem:[#allocation3 + $0x58] sm:$0x11]
    %v4008 = vshrl.u32 %v3995, 16
    %v4010 = vrot.slane %v4008, 4
    %v4011 = vshll.u32 %v3995, 16
    %v4013 = vrot.slane %v4011, 5
    %v4014 = vor.u32 %v4010, %v4013
    %v4015 = vrot.slane %v4014, 4
    %v4017 = vshll.u32 %v3997, 16
    %v4019 = vrot.slane %v4017, 5
    %v4020 = vsel %vm142, %v4015, %v4019
    %v4022 = vshrl.u32 %v3996, 16
    %v4024 = vrot.slane %v4022, 4
    %v4025 = vshll.u32 %v3996, 16
    %v4027 = vrot.slane %v4025, 5
    %v4028 = vor.u32 %v4024, %v4027
    %v4029 = vrot.slane %v4028, 4
    %v4031 = vshll.u32 %v3998, 16
    %v4033 = vrot.slane %v4031, 5
    %v4034 = vsel %vm142, %v4029, %v4033
    %v4035 = vshrl.u32 %v3997, 16
    %v4037 = vrot.slane %v4035, 4
    %v4038 = vor.u32 %v4037, %v4019
    %v4039 = vrot.slane %v4038, 4
    %v4041 = vshll.u32 %v3999, 16
    %v4043 = vrot.slane %v4041, 5
    %v4044 = vsel %vm142, %v4039, %v4043
    %v4045 = vshrl.u32 %v3998, 16
    %v4047 = vrot.slane %v4045, 4
    %v4048 = vor.u32 %v4047, %v4033
    %v4049 = vrot.slane %v4048, 4
    %v4051 = vshll.u32 %v4000, 16
    %v4053 = vrot.slane %v4051, 5
    %v4054 = vsel %vm142, %v4049, %v4053
    %v4056 = vshrl.u32 %v4001, 16
    %v4058 = vrot.slane %v4056, 4
    %v4059 = vshll.u32 %v4001, 16
    %v4061 = vrot.slane %v4059, 5
    %v4062 = vor.u32 %v4058, %v4061
    %v4063 = vrot.slane %v4062, 4
    %v4065 = vshll.u32 %v4003, 16
    %v4067 = vrot.slane %v4065, 5
    %v4068 = vsel %vm142, %v4063, %v4067
    %v4070 = vshrl.u32 %v4002, 16
    %v4072 = vrot.slane %v4070, 4
    %v4073 = vshll.u32 %v4002, 16
    %v4075 = vrot.slane %v4073, 5
    %v4076 = vor.u32 %v4072, %v4075
    %v4077 = vrot.slane %v4076, 4
    %v4079 = vshll.u32 %v4004, 16
    %v4081 = vrot.slane %v4079, 5
    %v4082 = vsel %vm142, %v4077, %v4081
    %v4083 = vshrl.u32 %v4003, 16
    %v4085 = vrot.slane %v4083, 4
    %v4086 = vor.u32 %v4085, %v4067
    %v4087 = vrot.slane %v4086, 4
    %v4089 = vshll.u32 %v4005, 16
    %v4091 = vrot.slane %v4089, 5
    %v4092 = vsel %vm142, %v4087, %v4091
    %v4093 = vshrl.u32 %v4004, 16
    %v4095 = vrot.slane %v4093, 4
    %v4096 = vor.u32 %v4095, %v4081
    %v4097 = vrot.slane %v4096, 4
    %v4099 = vshll.u32 %v4006, 16
    %v4101 = vrot.slane %v4099, 5
    %v4102 = vsel %vm142, %v4097, %v4101
    %s4103 = scalar_lea.vmem [#allocation2], 1024
    %v4104 = vld [vmem:[%s4103] sm:$0xff]
    %v4105 = vld [vmem:[%s4103 + $0x8] sm:$0xff]
    %v4106 = vld [vmem:[%s4103 + $0x10] sm:$0xff]
    %v4107 = vld [vmem:[%s4103 + $0x18] sm:$0xff]
    %v4108 = vld [vmem:[%s4103 + $0x20] sm:$0xff]
    %v4109 = vld [vmem:[%s4103 + $0x28] sm:$0xff]
    %v4110 = vld [vmem:[%s4103 + $0x30] sm:$0xff]
    %v4111 = vld [vmem:[%s4103 + $0x38] sm:$0xff]
    %v4112 = vld [vmem:[%s4103 + $0x40] sm:$0xff]
    %v4113 = vld [vmem:[%s4103 + $0x48] sm:$0xff]
    %v4114 = vld [vmem:[%s4103 + $0x50] sm:$0xff]
    %v4115 = vld [vmem:[%s4103 + $0x58] sm:$0xff]
    %v4116 = vld [vmem:[%s4103 + $0x60] sm:$0xff]
    %v4117 = vld [vmem:[%s4103 + $0x68] sm:$0xff]
    %v4118 = vld [vmem:[%s4103 + $0x70] sm:$0xff]
    %v4119 = vld [vmem:[%s4103 + $0x78] sm:$0xff]
    %v4120 = vld [vmem:[%s4103 + $0x80] sm:$0xff]
    %v4121 = vld [vmem:[%s4103 + $0x88] sm:$0xff]
    %v4122 = vld [vmem:[%s4103 + $0x90] sm:$0xff]
    %v4123 = vld [vmem:[%s4103 + $0x98] sm:$0xff]
    %v4124 = vld [vmem:[%s4103 + $0xa0] sm:$0xff]
    %v4125 = vld [vmem:[%s4103 + $0xa8] sm:$0xff]
    %v4126 = vld [vmem:[%s4103 + $0xb0] sm:$0xff]
    %v4127 = vld [vmem:[%s4103 + $0xb8] sm:$0xff]
    %v4128 = vld [vmem:[%s4103 + $0xc0] sm:$0xff]
    %v4129 = vld [vmem:[%s4103 + $0xc8] sm:$0xff]
    %v4130 = vld [vmem:[%s4103 + $0xd0] sm:$0xff]
    %v4131 = vld [vmem:[%s4103 + $0xd8] sm:$0xff]
    %v4132 = vld [vmem:[%s4103 + $0xe0] sm:$0xff]
    %v4133 = vld [vmem:[%s4103 + $0xe8] sm:$0xff]
    %v4134 = vld [vmem:[%s4103 + $0xf0] sm:$0xff]
    %v4135 = vld [vmem:[%s4103 + $0xf8] sm:$0xff]
    %v4136 = vld [vmem:[%s4103 + $0x100] sm:$0xff]
    %v4137 = vld [vmem:[%s4103 + $0x108] sm:$0xff]
    %v4138 = vld [vmem:[%s4103 + $0x110] sm:$0xff]
    %v4139 = vld [vmem:[%s4103 + $0x118] sm:$0xff]
    %v4140 = vld [vmem:[%s4103 + $0x120] sm:$0xff]
    %v4141 = vld [vmem:[%s4103 + $0x128] sm:$0xff]
    %v4142 = vld [vmem:[%s4103 + $0x130] sm:$0xff]
    %v4143 = vld [vmem:[%s4103 + $0x138] sm:$0xff]
    %v4144 = vld [vmem:[%s4103 + $0x140] sm:$0xff]
    %v4145 = vld [vmem:[%s4103 + $0x148] sm:$0xff]
    %v4146 = vld [vmem:[%s4103 + $0x150] sm:$0xff]
    %v4147 = vld [vmem:[%s4103 + $0x158] sm:$0xff]
    %v4148 = vld [vmem:[%s4103 + $0x160] sm:$0xff]
    %v4149 = vld [vmem:[%s4103 + $0x168] sm:$0xff]
    %v4150 = vld [vmem:[%s4103 + $0x170] sm:$0xff]
    %v4151 = vld [vmem:[%s4103 + $0x178] sm:$0xff]
    %v4152 = vld [vmem:[%s4103 + $0x180] sm:$0xff]
    %v4153 = vld [vmem:[%s4103 + $0x188] sm:$0xff]
    %v4154 = vld [vmem:[%s4103 + $0x190] sm:$0xff]
    %v4155 = vld [vmem:[%s4103 + $0x198] sm:$0xff]
    %v4156 = vld [vmem:[%s4103 + $0x1a0] sm:$0xff]
    %v4157 = vld [vmem:[%s4103 + $0x1a8] sm:$0xff]
    %v4158 = vld [vmem:[%s4103 + $0x1b0] sm:$0xff]
    %v4159 = vld [vmem:[%s4103 + $0x1b8] sm:$0xff]
    %v4160 = vld [vmem:[%s4103 + $0x1c0] sm:$0xff]
    %v4161 = vld [vmem:[%s4103 + $0x1c8] sm:$0xff]
    %v4162 = vld [vmem:[%s4103 + $0x1d0] sm:$0xff]
    %v4163 = vld [vmem:[%s4103 + $0x1d8] sm:$0xff]
    %v4164 = vld [vmem:[%s4103 + $0x1e0] sm:$0xff]
    %v4165 = vld [vmem:[%s4103 + $0x1e8] sm:$0xff]
    %v4166 = vld [vmem:[%s4103 + $0x1f0] sm:$0xff]
    %v4167 = vld [vmem:[%s4103 + $0x1f8] sm:$0xff]
    %v4168 = vld [vmem:[%s4103 + $0x200] sm:$0xff]
    %v4169 = vld [vmem:[%s4103 + $0x208] sm:$0xff]
    %v4170 = vld [vmem:[%s4103 + $0x210] sm:$0xff]
    %v4171 = vld [vmem:[%s4103 + $0x218] sm:$0xff]
    %v4172 = vld [vmem:[%s4103 + $0x220] sm:$0xff]
    %v4173 = vld [vmem:[%s4103 + $0x228] sm:$0xff]
    %v4174 = vld [vmem:[%s4103 + $0x230] sm:$0xff]
    %v4175 = vld [vmem:[%s4103 + $0x238] sm:$0xff]
    %v4176 = vld [vmem:[%s4103 + $0x240] sm:$0xff]
    %v4177 = vld [vmem:[%s4103 + $0x248] sm:$0xff]
    %v4178 = vld [vmem:[%s4103 + $0x250] sm:$0xff]
    %v4179 = vld [vmem:[%s4103 + $0x258] sm:$0xff]
    %v4180 = vld [vmem:[%s4103 + $0x260] sm:$0xff]
    %v4181 = vld [vmem:[%s4103 + $0x268] sm:$0xff]
    %v4182 = vld [vmem:[%s4103 + $0x270] sm:$0xff]
    %v4183 = vld [vmem:[%s4103 + $0x278] sm:$0xff]
    %v4184 = vld [vmem:[%s4103 + $0x280] sm:$0xff]
    %v4185 = vld [vmem:[%s4103 + $0x288] sm:$0xff]
    %v4186 = vld [vmem:[%s4103 + $0x290] sm:$0xff]
    %v4187 = vld [vmem:[%s4103 + $0x298] sm:$0xff]
    %v4188 = vld [vmem:[%s4103 + $0x2a0] sm:$0xff]
    %v4189 = vld [vmem:[%s4103 + $0x2a8] sm:$0xff]
    %v4190 = vld [vmem:[%s4103 + $0x2b0] sm:$0xff]
    %v4191 = vld [vmem:[%s4103 + $0x2b8] sm:$0xff]
    %v4192 = vld [vmem:[%s4103 + $0x2c0] sm:$0xff]
    %v4193 = vld [vmem:[%s4103 + $0x2c8] sm:$0xff]
    %v4194 = vld [vmem:[%s4103 + $0x2d0] sm:$0xff]
    %v4195 = vld [vmem:[%s4103 + $0x2d8] sm:$0xff]
    %v4196 = vld [vmem:[%s4103 + $0x2e0] sm:$0xff]
    %v4197 = vld [vmem:[%s4103 + $0x2e8] sm:$0xff]
    %v4198 = vld [vmem:[%s4103 + $0x2f0] sm:$0xff]
    %v4199 = vld [vmem:[%s4103 + $0x2f8] sm:$0xff]
    %v4200 = vld [vmem:[%s4103 + $0x300] sm:$0xff]
    %v4201 = vld [vmem:[%s4103 + $0x308] sm:$0xff]
    %v4202 = vld [vmem:[%s4103 + $0x310] sm:$0xff]
    %v4203 = vld [vmem:[%s4103 + $0x318] sm:$0xff]
    %v4204 = vld [vmem:[%s4103 + $0x320] sm:$0xff]
    %v4205 = vld [vmem:[%s4103 + $0x328] sm:$0xff]
    %v4206 = vld [vmem:[%s4103 + $0x330] sm:$0xff]
    %v4207 = vld [vmem:[%s4103 + $0x338] sm:$0xff]
    %v4208 = vld [vmem:[%s4103 + $0x340] sm:$0xff]
    %v4209 = vld [vmem:[%s4103 + $0x348] sm:$0xff]
    %v4210 = vld [vmem:[%s4103 + $0x350] sm:$0xff]
    %v4211 = vld [vmem:[%s4103 + $0x358] sm:$0xff]
    %v4212 = vld [vmem:[%s4103 + $0x360] sm:$0xff]
    %v4213 = vld [vmem:[%s4103 + $0x368] sm:$0xff]
    %v4214 = vld [vmem:[%s4103 + $0x370] sm:$0xff]
    %v4215 = vld [vmem:[%s4103 + $0x378] sm:$0xff]
    %v4216 = vld [vmem:[%s4103 + $0x380] sm:$0xff]
    %v4217 = vld [vmem:[%s4103 + $0x388] sm:$0xff]
    %v4218 = vld [vmem:[%s4103 + $0x390] sm:$0xff]
    %v4219 = vld [vmem:[%s4103 + $0x398] sm:$0xff]
    %v4220 = vld [vmem:[%s4103 + $0x3a0] sm:$0xff]
    %v4221 = vld [vmem:[%s4103 + $0x3a8] sm:$0xff]
    %v4222 = vld [vmem:[%s4103 + $0x3b0] sm:$0xff]
    %v4223 = vld [vmem:[%s4103 + $0x3b8] sm:$0xff]
    %v4224 = vld [vmem:[%s4103 + $0x3c0] sm:$0xff]
    %v4225 = vld [vmem:[%s4103 + $0x3c8] sm:$0xff]
    %v4226 = vld [vmem:[%s4103 + $0x3d0] sm:$0xff]
    %v4227 = vld [vmem:[%s4103 + $0x3d8] sm:$0xff]
    %v4228 = vld [vmem:[%s4103 + $0x3e0] sm:$0xff]
    %v4229 = vld [vmem:[%s4103 + $0x3e8] sm:$0xff]
    %v4230 = vld [vmem:[%s4103 + $0x3f0] sm:$0xff]
    %v4231 = vld [vmem:[%s4103 + $0x3f8] sm:$0xff]
    %v4232 = vld [vmem:[#allocation2] sm:$0xff]
    %v4233 = vld [vmem:[#allocation2 + $0x8] sm:$0xff]
    %v4234 = vld [vmem:[#allocation2 + $0x10] sm:$0xff]
    %v4235 = vld [vmem:[#allocation2 + $0x18] sm:$0xff]
    %v4236 = vld [vmem:[#allocation2 + $0x20] sm:$0xff]
    %v4237 = vld [vmem:[#allocation2 + $0x28] sm:$0xff]
    %v4238 = vld [vmem:[#allocation2 + $0x30] sm:$0xff]
    %v4239 = vld [vmem:[#allocation2 + $0x38] sm:$0xff]
    %v4240 = vld [vmem:[#allocation2 + $0x40] sm:$0xff]
    %v4241 = vld [vmem:[#allocation2 + $0x48] sm:$0xff]
    %v4242 = vld [vmem:[#allocation2 + $0x50] sm:$0xff]
    %v4243 = vld [vmem:[#allocation2 + $0x58] sm:$0xff]
    %v4244 = vld [vmem:[#allocation2 + $0x60] sm:$0xff]
    %v4245 = vld [vmem:[#allocation2 + $0x68] sm:$0xff]
    %v4246 = vld [vmem:[#allocation2 + $0x70] sm:$0xff]
    %v4247 = vld [vmem:[#allocation2 + $0x78] sm:$0xff]
    %v4248 = vld [vmem:[#allocation2 + $0x80] sm:$0xff]
    %v4249 = vld [vmem:[#allocation2 + $0x88] sm:$0xff]
    %v4250 = vld [vmem:[#allocation2 + $0x90] sm:$0xff]
    %v4251 = vld [vmem:[#allocation2 + $0x98] sm:$0xff]
    %v4252 = vld [vmem:[#allocation2 + $0xa0] sm:$0xff]
    %v4253 = vld [vmem:[#allocation2 + $0xa8] sm:$0xff]
    %v4254 = vld [vmem:[#allocation2 + $0xb0] sm:$0xff]
    %v4255 = vld [vmem:[#allocation2 + $0xb8] sm:$0xff]
    %v4256 = vld [vmem:[#allocation2 + $0xc0] sm:$0xff]
    %v4257 = vld [vmem:[#allocation2 + $0xc8] sm:$0xff]
    %v4258 = vld [vmem:[#allocation2 + $0xd0] sm:$0xff]
    %v4259 = vld [vmem:[#allocation2 + $0xd8] sm:$0xff]
    %v4260 = vld [vmem:[#allocation2 + $0xe0] sm:$0xff]
    %v4261 = vld [vmem:[#allocation2 + $0xe8] sm:$0xff]
    %v4262 = vld [vmem:[#allocation2 + $0xf0] sm:$0xff]
    %v4263 = vld [vmem:[#allocation2 + $0xf8] sm:$0xff]
    %v4264 = vld [vmem:[#allocation2 + $0x100] sm:$0xff]
    %v4265 = vld [vmem:[#allocation2 + $0x108] sm:$0xff]
    %v4266 = vld [vmem:[#allocation2 + $0x110] sm:$0xff]
    %v4267 = vld [vmem:[#allocation2 + $0x118] sm:$0xff]
    %v4268 = vld [vmem:[#allocation2 + $0x120] sm:$0xff]
    %v4269 = vld [vmem:[#allocation2 + $0x128] sm:$0xff]
    %v4270 = vld [vmem:[#allocation2 + $0x130] sm:$0xff]
    %v4271 = vld [vmem:[#allocation2 + $0x138] sm:$0xff]
    %v4272 = vld [vmem:[#allocation2 + $0x140] sm:$0xff]
    %v4273 = vld [vmem:[#allocation2 + $0x148] sm:$0xff]
    %v4274 = vld [vmem:[#allocation2 + $0x150] sm:$0xff]
    %v4275 = vld [vmem:[#allocation2 + $0x158] sm:$0xff]
    %v4276 = vld [vmem:[#allocation2 + $0x160] sm:$0xff]
    %v4277 = vld [vmem:[#allocation2 + $0x168] sm:$0xff]
    %v4278 = vld [vmem:[#allocation2 + $0x170] sm:$0xff]
    %v4279 = vld [vmem:[#allocation2 + $0x178] sm:$0xff]
    %v4280 = vld [vmem:[#allocation2 + $0x180] sm:$0xff]
    %v4281 = vld [vmem:[#allocation2 + $0x188] sm:$0xff]
    %v4282 = vld [vmem:[#allocation2 + $0x190] sm:$0xff]
    %v4283 = vld [vmem:[#allocation2 + $0x198] sm:$0xff]
    %v4284 = vld [vmem:[#allocation2 + $0x1a0] sm:$0xff]
    %v4285 = vld [vmem:[#allocation2 + $0x1a8] sm:$0xff]
    %v4286 = vld [vmem:[#allocation2 + $0x1b0] sm:$0xff]
    %v4287 = vld [vmem:[#allocation2 + $0x1b8] sm:$0xff]
    %v4288 = vld [vmem:[#allocation2 + $0x1c0] sm:$0xff]
    %v4289 = vld [vmem:[#allocation2 + $0x1c8] sm:$0xff]
    %v4290 = vld [vmem:[#allocation2 + $0x1d0] sm:$0xff]
    %v4291 = vld [vmem:[#allocation2 + $0x1d8] sm:$0xff]
    %v4292 = vld [vmem:[#allocation2 + $0x1e0] sm:$0xff]
    %v4293 = vld [vmem:[#allocation2 + $0x1e8] sm:$0xff]
    %v4294 = vld [vmem:[#allocation2 + $0x1f0] sm:$0xff]
    %v4295 = vld [vmem:[#allocation2 + $0x1f8] sm:$0xff]
    %v4296 = vld [vmem:[#allocation2 + $0x200] sm:$0xff]
    %v4297 = vld [vmem:[#allocation2 + $0x208] sm:$0xff]
    %v4298 = vld [vmem:[#allocation2 + $0x210] sm:$0xff]
    %v4299 = vld [vmem:[#allocation2 + $0x218] sm:$0xff]
    %v4300 = vld [vmem:[#allocation2 + $0x220] sm:$0xff]
    %v4301 = vld [vmem:[#allocation2 + $0x228] sm:$0xff]
    %v4302 = vld [vmem:[#allocation2 + $0x230] sm:$0xff]
    %v4303 = vld [vmem:[#allocation2 + $0x238] sm:$0xff]
    %v4304 = vld [vmem:[#allocation2 + $0x240] sm:$0xff]
    %v4305 = vld [vmem:[#allocation2 + $0x248] sm:$0xff]
    %v4306 = vld [vmem:[#allocation2 + $0x250] sm:$0xff]
    %v4307 = vld [vmem:[#allocation2 + $0x258] sm:$0xff]
    %v4308 = vld [vmem:[#allocation2 + $0x260] sm:$0xff]
    %v4309 = vld [vmem:[#allocation2 + $0x268] sm:$0xff]
    %v4310 = vld [vmem:[#allocation2 + $0x270] sm:$0xff]
    %v4311 = vld [vmem:[#allocation2 + $0x278] sm:$0xff]
    %v4312 = vld [vmem:[#allocation2 + $0x280] sm:$0xff]
    %v4313 = vld [vmem:[#allocation2 + $0x288] sm:$0xff]
    %v4314 = vld [vmem:[#allocation2 + $0x290] sm:$0xff]
    %v4315 = vld [vmem:[#allocation2 + $0x298] sm:$0xff]
    %v4316 = vld [vmem:[#allocation2 + $0x2a0] sm:$0xff]
    %v4317 = vld [vmem:[#allocation2 + $0x2a8] sm:$0xff]
    %v4318 = vld [vmem:[#allocation2 + $0x2b0] sm:$0xff]
    %v4319 = vld [vmem:[#allocation2 + $0x2b8] sm:$0xff]
    %v4320 = vld [vmem:[#allocation2 + $0x2c0] sm:$0xff]
    %v4321 = vld [vmem:[#allocation2 + $0x2c8] sm:$0xff]
    %v4322 = vld [vmem:[#allocation2 + $0x2d0] sm:$0xff]
    %v4323 = vld [vmem:[#allocation2 + $0x2d8] sm:$0xff]
    %v4324 = vld [vmem:[#allocation2 + $0x2e0] sm:$0xff]
    %v4325 = vld [vmem:[#allocation2 + $0x2e8] sm:$0xff]
    %v4326 = vld [vmem:[#allocation2 + $0x2f0] sm:$0xff]
    %v4327 = vld [vmem:[#allocation2 + $0x2f8] sm:$0xff]
    %v4328 = vld [vmem:[#allocation2 + $0x300] sm:$0xff]
    %v4329 = vld [vmem:[#allocation2 + $0x308] sm:$0xff]
    %v4330 = vld [vmem:[#allocation2 + $0x310] sm:$0xff]
    %v4331 = vld [vmem:[#allocation2 + $0x318] sm:$0xff]
    %v4332 = vld [vmem:[#allocation2 + $0x320] sm:$0xff]
    %v4333 = vld [vmem:[#allocation2 + $0x328] sm:$0xff]
    %v4334 = vld [vmem:[#allocation2 + $0x330] sm:$0xff]
    %v4335 = vld [vmem:[#allocation2 + $0x338] sm:$0xff]
    %v4336 = vld [vmem:[#allocation2 + $0x340] sm:$0xff]
    %v4337 = vld [vmem:[#allocation2 + $0x348] sm:$0xff]
    %v4338 = vld [vmem:[#allocation2 + $0x350] sm:$0xff]
    %v4339 = vld [vmem:[#allocation2 + $0x358] sm:$0xff]
    %v4340 = vld [vmem:[#allocation2 + $0x360] sm:$0xff]
    %v4341 = vld [vmem:[#allocation2 + $0x368] sm:$0xff]
    %v4342 = vld [vmem:[#allocation2 + $0x370] sm:$0xff]
    %v4343 = vld [vmem:[#allocation2 + $0x378] sm:$0xff]
    %v4344 = vld [vmem:[#allocation2 + $0x380] sm:$0xff]
    %v4345 = vld [vmem:[#allocation2 + $0x388] sm:$0xff]
    %v4346 = vld [vmem:[#allocation2 + $0x390] sm:$0xff]
    %v4347 = vld [vmem:[#allocation2 + $0x398] sm:$0xff]
    %v4348 = vld [vmem:[#allocation2 + $0x3a0] sm:$0xff]
    %v4349 = vld [vmem:[#allocation2 + $0x3a8] sm:$0xff]
    %v4350 = vld [vmem:[#allocation2 + $0x3b0] sm:$0xff]
    %v4351 = vld [vmem:[#allocation2 + $0x3b8] sm:$0xff]
    %v4352 = vld [vmem:[#allocation2 + $0x3c0] sm:$0xff]
    %v4353 = vld [vmem:[#allocation2 + $0x3c8] sm:$0xff]
    %v4354 = vld [vmem:[#allocation2 + $0x3d0] sm:$0xff]
    %v4355 = vld [vmem:[#allocation2 + $0x3d8] sm:$0xff]
    %v4356 = vld [vmem:[#allocation2 + $0x3e0] sm:$0xff]
    %v4357 = vld [vmem:[#allocation2 + $0x3e8] sm:$0xff]
    %v4358 = vld [vmem:[#allocation2 + $0x3f0] sm:$0xff]
    %v4359 = vld [vmem:[#allocation2 + $0x3f8] sm:$0xff]
    %v4368 = vunpack.c.l.b16 %v3995
    %v4369 = vunpack.c.h.b16 %v3995
    %v4370 = vunpack.c.l.b16 %v3996
    %v4371 = vunpack.c.h.b16 %v3996
    %v4372 = vunpack.c.l.b16 %v3997
    %v4373 = vunpack.c.h.b16 %v3997
    %v4374 = vunpack.c.l.b16 %v3998
    %v4375 = vunpack.c.h.b16 %v3998
    %v4376 = vunpack.c.l.b16 %v4001
    %v4377 = vunpack.c.h.b16 %v4001
    %v4378 = vunpack.c.l.b16 %v4002
    %v4379 = vunpack.c.h.b16 %v4002
    %v4380 = vunpack.c.l.b16 %v4003
    %v4381 = vunpack.c.h.b16 %v4003
    %v4382 = vunpack.c.l.b16 %v4004
    %v4383 = vunpack.c.h.b16 %v4004
    %v4384 = vpack.c.b16 %v4372, %v4368
    %v4385 = vpack.c.b16 %v4373, %v4369
    %v4386 = vpack.c.b16 %v4374, %v4370
    %v4387 = vpack.c.b16 %v4375, %v4371
    %v4388 = vpack.c.b16 %v4380, %v4376
    %v4389 = vpack.c.b16 %v4381, %v4377
    %v4390 = vpack.c.b16 %v4382, %v4378
    %v4391 = vpack.c.b16 %v4383, %v4379
    %4400 = vmatprep.subr.bf16.mxu0 %v4233
    %4401 = vmatpush1.bf16.msra.mxu0 %v4232
    %4402 = vmatprep.subr.bf16.mxu0 %v4237
    %4403 = vmatpush1.bf16.msra.mxu0 %v4236
    %4404 = vmatprep.subr.bf16.mxu0 %v4241
    %4405 = vmatpush1.bf16.msra.mxu0 %v4240
    %4406 = vmatprep.subr.bf16.mxu0 %v4245
    %4407 = vmatpush1.bf16.msra.mxu0 %v4244
    %4408 = vmatprep.subr.bf16.mxu0 %v4249
    %4409 = vmatpush1.bf16.msra.mxu0 %v4248
    %4410 = vmatprep.subr.bf16.mxu0 %v4253
    %4411 = vmatpush1.bf16.msra.mxu0 %v4252
    %4412 = vmatprep.subr.bf16.mxu0 %v4257
    %4413 = vmatpush1.bf16.msra.mxu0 %v4256
    %4414 = vmatprep.subr.bf16.mxu0 %v4261
    %4415 = vmatpush1.bf16.msra.mxu0 %v4260
    %4416 = vmatprep.subr.bf16.mxu0 %v4265
    %4417 = vmatpush1.bf16.msra.mxu0 %v4264
    %4418 = vmatprep.subr.bf16.mxu0 %v4269
    %4419 = vmatpush1.bf16.msra.mxu0 %v4268
    %4420 = vmatprep.subr.bf16.mxu0 %v4273
    %4421 = vmatpush1.bf16.msra.mxu0 %v4272
    %4422 = vmatprep.subr.bf16.mxu0 %v4277
    %4423 = vmatpush1.bf16.msra.mxu0 %v4276
    %4424 = vmatprep.subr.bf16.mxu0 %v4281
    %4425 = vmatpush1.bf16.msra.mxu0 %v4280
    %4426 = vmatprep.subr.bf16.mxu0 %v4285
    %4427 = vmatpush1.bf16.msra.mxu0 %v4284
    %4428 = vmatprep.subr.bf16.mxu0 %v4289
    %4429 = vmatpush1.bf16.msra.mxu0 %v4288
    %4430 = vmatprep.subr.bf16.mxu0 %v4293
    %4431 = vmatpush1.bf16.msra.mxu0 %v4292
    %4432 = vmatprep.mubr.bf16.mxu0 %v4385
    %4433 = vmatmul.mubr.bf16.gmra.mrb[0].mxu0 %v4384
    %v4434 = vpop.f32.mrb[0].mxu0
    %v4435 = vadd.f32 0.0, %v4434
    %v4436 = vpop.f32.mrb[0].mxu0
    %v4437 = vadd.f32 0.0, %v4436
    %v4438 = vpop.f32.mrb[0].mxu0
    %v4439 = vadd.f32 0.0, %v4438
    %v4440 = vpop.f32.mrb[0].mxu0
    %v4441 = vadd.f32 0.0, %v4440
    %4442 = vmatprep.mubr.bf16.mxu0 %v4389
    %4443 = vmatmul.mubr.bf16.gmra.mrb[0].mxu0 %v4388
    %v4444 = vpop.f32.mrb[0].mxu0
    %v4445 = vadd.f32 0.0, %v4444
    %v4446 = vpop.f32.mrb[0].mxu0
    %v4447 = vadd.f32 0.0, %v4446
    %v4448 = vpop.f32.mrb[0].mxu0
    %v4449 = vadd.f32 0.0, %v4448
    %v4450 = vpop.f32.mrb[0].mxu0
    %v4451 = vadd.f32 0.0, %v4450
    %4452 = vdwg.mxu0
    %4453 = vmatprep.subr.bf16.mxu0 %v4297
    %4454 = vmatpush1.bf16.msra.mxu0 %v4296
    %4455 = vmatprep.subr.bf16.mxu0 %v4301
    %4456 = vmatpush1.bf16.msra.mxu0 %v4300
    %4457 = vmatprep.subr.bf16.mxu0 %v4305
    %4458 = vmatpush1.bf16.msra.mxu0 %v4304
    %4459 = vmatprep.subr.bf16.mxu0 %v4309
    %4460 = vmatpush1.bf16.msra.mxu0 %v4308
    %4461 = vmatprep.subr.bf16.mxu0 %v4313
    %4462 = vmatpush1.bf16.msra.mxu0 %v4312
    %4463 = vmatprep.subr.bf16.mxu0 %v4317
    %4464 = vmatpush1.bf16.msra.mxu0 %v4316
    %4465 = vmatprep.subr.bf16.mxu0 %v4321
    %4466 = vmatpush1.bf16.msra.mxu0 %v4320
    %4467 = vmatprep.subr.bf16.mxu0 %v4325
    %4468 = vmatpush1.bf16.msra.mxu0 %v4324
    %4469 = vmatprep.subr.bf16.mxu0 %v4329
    %4470 = vmatpush1.bf16.msra.mxu0 %v4328
    %4471 = vmatprep.subr.bf16.mxu0 %v4333
    %4472 = vmatpush1.bf16.msra.mxu0 %v4332
    %4473 = vmatprep.subr.bf16.mxu0 %v4337
    %4474 = vmatpush1.bf16.msra.mxu0 %v4336
    %4475 = vmatprep.subr.bf16.mxu0 %v4341
    %4476 = vmatpush1.bf16.msra.mxu0 %v4340
    %4477 = vmatprep.subr.bf16.mxu0 %v4345
    %4478 = vmatpush1.bf16.msra.mxu0 %v4344
    %4479 = vmatprep.subr.bf16.mxu0 %v4349
    %4480 = vmatpush1.bf16.msra.mxu0 %v4348
    %4481 = vmatprep.subr.bf16.mxu0 %v4353
    %4482 = vmatpush1.bf16.msra.mxu0 %v4352
    %4483 = vmatprep.subr.bf16.mxu0 %v4357
    %4484 = vmatpush1.bf16.msra.mxu0 %v4356
    %4485 = vmatprep.mubr.bf16.mxu0 %v4387
    %4486 = vmatmul.mubr.bf16.gmra.mrb[0].mxu0 %v4386
    %v4487 = vpop.f32.mrb[0].mxu0
    %v4488 = vadd.f32 %v4435, %v4487
    %v4489 = vpop.f32.mrb[0].mxu0
    %v4490 = vadd.f32 %v4437, %v4489
    %v4491 = vpop.f32.mrb[0].mxu0
    %v4492 = vadd.f32 %v4439, %v4491
    %v4493 = vpop.f32.mrb[0].mxu0
    %v4494 = vadd.f32 %v4441, %v4493
    %4495 = vmatprep.mubr.bf16.mxu0 %v4391
    %4496 = vmatmul.mubr.bf16.gmra.mrb[0].mxu0 %v4390
    %v4497 = vpop.f32.mrb[0].mxu0
    %v4498 = vadd.f32 %v4445, %v4497
    %v4499 = vpop.f32.mrb[0].mxu0
    %v4500 = vadd.f32 %v4447, %v4499
    %v4501 = vpop.f32.mrb[0].mxu0
    %v4502 = vadd.f32 %v4449, %v4501
    %v4503 = vpop.f32.mrb[0].mxu0
    %v4504 = vadd.f32 %v4451, %v4503
    %4505 = vdwg.mxu0
    %4506 = vmatprep.subr.bf16.mxu0 %v4235
    %4507 = vmatpush1.bf16.msra.mxu0 %v4234
    %4508 = vmatprep.subr.bf16.mxu0 %v4239
    %4509 = vmatpush1.bf16.msra.mxu0 %v4238
    %4510 = vmatprep.subr.bf16.mxu0 %v4243
    %4511 = vmatpush1.bf16.msra.mxu0 %v4242
    %4512 = vmatprep.subr.bf16.mxu0 %v4247
    %4513 = vmatpush1.bf16.msra.mxu0 %v4246
    %4514 = vmatprep.subr.bf16.mxu0 %v4251
    %4515 = vmatpush1.bf16.msra.mxu0 %v4250
    %4516 = vmatprep.subr.bf16.mxu0 %v4255
    %4517 = vmatpush1.bf16.msra.mxu0 %v4254
    %4518 = vmatprep.subr.bf16.mxu0 %v4259
    %4519 = vmatpush1.bf16.msra.mxu0 %v4258
    %4520 = vmatprep.subr.bf16.mxu0 %v4263
    %4521 = vmatpush1.bf16.msra.mxu0 %v4262
    %4522 = vmatprep.subr.bf16.mxu0 %v4267
    %4523 = vmatpush1.bf16.msra.mxu0 %v4266
    %4524 = vmatprep.subr.bf16.mxu0 %v4271
    %4525 = vmatpush1.bf16.msra.mxu0 %v4270
    %4526 = vmatprep.subr.bf16.mxu0 %v4275
    %4527 = vmatpush1.bf16.msra.mxu0 %v4274
    %4528 = vmatprep.subr.bf16.mxu0 %v4279
    %4529 = vmatpush1.bf16.msra.mxu0 %v4278
    %4530 = vmatprep.subr.bf16.mxu0 %v4283
    %4531 = vmatpush1.bf16.msra.mxu0 %v4282
    %4532 = vmatprep.subr.bf16.mxu0 %v4287
    %4533 = vmatpush1.bf16.msra.mxu0 %v4286
    %4534 = vmatprep.subr.bf16.mxu0 %v4291
    %4535 = vmatpush1.bf16.msra.mxu0 %v4290
    %4536 = vmatprep.subr.bf16.mxu0 %v4295
    %4537 = vmatpush1.bf16.msra.mxu0 %v4294
    %4538 = vmatprep.mubr.bf16.mxu0 %v4385
    %4539 = vmatmul.mubr.bf16.gmra.mrb[0].mxu0 %v4384
    %v4540 = vpop.f32.mrb[0].mxu0
    %v4541 = vadd.f32 0.0, %v4540
    %v4542 = vpop.f32.mrb[0].mxu0
    %v4543 = vadd.f32 0.0, %v4542
    %v4544 = vpop.f32.mrb[0].mxu0
    %v4545 = vadd.f32 0.0, %v4544
    %v4546 = vpop.f32.mrb[0].mxu0
    %v4547 = vadd.f32 0.0, %v4546
    %4548 = vmatprep.mubr.bf16.mxu0 %v4389
    %4549 = vmatmul.mubr.bf16.gmra.mrb[0].mxu0 %v4388
    %v4550 = vpop.f32.mrb[0].mxu0
    %v4551 = vadd.f32 0.0, %v4550
    %v4552 = vpop.f32.mrb[0].mxu0
    %v4553 = vadd.f32 0.0, %v4552
    %v4554 = vpop.f32.mrb[0].mxu0
    %v4555 = vadd.f32 0.0, %v4554
    %v4556 = vpop.f32.mrb[0].mxu0
    %v4557 = vadd.f32 0.0, %v4556
    %4558 = vdwg.mxu0
    %4559 = vmatprep.subr.bf16.mxu0 %v4299
    %4560 = vmatpush1.bf16.msra.mxu0 %v4298
    %4561 = vmatprep.subr.bf16.mxu0 %v4303
    %4562 = vmatpush1.bf16.msra.mxu0 %v4302
    %4563 = vmatprep.subr.bf16.mxu0 %v4307
    %4564 = vmatpush1.bf16.msra.mxu0 %v4306
    %4565 = vmatprep.subr.bf16.mxu0 %v4311
    %4566 = vmatpush1.bf16.msra.mxu0 %v4310
    %4567 = vmatprep.subr.bf16.mxu0 %v4315
    %4568 = vmatpush1.bf16.msra.mxu0 %v4314
    %4569 = vmatprep.subr.bf16.mxu0 %v4319
    %4570 = vmatpush1.bf16.msra.mxu0 %v4318
    %4571 = vmatprep.subr.bf16.mxu0 %v4323
    %4572 = vmatpush1.bf16.msra.mxu0 %v4322
    %4573 = vmatprep.subr.bf16.mxu0 %v4327
    %4574 = vmatpush1.bf16.msra.mxu0 %v4326
    %4575 = vmatprep.subr.bf16.mxu0 %v4331
    %4576 = vmatpush1.bf16.msra.mxu0 %v4330
    %4577 = vmatprep.subr.bf16.mxu0 %v4335
    %4578 = vmatpush1.bf16.msra.mxu0 %v4334
    %4579 = vmatprep.subr.bf16.mxu0 %v4339
    %4580 = vmatpush1.bf16.msra.mxu0 %v4338
    %4581 = vmatprep.subr.bf16.mxu0 %v4343
    %4582 = vmatpush1.bf16.msra.mxu0 %v4342
    %4583 = vmatprep.subr.bf16.mxu0 %v4347
    %4584 = vmatpush1.bf16.msra.mxu0 %v4346
    %4585 = vmatprep.subr.bf16.mxu0 %v4351
    %4586 = vmatpush1.bf16.msra.mxu0 %v4350
    %4587 = vmatprep.subr.bf16.mxu0 %v4355
    %4588 = vmatpush1.bf16.msra.mxu0 %v4354
    %4589 = vmatprep.subr.bf16.mxu0 %v4359
    %4590 = vmatpush1.bf16.msra.mxu0 %v4358
    %4591 = vmatprep.mubr.bf16.mxu0 %v4387
    %4592 = vmatmul.mubr.bf16.gmra.mrb[0].mxu0 %v4386
    %v4593 = vpop.f32.mrb[0].mxu0
    %v4594 = vadd.f32 %v4541, %v4593
    %v4595 = vpop.f32.mrb[0].mxu0
    %v4596 = vadd.f32 %v4543, %v4595
    %v4597 = vpop.f32.mrb[0].mxu0
    %v4598 = vadd.f32 %v4545, %v4597
    %v4599 = vpop.f32.mrb[0].mxu0
    %v4600 = vadd.f32 %v4547, %v4599
    %4601 = vmatprep.mubr.bf16.mxu0 %v4391
    %4602 = vmatmul.mubr.bf16.gmra.mrb[0].mxu0 %v4390
    %v4603 = vpop.f32.mrb[0].mxu0
    %v4604 = vadd.f32 %v4551, %v4603
    %v4605 = vpop.f32.mrb[0].mxu0
    %v4606 = vadd.f32 %v4553, %v4605
    %v4607 = vpop.f32.mrb[0].mxu0
    %v4608 = vadd.f32 %v4555, %v4607
    %v4609 = vpop.f32.mrb[0].mxu0
    %v4610 = vadd.f32 %v4557, %v4609
    %4611 = vdwg.mxu0
    %v4612 = vunpack.c.l.b16 %v4020
    %v4613 = vunpack.c.h.b16 %v4020
    %v4614 = vunpack.c.l.b16 %v4034
    %v4615 = vunpack.c.h.b16 %v4034
    %v4616 = vunpack.c.l.b16 %v4044
    %v4617 = vunpack.c.h.b16 %v4044
    %v4618 = vunpack.c.l.b16 %v4054
    %v4619 = vunpack.c.h.b16 %v4054
    %v4620 = vunpack.c.l.b16 %v4068
    %v4621 = vunpack.c.h.b16 %v4068
    %v4622 = vunpack.c.l.b16 %v4082
    %v4623 = vunpack.c.h.b16 %v4082
    %v4624 = vunpack.c.l.b16 %v4092
    %v4625 = vunpack.c.h.b16 %v4092
    %v4626 = vunpack.c.l.b16 %v4102
    %v4627 = vunpack.c.h.b16 %v4102
    %v4628 = vpack.c.b16 %v4616, %v4612
    %v4629 = vpack.c.b16 %v4617, %v4613
    %v4630 = vpack.c.b16 %v4618, %v4614
    %v4631 = vpack.c.b16 %v4619, %v4615
    %v4632 = vpack.c.b16 %v4624, %v4620
    %v4633 = vpack.c.b16 %v4625, %v4621
    %v4634 = vpack.c.b16 %v4626, %v4622
    %v4635 = vpack.c.b16 %v4627, %v4623
    %4644 = vmatprep.subr.bf16.mxu0 %v4105
    %4645 = vmatpush1.bf16.msra.mxu0 %v4104
    %4646 = vmatprep.subr.bf16.mxu0 %v4109
    %4647 = vmatpush1.bf16.msra.mxu0 %v4108
    %4648 = vmatprep.subr.bf16.mxu0 %v4113
    %4649 = vmatpush1.bf16.msra.mxu0 %v4112
    %4650 = vmatprep.subr.bf16.mxu0 %v4117
    %4651 = vmatpush1.bf16.msra.mxu0 %v4116
    %4652 = vmatprep.subr.bf16.mxu0 %v4121
    %4653 = vmatpush1.bf16.msra.mxu0 %v4120
    %4654 = vmatprep.subr.bf16.mxu0 %v4125
    %4655 = vmatpush1.bf16.msra.mxu0 %v4124
    %4656 = vmatprep.subr.bf16.mxu0 %v4129
    %4657 = vmatpush1.bf16.msra.mxu0 %v4128
    %4658 = vmatprep.subr.bf16.mxu0 %v4133
    %4659 = vmatpush1.bf16.msra.mxu0 %v4132
    %4660 = vmatprep.subr.bf16.mxu0 %v4137
    %4661 = vmatpush1.bf16.msra.mxu0 %v4136
    %4662 = vmatprep.subr.bf16.mxu0 %v4141
    %4663 = vmatpush1.bf16.msra.mxu0 %v4140
    %4664 = vmatprep.subr.bf16.mxu0 %v4145
    %4665 = vmatpush1.bf16.msra.mxu0 %v4144
    %4666 = vmatprep.subr.bf16.mxu0 %v4149
    %4667 = vmatpush1.bf16.msra.mxu0 %v4148
    %4668 = vmatprep.subr.bf16.mxu0 %v4153
    %4669 = vmatpush1.bf16.msra.mxu0 %v4152
    %4670 = vmatprep.subr.bf16.mxu0 %v4157
    %4671 = vmatpush1.bf16.msra.mxu0 %v4156
    %4672 = vmatprep.subr.bf16.mxu0 %v4161
    %4673 = vmatpush1.bf16.msra.mxu0 %v4160
    %4674 = vmatprep.subr.bf16.mxu0 %v4165
    %4675 = vmatpush1.bf16.msra.mxu0 %v4164
    %4676 = vmatprep.mubr.bf16.mxu0 %v4629
    %4677 = vmatmul.mubr.bf16.gmra.mrb[0].mxu0 %v4628
    %v4678 = vpop.f32.mrb[0].mxu0
    %v4679 = vadd.f32 %v4488, %v4678
    %v4680 = vpop.f32.mrb[0].mxu0
    %v4681 = vadd.f32 %v4490, %v4680
    %v4682 = vpop.f32.mrb[0].mxu0
    %v4683 = vadd.f32 %v4492, %v4682
    %v4684 = vpop.f32.mrb[0].mxu0
    %v4685 = vadd.f32 %v4494, %v4684
    %4686 = vmatprep.mubr.bf16.mxu0 %v4633
    %4687 = vmatmul.mubr.bf16.gmra.mrb[0].mxu0 %v4632
    %v4688 = vpop.f32.mrb[0].mxu0
    %v4689 = vadd.f32 %v4498, %v4688
    %v4690 = vpop.f32.mrb[0].mxu0
    %v4691 = vadd.f32 %v4500, %v4690
    %v4692 = vpop.f32.mrb[0].mxu0
    %v4693 = vadd.f32 %v4502, %v4692
    %v4694 = vpop.f32.mrb[0].mxu0
    %v4695 = vadd.f32 %v4504, %v4694
    %4696 = vdwg.mxu0
    %4697 = vmatprep.subr.bf16.mxu0 %v4169
    %4698 = vmatpush1.bf16.msra.mxu0 %v4168
    %4699 = vmatprep.subr.bf16.mxu0 %v4173
    %4700 = vmatpush1.bf16.msra.mxu0 %v4172
    %4701 = vmatprep.subr.bf16.mxu0 %v4177
    %4702 = vmatpush1.bf16.msra.mxu0 %v4176
    %4703 = vmatprep.subr.bf16.mxu0 %v4181
    %4704 = vmatpush1.bf16.msra.mxu0 %v4180
    %4705 = vmatprep.subr.bf16.mxu0 %v4185
    %4706 = vmatpush1.bf16.msra.mxu0 %v4184
    %4707 = vmatprep.subr.bf16.mxu0 %v4189
    %4708 = vmatpush1.bf16.msra.mxu0 %v4188
    %4709 = vmatprep.subr.bf16.mxu0 %v4193
    %4710 = vmatpush1.bf16.msra.mxu0 %v4192
    %4711 = vmatprep.subr.bf16.mxu0 %v4197
    %4712 = vmatpush1.bf16.msra.mxu0 %v4196
    %4713 = vmatprep.subr.bf16.mxu0 %v4201
    %4714 = vmatpush1.bf16.msra.mxu0 %v4200
    %4715 = vmatprep.subr.bf16.mxu0 %v4205
    %4716 = vmatpush1.bf16.msra.mxu0 %v4204
    %4717 = vmatprep.subr.bf16.mxu0 %v4209
    %4718 = vmatpush1.bf16.msra.mxu0 %v4208
    %4719 = vmatprep.subr.bf16.mxu0 %v4213
    %4720 = vmatpush1.bf16.msra.mxu0 %v4212
    %4721 = vmatprep.subr.bf16.mxu0 %v4217
    %4722 = vmatpush1.bf16.msra.mxu0 %v4216
    %4723 = vmatprep.subr.bf16.mxu0 %v4221
    %4724 = vmatpush1.bf16.msra.mxu0 %v4220
    %4725 = vmatprep.subr.bf16.mxu0 %v4225
    %4726 = vmatpush1.bf16.msra.mxu0 %v4224
    %4727 = vmatprep.subr.bf16.mxu0 %v4229
    %4728 = vmatpush1.bf16.msra.mxu0 %v4228
    %4729 = vmatprep.mubr.bf16.mxu0 %v4631
    %4730 = vmatmul.mubr.bf16.gmra.mrb[0].mxu0 %v4630
    %v4731 = vpop.f32.mrb[0].mxu0
    %v4732 = vadd.f32 %v4679, %v4731
    %v4733 = vpop.f32.mrb[0].mxu0
    %v4734 = vadd.f32 %v4681, %v4733
    %v4735 = vpop.f32.mrb[0].mxu0
    %v4736 = vadd.f32 %v4683, %v4735
    %v4737 = vpop.f32.mrb[0].mxu0
    %v4738 = vadd.f32 %v4685, %v4737
    %4739 = vmatprep.mubr.bf16.mxu0 %v4635
    %4740 = vmatmul.mubr.bf16.gmra.mrb[0].mxu0 %v4634
    %v4741 = vpop.f32.mrb[0].mxu0
    %v4742 = vadd.f32 %v4689, %v4741
    %v4743 = vpop.f32.mrb[0].mxu0
    %v4744 = vadd.f32 %v4691, %v4743
    %v4745 = vpop.f32.mrb[0].mxu0
    %v4746 = vadd.f32 %v4693, %v4745
    %v4747 = vpop.f32.mrb[0].mxu0
    %v4748 = vadd.f32 %v4695, %v4747
    %4749 = vdwg.mxu0
    %4750 = vmatprep.subr.bf16.mxu0 %v4107
    %4751 = vmatpush1.bf16.msra.mxu0 %v4106
    %4752 = vmatprep.subr.bf16.mxu0 %v4111
    %4753 = vmatpush1.bf16.msra.mxu0 %v4110
    %4754 = vmatprep.subr.bf16.mxu0 %v4115
    %4755 = vmatpush1.bf16.msra.mxu0 %v4114
    %4756 = vmatprep.subr.bf16.mxu0 %v4119
    %4757 = vmatpush1.bf16.msra.mxu0 %v4118
    %4758 = vmatprep.subr.bf16.mxu0 %v4123
    %4759 = vmatpush1.bf16.msra.mxu0 %v4122
    %4760 = vmatprep.subr.bf16.mxu0 %v4127
    %4761 = vmatpush1.bf16.msra.mxu0 %v4126
    %4762 = vmatprep.subr.bf16.mxu0 %v4131
    %4763 = vmatpush1.bf16.msra.mxu0 %v4130
    %4764 = vmatprep.subr.bf16.mxu0 %v4135
    %4765 = vmatpush1.bf16.msra.mxu0 %v4134
    %4766 = vmatprep.subr.bf16.mxu0 %v4139
    %4767 = vmatpush1.bf16.msra.mxu0 %v4138
    %4768 = vmatprep.subr.bf16.mxu0 %v4143
    %4769 = vmatpush1.bf16.msra.mxu0 %v4142
    %4770 = vmatprep.subr.bf16.mxu0 %v4147
    %4771 = vmatpush1.bf16.msra.mxu0 %v4146
    %4772 = vmatprep.subr.bf16.mxu0 %v4151
    %4773 = vmatpush1.bf16.msra.mxu0 %v4150
    %4774 = vmatprep.subr.bf16.mxu0 %v4155
    %4775 = vmatpush1.bf16.msra.mxu0 %v4154
    %4776 = vmatprep.subr.bf16.mxu0 %v4159
    %4777 = vmatpush1.bf16.msra.mxu0 %v4158
    %4778 = vmatprep.subr.bf16.mxu0 %v4163
    %4779 = vmatpush1.bf16.msra.mxu0 %v4162
    %4780 = vmatprep.subr.bf16.mxu0 %v4167
    %4781 = vmatpush1.bf16.msra.mxu0 %v4166
    %4782 = vmatprep.mubr.bf16.mxu0 %v4629
    %4783 = vmatmul.mubr.bf16.gmra.mrb[0].mxu0 %v4628
    %v4784 = vpop.f32.mrb[0].mxu0
    %v4785 = vadd.f32 %v4594, %v4784
    %v4786 = vpop.f32.mrb[0].mxu0
    %v4787 = vadd.f32 %v4596, %v4786
    %v4788 = vpop.f32.mrb[0].mxu0
    %v4789 = vadd.f32 %v4598, %v4788
    %v4790 = vpop.f32.mrb[0].mxu0
    %v4791 = vadd.f32 %v4600, %v4790
    %4792 = vmatprep.mubr.bf16.mxu0 %v4633
    %4793 = vmatmul.mubr.bf16.gmra.mrb[0].mxu0 %v4632
    %v4794 = vpop.f32.mrb[0].mxu0
    %v4795 = vadd.f32 %v4604, %v4794
    %v4796 = vpop.f32.mrb[0].mxu0
    %v4797 = vadd.f32 %v4606, %v4796
    %v4798 = vpop.f32.mrb[0].mxu0
    %v4799 = vadd.f32 %v4608, %v4798
    %v4800 = vpop.f32.mrb[0].mxu0
    %v4801 = vadd.f32 %v4610, %v4800
    %4802 = vdwg.mxu0
    %4803 = vmatprep.subr.bf16.mxu0 %v4171
    %4804 = vmatpush1.bf16.msra.mxu0 %v4170
    %4805 = vmatprep.subr.bf16.mxu0 %v4175
    %4806 = vmatpush1.bf16.msra.mxu0 %v4174
    %4807 = vmatprep.subr.bf16.mxu0 %v4179
    %4808 = vmatpush1.bf16.msra.mxu0 %v4178
    %4809 = vmatprep.subr.bf16.mxu0 %v4183
    %4810 = vmatpush1.bf16.msra.mxu0 %v4182
    %4811 = vmatprep.subr.bf16.mxu0 %v4187
    %4812 = vmatpush1.bf16.msra.mxu0 %v4186
    %4813 = vmatprep.subr.bf16.mxu0 %v4191
    %4814 = vmatpush1.bf16.msra.mxu0 %v4190
    %4815 = vmatprep.subr.bf16.mxu0 %v4195
    %4816 = vmatpush1.bf16.msra.mxu0 %v4194
    %4817 = vmatprep.subr.bf16.mxu0 %v4199
    %4818 = vmatpush1.bf16.msra.mxu0 %v4198
    %4819 = vmatprep.subr.bf16.mxu0 %v4203
    %4820 = vmatpush1.bf16.msra.mxu0 %v4202
    %4821 = vmatprep.subr.bf16.mxu0 %v4207
    %4822 = vmatpush1.bf16.msra.mxu0 %v4206
    %4823 = vmatprep.subr.bf16.mxu0 %v4211
    %4824 = vmatpush1.bf16.msra.mxu0 %v4210
    %4825 = vmatprep.subr.bf16.mxu0 %v4215
    %4826 = vmatpush1.bf16.msra.mxu0 %v4214
    %4827 = vmatprep.subr.bf16.mxu0 %v4219
    %4828 = vmatpush1.bf16.msra.mxu0 %v4218
    %4829 = vmatprep.subr.bf16.mxu0 %v4223
    %4830 = vmatpush1.bf16.msra.mxu0 %v4222
    %4831 = vmatprep.subr.bf16.mxu0 %v4227
    %4832 = vmatpush1.bf16.msra.mxu0 %v4226
    %4833 = vmatprep.subr.bf16.mxu0 %v4231
    %4834 = vmatpush1.bf16.msra.mxu0 %v4230
    %4835 = vmatprep.mubr.bf16.mxu0 %v4631
    %4836 = vmatmul.mubr.bf16.gmra.mrb[0].mxu0 %v4630
    %v4837 = vpop.f32.mrb[0].mxu0
    %v4838 = vadd.f32 %v4785, %v4837
    %v4839 = vpop.f32.mrb[0].mxu0
    %v4840 = vadd.f32 %v4787, %v4839
    %v4841 = vpop.f32.mrb[0].mxu0
    %v4842 = vadd.f32 %v4789, %v4841
    %v4843 = vpop.f32.mrb[0].mxu0
    %v4844 = vadd.f32 %v4791, %v4843
    %4845 = vmatprep.mubr.bf16.mxu0 %v4635
    %4846 = vmatmul.mubr.bf16.gmra.mrb[0].mxu0 %v4634
    %v4847 = vpop.f32.mrb[0].mxu0
    %v4848 = vadd.f32 %v4795, %v4847
    %v4849 = vpop.f32.mrb[0].mxu0
    %v4850 = vadd.f32 %v4797, %v4849
    %v4851 = vpop.f32.mrb[0].mxu0
    %v4852 = vadd.f32 %v4799, %v4851
    %v4853 = vpop.f32.mrb[0].mxu0
    %v4854 = vadd.f32 %v4801, %v4853
    %4855 = vdwg.mxu0
    %v4856 = vld [vmem:[#allocation3] sm:$0xee]
    %v4857 = vld [vmem:[#allocation3 + $0x8] sm:$0xee]
    %v4858 = vld [vmem:[#allocation3 + $0x30] sm:$0xee]
    %v4859 = vld [vmem:[#allocation3 + $0x38] sm:$0xee]
    %v4868 = vrot.slane %v4856, 5
    %v4869 = vrot.slane %v4868, 4
    %v4870 = vrot.slane %v3997, 5
    %v4871 = vsel %vm2286, %v4869, %v4870
    %v4872 = vrot.slane %v4857, 5
    %v4873 = vrot.slane %v4872, 4
    %v4874 = vrot.slane %v3998, 5
    %v4875 = vsel %vm2286, %v4873, %v4874
    %v4876 = vrot.slane %v4870, 4
    %v4877 = vrot.slane %v3999, 5
    %v4878 = vsel %vm2286, %v4876, %v4877
    %v4879 = vrot.slane %v4874, 4
    %v4880 = vrot.slane %v4000, 5
    %v4881 = vsel %vm2286, %v4879, %v4880
    %v4882 = vrot.slane %v4858, 5
    %v4883 = vrot.slane %v4882, 4
    %v4884 = vrot.slane %v4003, 5
    %v4885 = vsel %vm2286, %v4883, %v4884
    %v4886 = vrot.slane %v4859, 5
    %v4887 = vrot.slane %v4886, 4
    %v4888 = vrot.slane %v4004, 5
    %v4889 = vsel %vm2286, %v4887, %v4888
    %v4890 = vrot.slane %v4884, 4
    %v4891 = vrot.slane %v4005, 5
    %v4892 = vsel %vm2286, %v4890, %v4891
    %v4893 = vrot.slane %v4888, 4
    %v4894 = vrot.slane %v4006, 5
    %v4895 = vsel %vm2286, %v4893, %v4894
    %s4896 = scalar_lea.vmem [#allocation2], 2048
    %v4897 = vld [vmem:[%s4896] sm:$0xff]
    %v4898 = vld [vmem:[%s4896 + $0x8] sm:$0xff]
    %v4899 = vld [vmem:[%s4896 + $0x10] sm:$0xff]
    %v4900 = vld [vmem:[%s4896 + $0x18] sm:$0xff]
    %v4901 = vld [vmem:[%s4896 + $0x20] sm:$0xff]
    %v4902 = vld [vmem:[%s4896 + $0x28] sm:$0xff]
    %v4903 = vld [vmem:[%s4896 + $0x30] sm:$0xff]
    %v4904 = vld [vmem:[%s4896 + $0x38] sm:$0xff]
    %v4905 = vld [vmem:[%s4896 + $0x40] sm:$0xff]
    %v4906 = vld [vmem:[%s4896 + $0x48] sm:$0xff]
    %v4907 = vld [vmem:[%s4896 + $0x50] sm:$0xff]
    %v4908 = vld [vmem:[%s4896 + $0x58] sm:$0xff]
    %v4909 = vld [vmem:[%s4896 + $0x60] sm:$0xff]
    %v4910 = vld [vmem:[%s4896 + $0x68] sm:$0xff]
    %v4911 = vld [vmem:[%s4896 + $0x70] sm:$0xff]
    %v4912 = vld [vmem:[%s4896 + $0x78] sm:$0xff]
    %v4913 = vld [vmem:[%s4896 + $0x80] sm:$0xff]
    %v4914 = vld [vmem:[%s4896 + $0x88] sm:$0xff]
    %v4915 = vld [vmem:[%s4896 + $0x90] sm:$0xff]
    %v4916 = vld [vmem:[%s4896 + $0x98] sm:$0xff]
    %v4917 = vld [vmem:[%s4896 + $0xa0] sm:$0xff]
    %v4918 = vld [vmem:[%s4896 + $0xa8] sm:$0xff]
    %v4919 = vld [vmem:[%s4896 + $0xb0] sm:$0xff]
    %v4920 = vld [vmem:[%s4896 + $0xb8] sm:$0xff]
    %v4921 = vld [vmem:[%s4896 + $0xc0] sm:$0xff]
    %v4922 = vld [vmem:[%s4896 + $0xc8] sm:$0xff]
    %v4923 = vld [vmem:[%s4896 + $0xd0] sm:$0xff]
    %v4924 = vld [vmem:[%s4896 + $0xd8] sm:$0xff]
    %v4925 = vld [vmem:[%s4896 + $0xe0] sm:$0xff]
    %v4926 = vld [vmem:[%s4896 + $0xe8] sm:$0xff]
    %v4927 = vld [vmem:[%s4896 + $0xf0] sm:$0xff]
    %v4928 = vld [vmem:[%s4896 + $0xf8] sm:$0xff]
    %v4929 = vld [vmem:[%s4896 + $0x100] sm:$0xff]
    %v4930 = vld [vmem:[%s4896 + $0x108] sm:$0xff]
    %v4931 = vld [vmem:[%s4896 + $0x110] sm:$0xff]
    %v4932 = vld [vmem:[%s4896 + $0x118] sm:$0xff]
    %v4933 = vld [vmem:[%s4896 + $0x120] sm:$0xff]
    %v4934 = vld [vmem:[%s4896 + $0x128] sm:$0xff]
    %v4935 = vld [vmem:[%s4896 + $0x130] sm:$0xff]
    %v4936 = vld [vmem:[%s4896 + $0x138] sm:$0xff]
    %v4937 = vld [vmem:[%s4896 + $0x140] sm:$0xff]
    %v4938 = vld [vmem:[%s4896 + $0x148] sm:$0xff]
    %v4939 = vld [vmem:[%s4896 + $0x150] sm:$0xff]
    %v4940 = vld [vmem:[%s4896 + $0x158] sm:$0xff]
    %v4941 = vld [vmem:[%s4896 + $0x160] sm:$0xff]
    %v4942 = vld [vmem:[%s4896 + $0x168] sm:$0xff]
    %v4943 = vld [vmem:[%s4896 + $0x170] sm:$0xff]
    %v4944 = vld [vmem:[%s4896 + $0x178] sm:$0xff]
    %v4945 = vld [vmem:[%s4896 + $0x180] sm:$0xff]
    %v4946 = vld [vmem:[%s4896 + $0x188] sm:$0xff]
    %v4947 = vld [vmem:[%s4896 + $0x190] sm:$0xff]
    %v4948 = vld [vmem:[%s4896 + $0x198] sm:$0xff]
    %v4949 = vld [vmem:[%s4896 + $0x1a0] sm:$0xff]
    %v4950 = vld [vmem:[%s4896 + $0x1a8] sm:$0xff]
    %v4951 = vld [vmem:[%s4896 + $0x1b0] sm:$0xff]
    %v4952 = vld [vmem:[%s4896 + $0x1b8] sm:$0xff]
    %v4953 = vld [vmem:[%s4896 + $0x1c0] sm:$0xff]
    %v4954 = vld [vmem:[%s4896 + $0x1c8] sm:$0xff]
    %v4955 = vld [vmem:[%s4896 + $0x1d0] sm:$0xff]
    %v4956 = vld [vmem:[%s4896 + $0x1d8] sm:$0xff]
    %v4957 = vld [vmem:[%s4896 + $0x1e0] sm:$0xff]
    %v4958 = vld [vmem:[%s4896 + $0x1e8] sm:$0xff]
    %v4959 = vld [vmem:[%s4896 + $0x1f0] sm:$0xff]
    %v4960 = vld [vmem:[%s4896 + $0x1f8] sm:$0xff]
    %v4961 = vld [vmem:[%s4896 + $0x200] sm:$0xff]
    %v4962 = vld [vmem:[%s4896 + $0x208] sm:$0xff]
    %v4963 = vld [vmem:[%s4896 + $0x210] sm:$0xff]
    %v4964 = vld [vmem:[%s4896 + $0x218] sm:$0xff]
    %v4965 = vld [vmem:[%s4896 + $0x220] sm:$0xff]
    %v4966 = vld [vmem:[%s4896 + $0x228] sm:$0xff]
    %v4967 = vld [vmem:[%s4896 + $0x230] sm:$0xff]
    %v4968 = vld [vmem:[%s4896 + $0x238] sm:$0xff]
    %v4969 = vld [vmem:[%s4896 + $0x240] sm:$0xff]
    %v4970 = vld [vmem:[%s4896 + $0x248] sm:$0xff]
    %v4971 = vld [vmem:[%s4896 + $0x250] sm:$0xff]
    %v4972 = vld [vmem:[%s4896 + $0x258] sm:$0xff]
    %v4973 = vld [vmem:[%s4896 + $0x260] sm:$0xff]
    %v4974 = vld [vmem:[%s4896 + $0x268] sm:$0xff]
    %v4975 = vld [vmem:[%s4896 + $0x270] sm:$0xff]
    %v4976 = vld [vmem:[%s4896 + $0x278] sm:$0xff]
    %v4977 = vld [vmem:[%s4896 + $0x280] sm:$0xff]
    %v4978 = vld [vmem:[%s4896 + $0x288] sm:$0xff]
    %v4979 = vld [vmem:[%s4896 + $0x290] sm:$0xff]
    %v4980 = vld [vmem:[%s4896 + $0x298] sm:$0xff]
    %v4981 = vld [vmem:[%s4896 + $0x2a0] sm:$0xff]
    %v4982 = vld [vmem:[%s4896 + $0x2a8] sm:$0xff]
    %v4983 = vld [vmem:[%s4896 + $0x2b0] sm:$0xff]
    %v4984 = vld [vmem:[%s4896 + $0x2b8] sm:$0xff]
    %v4985 = vld [vmem:[%s4896 + $0x2c0] sm:$0xff]
    %v4986 = vld [vmem:[%s4896 + $0x2c8] sm:$0xff]
    %v4987 = vld [vmem:[%s4896 + $0x2d0] sm:$0xff]
    %v4988 = vld [vmem:[%s4896 + $0x2d8] sm:$0xff]
    %v4989 = vld [vmem:[%s4896 + $0x2e0] sm:$0xff]
    %v4990 = vld [vmem:[%s4896 + $0x2e8] sm:$0xff]
    %v4991 = vld [vmem:[%s4896 + $0x2f0] sm:$0xff]
    %v4992 = vld [vmem:[%s4896 + $0x2f8] sm:$0xff]
    %v4993 = vld [vmem:[%s4896 + $0x300] sm:$0xff]
    %v4994 = vld [vmem:[%s4896 + $0x308] sm:$0xff]
    %v4995 = vld [vmem:[%s4896 + $0x310] sm:$0xff]
    %v4996 = vld [vmem:[%s4896 + $0x318] sm:$0xff]
    %v4997 = vld [vmem:[%s4896 + $0x320] sm:$0xff]
    %v4998 = vld [vmem:[%s4896 + $0x328] sm:$0xff]
    %v4999 = vld [vmem:[%s4896 + $0x330] sm:$0xff]
    %v5000 = vld [vmem:[%s4896 + $0x338] sm:$0xff]
    %v5001 = vld [vmem:[%s4896 + $0x340] sm:$0xff]
    %v5002 = vld [vmem:[%s4896 + $0x348] sm:$0xff]
    %v5003 = vld [vmem:[%s4896 + $0x350] sm:$0xff]
    %v5004 = vld [vmem:[%s4896 + $0x358] sm:$0xff]
    %v5005 = vld [vmem:[%s4896 + $0x360] sm:$0xff]
    %v5006 = vld [vmem:[%s4896 + $0x368] sm:$0xff]
    %v5007 = vld [vmem:[%s4896 + $0x370] sm:$0xff]
    %v5008 = vld [vmem:[%s4896 + $0x378] sm:$0xff]
    %v5009 = vld [vmem:[%s4896 + $0x380] sm:$0xff]
    %v5010 = vld [vmem:[%s4896 + $0x388] sm:$0xff]
    %v5011 = vld [vmem:[%s4896 + $0x390] sm:$0xff]
    %v5012 = vld [vmem:[%s4896 + $0x398] sm:$0xff]
    %v5013 = vld [vmem:[%s4896 + $0x3a0] sm:$0xff]
    %v5014 = vld [vmem:[%s4896 + $0x3a8] sm:$0xff]
    %v5015 = vld [vmem:[%s4896 + $0x3b0] sm:$0xff]
    %v5016 = vld [vmem:[%s4896 + $0x3b8] sm:$0xff]
    %v5017 = vld [vmem:[%s4896 + $0x3c0] sm:$0xff]
    %v5018 = vld [vmem:[%s4896 + $0x3c8] sm:$0xff]
    %v5019 = vld [vmem:[%s4896 + $0x3d0] sm:$0xff]
    %v5020 = vld [vmem:[%s4896 + $0x3d8] sm:$0xff]
    %v5021 = vld [vmem:[%s4896 + $0x3e0] sm:$0xff]
    %v5022 = vld [vmem:[%s4896 + $0x3e8] sm:$0xff]
    %v5023 = vld [vmem:[%s4896 + $0x3f0] sm:$0xff]
    %v5024 = vld [vmem:[%s4896 + $0x3f8] sm:$0xff]
    %v5025 = vunpack.c.l.b16 %v4871
    %v5026 = vunpack.c.h.b16 %v4871
    %v5027 = vunpack.c.l.b16 %v4875
    %v5028 = vunpack.c.h.b16 %v4875
    %v5029 = vunpack.c.l.b16 %v4878
    %v5030 = vunpack.c.h.b16 %v4878
    %v5031 = vunpack.c.l.b16 %v4881
    %v5032 = vunpack.c.h.b16 %v4881
    %v5033 = vunpack.c.l.b16 %v4885
    %v5034 = vunpack.c.h.b16 %v4885
    %v5035 = vunpack.c.l.b16 %v4889
    %v5036 = vunpack.c.h.b16 %v4889
    %v5037 = vunpack.c.l.b16 %v4892
    %v5038 = vunpack.c.h.b16 %v4892
    %v5039 = vunpack.c.l.b16 %v4895
    %v5040 = vunpack.c.h.b16 %v4895
    %v5041 = vpack.c.b16 %v5029, %v5025
    %v5042 = vpack.c.b16 %v5030, %v5026
    %v5043 = vpack.c.b16 %v5031, %v5027
    %v5044 = vpack.c.b16 %v5032, %v5028
    %v5045 = vpack.c.b16 %v5037, %v5033
    %v5046 = vpack.c.b16 %v5038, %v5034
    %v5047 = vpack.c.b16 %v5039, %v5035
    %v5048 = vpack.c.b16 %v5040, %v5036
    %5057 = vmatprep.subr.bf16.mxu0 %v4898
    %5058 = vmatpush1.bf16.msra.mxu0 %v4897
    %5059 = vmatprep.subr.bf16.mxu0 %v4902
    %5060 = vmatpush1.bf16.msra.mxu0 %v4901
    %5061 = vmatprep.subr.bf16.mxu0 %v4906
    %5062 = vmatpush1.bf16.msra.mxu0 %v4905
    %5063 = vmatprep.subr.bf16.mxu0 %v4910
    %5064 = vmatpush1.bf16.msra.mxu0 %v4909
    %5065 = vmatprep.subr.bf16.mxu0 %v4914
    %5066 = vmatpush1.bf16.msra.mxu0 %v4913
    %5067 = vmatprep.subr.bf16.mxu0 %v4918
    %5068 = vmatpush1.bf16.msra.mxu0 %v4917
    %5069 = vmatprep.subr.bf16.mxu0 %v4922
    %5070 = vmatpush1.bf16.msra.mxu0 %v4921
    %5071 = vmatprep.subr.bf16.mxu0 %v4926
    %5072 = vmatpush1.bf16.msra.mxu0 %v4925
    %5073 = vmatprep.subr.bf16.mxu0 %v4930
    %5074 = vmatpush1.bf16.msra.mxu0 %v4929
    %5075 = vmatprep.subr.bf16.mxu0 %v4934
    %5076 = vmatpush1.bf16.msra.mxu0 %v4933
    %5077 = vmatprep.subr.bf16.mxu0 %v4938
    %5078 = vmatpush1.bf16.msra.mxu0 %v4937
    %5079 = vmatprep.subr.bf16.mxu0 %v4942
    %5080 = vmatpush1.bf16.msra.mxu0 %v4941
    %5081 = vmatprep.subr.bf16.mxu0 %v4946
    %5082 = vmatpush1.bf16.msra.mxu0 %v4945
    %5083 = vmatprep.subr.bf16.mxu0 %v4950
    %5084 = vmatpush1.bf16.msra.mxu0 %v4949
    %5085 = vmatprep.subr.bf16.mxu0 %v4954
    %5086 = vmatpush1.bf16.msra.mxu0 %v4953
    %5087 = vmatprep.subr.bf16.mxu0 %v4958
    %5088 = vmatpush1.bf16.msra.mxu0 %v4957
    %5089 = vmatprep.mubr.bf16.mxu0 %v5042
    %5090 = vmatmul.mubr.bf16.gmra.mrb[0].mxu0 %v5041
    %v5091 = vpop.f32.mrb[0].mxu0
    %v5092 = vadd.f32 0.0, %v5091
    %v5093 = vpop.f32.mrb[0].mxu0
    %v5094 = vadd.f32 0.0, %v5093
    %v5095 = vpop.f32.mrb[0].mxu0
    %v5096 = vadd.f32 0.0, %v5095
    %v5097 = vpop.f32.mrb[0].mxu0
    %v5098 = vadd.f32 0.0, %v5097
    %5099 = vmatprep.mubr.bf16.mxu0 %v5046
    %5100 = vmatmul.mubr.bf16.gmra.mrb[0].mxu0 %v5045
    %v5101 = vpop.f32.mrb[0].mxu0
    %v5102 = vadd.f32 0.0, %v5101
    %v5103 = vpop.f32.mrb[0].mxu0
    %v5104 = vadd.f32 0.0, %v5103
    %v5105 = vpop.f32.mrb[0].mxu0
    %v5106 = vadd.f32 0.0, %v5105
    %v5107 = vpop.f32.mrb[0].mxu0
    %v5108 = vadd.f32 0.0, %v5107
    %5109 = vdwg.mxu0
    %5110 = vmatprep.subr.bf16.mxu0 %v4962
    %5111 = vmatpush1.bf16.msra.mxu0 %v4961
    %5112 = vmatprep.subr.bf16.mxu0 %v4966
    %5113 = vmatpush1.bf16.msra.mxu0 %v4965
    %5114 = vmatprep.subr.bf16.mxu0 %v4970
    %5115 = vmatpush1.bf16.msra.mxu0 %v4969
    %5116 = vmatprep.subr.bf16.mxu0 %v4974
    %5117 = vmatpush1.bf16.msra.mxu0 %v4973
    %5118 = vmatprep.subr.bf16.mxu0 %v4978
    %5119 = vmatpush1.bf16.msra.mxu0 %v4977
    %5120 = vmatprep.subr.bf16.mxu0 %v4982
    %5121 = vmatpush1.bf16.msra.mxu0 %v4981
    %5122 = vmatprep.subr.bf16.mxu0 %v4986
    %5123 = vmatpush1.bf16.msra.mxu0 %v4985
    %5124 = vmatprep.subr.bf16.mxu0 %v4990
    %5125 = vmatpush1.bf16.msra.mxu0 %v4989
    %5126 = vmatprep.subr.bf16.mxu0 %v4994
    %5127 = vmatpush1.bf16.msra.mxu0 %v4993
    %5128 = vmatprep.subr.bf16.mxu0 %v4998
    %5129 = vmatpush1.bf16.msra.mxu0 %v4997
    %5130 = vmatprep.subr.bf16.mxu0 %v5002
    %5131 = vmatpush1.bf16.msra.mxu0 %v5001
    %5132 = vmatprep.subr.bf16.mxu0 %v5006
    %5133 = vmatpush1.bf16.msra.mxu0 %v5005
    %5134 = vmatprep.subr.bf16.mxu0 %v5010
    %5135 = vmatpush1.bf16.msra.mxu0 %v5009
    %5136 = vmatprep.subr.bf16.mxu0 %v5014
    %5137 = vmatpush1.bf16.msra.mxu0 %v5013
    %5138 = vmatprep.subr.bf16.mxu0 %v5018
    %5139 = vmatpush1.bf16.msra.mxu0 %v5017
    %5140 = vmatprep.subr.bf16.mxu0 %v5022
    %5141 = vmatpush1.bf16.msra.mxu0 %v5021
    %5142 = vmatprep.mubr.bf16.mxu0 %v5044
    %5143 = vmatmul.mubr.bf16.gmra.mrb[0].mxu0 %v5043
    %v5144 = vpop.f32.mrb[0].mxu0
    %v5145 = vadd.f32 %v5092, %v5144
    %v5146 = vpop.f32.mrb[0].mxu0
    %v5147 = vadd.f32 %v5094, %v5146
    %v5148 = vpop.f32.mrb[0].mxu0
    %v5149 = vadd.f32 %v5096, %v5148
    %v5150 = vpop.f32.mrb[0].mxu0
    %v5151 = vadd.f32 %v5098, %v5150
    %5152 = vmatprep.mubr.bf16.mxu0 %v5048
    %5153 = vmatmul.mubr.bf16.gmra.mrb[0].mxu0 %v5047
    %v5154 = vpop.f32.mrb[0].mxu0
    %v5155 = vadd.f32 %v5102, %v5154
    %v5156 = vpop.f32.mrb[0].mxu0
    %v5157 = vadd.f32 %v5104, %v5156
    %v5158 = vpop.f32.mrb[0].mxu0
    %v5159 = vadd.f32 %v5106, %v5158
    %v5160 = vpop.f32.mrb[0].mxu0
    %v5161 = vadd.f32 %v5108, %v5160
    %5162 = vdwg.mxu0
    %5163 = vmatprep.subr.bf16.mxu0 %v4900
    %5164 = vmatpush1.bf16.msra.mxu0 %v4899
    %5165 = vmatprep.subr.bf16.mxu0 %v4904
    %5166 = vmatpush1.bf16.msra.mxu0 %v4903
    %5167 = vmatprep.subr.bf16.mxu0 %v4908
    %5168 = vmatpush1.bf16.msra.mxu0 %v4907
    %5169 = vmatprep.subr.bf16.mxu0 %v4912
    %5170 = vmatpush1.bf16.msra.mxu0 %v4911
    %5171 = vmatprep.subr.bf16.mxu0 %v4916
    %5172 = vmatpush1.bf16.msra.mxu0 %v4915
    %5173 = vmatprep.subr.bf16.mxu0 %v4920
    %5174 = vmatpush1.bf16.msra.mxu0 %v4919
    %5175 = vmatprep.subr.bf16.mxu0 %v4924
    %5176 = vmatpush1.bf16.msra.mxu0 %v4923
    %5177 = vmatprep.subr.bf16.mxu0 %v4928
    %5178 = vmatpush1.bf16.msra.mxu0 %v4927
    %5179 = vmatprep.subr.bf16.mxu0 %v4932
    %5180 = vmatpush1.bf16.msra.mxu0 %v4931
    %5181 = vmatprep.subr.bf16.mxu0 %v4936
    %5182 = vmatpush1.bf16.msra.mxu0 %v4935
    %5183 = vmatprep.subr.bf16.mxu0 %v4940
    %5184 = vmatpush1.bf16.msra.mxu0 %v4939
    %5185 = vmatprep.subr.bf16.mxu0 %v4944
    %5186 = vmatpush1.bf16.msra.mxu0 %v4943
    %5187 = vmatprep.subr.bf16.mxu0 %v4948
    %5188 = vmatpush1.bf16.msra.mxu0 %v4947
    %5189 = vmatprep.subr.bf16.mxu0 %v4952
    %5190 = vmatpush1.bf16.msra.mxu0 %v4951
    %5191 = vmatprep.subr.bf16.mxu0 %v4956
    %5192 = vmatpush1.bf16.msra.mxu0 %v4955
    %5193 = vmatprep.subr.bf16.mxu0 %v4960
    %5194 = vmatpush1.bf16.msra.mxu0 %v4959
    %5195 = vmatprep.mubr.bf16.mxu0 %v5042
    %5196 = vmatmul.mubr.bf16.gmra.mrb[0].mxu0 %v5041
    %v5197 = vpop.f32.mrb[0].mxu0
    %v5198 = vadd.f32 0.0, %v5197
    %v5199 = vpop.f32.mrb[0].mxu0
    %v5200 = vadd.f32 0.0, %v5199
    %v5201 = vpop.f32.mrb[0].mxu0
    %v5202 = vadd.f32 0.0, %v5201
    %v5203 = vpop.f32.mrb[0].mxu0
    %v5204 = vadd.f32 0.0, %v5203
    %5205 = vmatprep.mubr.bf16.mxu0 %v5046
    %5206 = vmatmul.mubr.bf16.gmra.mrb[0].mxu0 %v5045
    %v5207 = vpop.f32.mrb[0].mxu0
    %v5208 = vadd.f32 0.0, %v5207
    %v5209 = vpop.f32.mrb[0].mxu0
    %v5210 = vadd.f32 0.0, %v5209
    %v5211 = vpop.f32.mrb[0].mxu0
    %v5212 = vadd.f32 0.0, %v5211
    %v5213 = vpop.f32.mrb[0].mxu0
    %v5214 = vadd.f32 0.0, %v5213
    %5215 = vdwg.mxu0
    %5216 = vmatprep.subr.bf16.mxu0 %v4964
    %5217 = vmatpush1.bf16.msra.mxu0 %v4963
    %5218 = vmatprep.subr.bf16.mxu0 %v4968
    %5219 = vmatpush1.bf16.msra.mxu0 %v4967
    %5220 = vmatprep.subr.bf16.mxu0 %v4972
    %5221 = vmatpush1.bf16.msra.mxu0 %v4971
    %5222 = vmatprep.subr.bf16.mxu0 %v4976
    %5223 = vmatpush1.bf16.msra.mxu0 %v4975
    %5224 = vmatprep.subr.bf16.mxu0 %v4980
    %5225 = vmatpush1.bf16.msra.mxu0 %v4979
    %5226 = vmatprep.subr.bf16.mxu0 %v4984
    %5227 = vmatpush1.bf16.msra.mxu0 %v4983
    %5228 = vmatprep.subr.bf16.mxu0 %v4988
    %5229 = vmatpush1.bf16.msra.mxu0 %v4987
    %5230 = vmatprep.subr.bf16.mxu0 %v4992
    %5231 = vmatpush1.bf16.msra.mxu0 %v4991
    %5232 = vmatprep.subr.bf16.mxu0 %v4996
    %5233 = vmatpush1.bf16.msra.mxu0 %v4995
    %5234 = vmatprep.subr.bf16.mxu0 %v5000
    %5235 = vmatpush1.bf16.msra.mxu0 %v4999
    %5236 = vmatprep.subr.bf16.mxu0 %v5004
    %5237 = vmatpush1.bf16.msra.mxu0 %v5003
    %5238 = vmatprep.subr.bf16.mxu0 %v5008
    %5239 = vmatpush1.bf16.msra.mxu0 %v5007
    %5240 = vmatprep.subr.bf16.mxu0 %v5012
    %5241 = vmatpush1.bf16.msra.mxu0 %v5011
    %5242 = vmatprep.subr.bf16.mxu0 %v5016
    %5243 = vmatpush1.bf16.msra.mxu0 %v5015
    %5244 = vmatprep.subr.bf16.mxu0 %v5020
    %5245 = vmatpush1.bf16.msra.mxu0 %v5019
    %5246 = vmatprep.subr.bf16.mxu0 %v5024
    %5247 = vmatpush1.bf16.msra.mxu0 %v5023
    %5248 = vmatprep.mubr.bf16.mxu0 %v5044
    %5249 = vmatmul.mubr.bf16.gmra.mrb[0].mxu0 %v5043
    %v5250 = vpop.f32.mrb[0].mxu0
    %v5251 = vadd.f32 %v5198, %v5250
    %v5252 = vpop.f32.mrb[0].mxu0
    %v5253 = vadd.f32 %v5200, %v5252
    %v5254 = vpop.f32.mrb[0].mxu0
    %v5255 = vadd.f32 %v5202, %v5254
    %v5256 = vpop.f32.mrb[0].mxu0
    %v5257 = vadd.f32 %v5204, %v5256
    %5258 = vmatprep.mubr.bf16.mxu0 %v5048
    %5259 = vmatmul.mubr.bf16.gmra.mrb[0].mxu0 %v5047
    %v5260 = vpop.f32.mrb[0].mxu0
    %v5261 = vadd.f32 %v5208, %v5260
    %v5262 = vpop.f32.mrb[0].mxu0
    %v5263 = vadd.f32 %v5210, %v5262
    %v5264 = vpop.f32.mrb[0].mxu0
    %v5265 = vadd.f32 %v5212, %v5264
    %v5266 = vpop.f32.mrb[0].mxu0
    %v5267 = vadd.f32 %v5214, %v5266
    %5268 = vdwg.mxu0
    %v5269 = vadd.f32 %v4732, %v5145
    %v5270 = vadd.f32 %v4734, %v5147
    %v5271 = vadd.f32 %v4838, %v5251
    %v5272 = vadd.f32 %v4840, %v5253
    %v5273 = vadd.f32 %v4736, %v5149
    %v5274 = vadd.f32 %v4738, %v5151
    %v5275 = vadd.f32 %v4842, %v5255
    %v5276 = vadd.f32 %v4844, %v5257
    %v5277 = vadd.f32 %v4742, %v5155
    %v5278 = vadd.f32 %v4744, %v5157
    %v5279 = vadd.f32 %v4848, %v5261
    %v5280 = vadd.f32 %v4850, %v5263
    %v5281 = vadd.f32 %v4746, %v5159
    %v5282 = vadd.f32 %v4748, %v5161
    %v5283 = vadd.f32 %v4852, %v5265
    %v5284 = vadd.f32 %v4854, %v5267
    %v5285 = vadd.f32 %v5269, %v5273
    %v5286 = vadd.f32 %v5285, %v5277
    %v5287 = vadd.f32 %v5286, %v5281
    %v5288 = vrot.slane %v5287, 4
    %v5289 = vadd.f32 %v5287, %v5288
    %v5290 = vrot.slane %v5289, 2
    %v5291 = vadd.f32 %v5289, %v5290
    %v5292 = vrot.slane %v5291, 1
    %v5293 = vadd.f32 %v5291, %v5292
    %v5294 = vadd.f32 %v5270, %v5274
    %v5295 = vadd.f32 %v5294, %v5278
    %v5296 = vadd.f32 %v5295, %v5282
    %v5297 = vrot.slane %v5296, 4
    %v5298 = vadd.f32 %v5296, %v5297
    %v5299 = vrot.slane %v5298, 2
    %v5300 = vadd.f32 %v5298, %v5299
    %v5301 = vrot.slane %v5300, 1
    %v5302 = vadd.f32 %v5300, %v5301
    %v5303 = vadd.f32 %v5271, %v5275
    %v5304 = vadd.f32 %v5303, %v5279
    %v5305 = vadd.f32 %v5304, %v5283
    %v5306 = vrot.slane %v5305, 4
    %v5307 = vadd.f32 %v5305, %v5306
    %v5308 = vrot.slane %v5307, 2
    %v5309 = vadd.f32 %v5307, %v5308
    %v5310 = vrot.slane %v5309, 1
    %v5311 = vadd.f32 %v5309, %v5310
    %v5312 = vadd.f32 %v5272, %v5276
    %v5313 = vadd.f32 %v5312, %v5280
    %v5314 = vadd.f32 %v5313, %v5284
    %v5315 = vrot.slane %v5314, 4
    %v5316 = vadd.f32 %v5314, %v5315
    %v5317 = vrot.slane %v5316, 2
    %v5318 = vadd.f32 %v5316, %v5317
    %v5319 = vrot.slane %v5318, 1
    %v5320 = vadd.f32 %v5318, %v5319
    %v5321 = vmul.f32 %v5269, %v5269
    %v5322 = vmul.f32 %v5270, %v5270
    %v5323 = vmul.f32 %v5271, %v5271
    %v5324 = vmul.f32 %v5272, %v5272
    %v5325 = vmul.f32 %v5273, %v5273
    %v5326 = vmul.f32 %v5274, %v5274
    %v5327 = vmul.f32 %v5275, %v5275
    %v5328 = vmul.f32 %v5276, %v5276
    %v5329 = vmul.f32 %v5277, %v5277
    %v5330 = vmul.f32 %v5278, %v5278
    %v5331 = vmul.f32 %v5279, %v5279
    %v5332 = vmul.f32 %v5280, %v5280
    %v5333 = vmul.f32 %v5281, %v5281
    %v5334 = vmul.f32 %v5282, %v5282
    %v5335 = vmul.f32 %v5283, %v5283
    %v5336 = vmul.f32 %v5284, %v5284
    %v5337 = vadd.f32 %v5321, %v5325
    %v5338 = vadd.f32 %v5337, %v5329
    %v5339 = vadd.f32 %v5338, %v5333
    %v5340 = vrot.slane %v5339, 4
    %v5341 = vadd.f32 %v5339, %v5340
    %v5342 = vrot.slane %v5341, 2
    %v5343 = vadd.f32 %v5341, %v5342
    %v5344 = vrot.slane %v5343, 1
    %v5345 = vadd.f32 %v5343, %v5344
    %v5346 = vadd.f32 %v5322, %v5326
    %v5347 = vadd.f32 %v5346, %v5330
    %v5348 = vadd.f32 %v5347, %v5334
    %v5349 = vrot.slane %v5348, 4
    %v5350 = vadd.f32 %v5348, %v5349
    %v5351 = vrot.slane %v5350, 2
    %v5352 = vadd.f32 %v5350, %v5351
    %v5353 = vrot.slane %v5352, 1
    %v5354 = vadd.f32 %v5352, %v5353
    %v5355 = vadd.f32 %v5323, %v5327
    %v5356 = vadd.f32 %v5355, %v5331
    %v5357 = vadd.f32 %v5356, %v5335
    %v5358 = vrot.slane %v5357, 4
    %v5359 = vadd.f32 %v5357, %v5358
    %v5360 = vrot.slane %v5359, 2
    %v5361 = vadd.f32 %v5359, %v5360
    %v5362 = vrot.slane %v5361, 1
    %v5363 = vadd.f32 %v5361, %v5362
    %v5364 = vadd.f32 %v5324, %v5328
    %v5365 = vadd.f32 %v5364, %v5332
    %v5366 = vadd.f32 %v5365, %v5336
    %v5367 = vrot.slane %v5366, 4
    %v5368 = vadd.f32 %v5366, %v5367
    %v5369 = vrot.slane %v5368, 2
    %v5370 = vadd.f32 %v5368, %v5369
    %v5371 = vrot.slane %v5370, 1
    %v5372 = vadd.f32 %v5370, %v5371
    %v5373 = vsel %vm3496, %v5293, %v5345
    %v5374 = vsel %vm3496, %v5302, %v5354
    %v5375 = vsel %vm3496, %v5311, %v5363
    %v5376 = vsel %vm3496, %v5320, %v5372
    %5377 = vmatprep.subr.mxu0 0.0
    %5378 = vmatpush1.msra.mxu0 %v3344
    %5379 = vmatprep.subr.mxu0 0.0
    %5380 = vmatpush1.msra.mxu0 %v3345
    %5381 = vmatprep.subr.mxu0 0.0
    %5382 = vmatpush1.msra.mxu0 %v3346
    %5383 = vmatprep.subr.mxu0 0.0
    %5384 = vmatpush1.msra.mxu0 %v3347
    %5385 = vmatprep.subr.mxu0 0.0
    %5386 = vmatpush1.msra.mxu0 %v3348
    %5387 = vmatprep.subr.mxu0 0.0
    %5388 = vmatpush1.msra.mxu0 %v3349
    %5389 = vmatprep.subr.mxu0 0.0
    %5390 = vmatpush1.msra.mxu0 %v3350
    %5391 = vmatprep.subr.mxu0 0.0
    %5392 = vmatpush1.msra.mxu0 %v3351
    %5393 = vmatprep.subr.mxu0 0.0
    %5394 = vmatpush1.msra.mxu0 %v3352
    %5395 = vmatprep.subr.mxu0 0.0
    %5396 = vmatpush1.msra.mxu0 %v3353
    %5397 = vmatprep.subr.mxu0 0.0
    %5398 = vmatpush1.msra.mxu0 %v3354
    %5399 = vmatprep.subr.mxu0 0.0
    %5400 = vmatpush1.msra.mxu0 %v3355
    %5401 = vmatprep.subr.mxu0 0.0
    %5402 = vmatpush1.msra.mxu0 %v3356
    %5403 = vmatprep.subr.mxu0 0.0
    %5404 = vmatpush1.msra.mxu0 %v3357
    %5405 = vmatprep.subr.mxu0 0.0
    %5406 = vmatpush1.msra.mxu0 %v3358
    %5407 = vmatprep.subr.mxu0 0.0
    %5408 = vmatpush1.msra.mxu0 %v3359
    %5409 = vmatprep.subr.mxu0 0.0
    %5410 = vmatpush1.msra.mxu0 %v3360
    %5411 = vmatprep.subr.mxu0 0.0
    %5412 = vmatpush1.msra.mxu0 %v3361
    %5413 = vmatprep.subr.mxu0 0.0
    %5414 = vmatpush1.msra.mxu0 %v3362
    %5415 = vmatprep.subr.mxu0 0.0
    %5416 = vmatpush1.msra.mxu0 %v3363
    %5417 = vmatprep.subr.mxu0 0.0
    %5418 = vmatpush1.msra.mxu0 %v3364
    %5419 = vmatprep.subr.mxu0 0.0
    %5420 = vmatpush1.msra.mxu0 %v3365
    %5421 = vmatprep.subr.mxu0 0.0
    %5422 = vmatpush1.msra.mxu0 %v3366
    %5423 = vmatprep.subr.mxu0 0.0
    %5424 = vmatpush1.msra.mxu0 %v3367
    %5425 = vmatprep.subr.mxu0 0.0
    %5426 = vmatpush1.msra.mxu0 %v3368
    %5427 = vmatprep.subr.mxu0 0.0
    %5428 = vmatpush1.msra.mxu0 %v3369
    %5429 = vmatprep.subr.mxu0 0.0
    %5430 = vmatpush1.msra.mxu0 %v3370
    %5431 = vmatprep.subr.mxu0 0.0
    %5432 = vmatpush1.msra.mxu0 %v3371
    %5433 = vmatprep.subr.mxu0 0.0
    %5434 = vmatpush1.msra.mxu0 %v3372
    %5435 = vmatprep.subr.mxu0 0.0
    %5436 = vmatpush1.msra.mxu0 %v3373
    %5437 = vmatprep.subr.mxu0 0.0
    %5438 = vmatpush1.msra.mxu0 %v3374
    %5439 = vmatprep.subr.mxu0 0.0
    %5440 = vmatpush1.msra.mxu0 %v3375
    %5441 = vmatprep.mubr.f32.mxu0 %v5374
    %5442 = vmatmul.mubr.f32.gmra.mrb[0].mxu0 %v5373
    %v5443 = vpop.f32.mrb[0].mxu0
    %v5444 = vadd.f32 0.0, %v5443
    %v5445 = vpop.f32.mrb[0].mxu0
    %5446 = vdwg.mxu0
    %5447 = vmatprep.subr.mxu0 0.0
    %5448 = vmatpush1.msra.mxu0 %v3376
    %5449 = vmatprep.subr.mxu0 0.0
    %5450 = vmatpush1.msra.mxu0 %v3377
    %5451 = vmatprep.subr.mxu0 0.0
    %5452 = vmatpush1.msra.mxu0 %v3378
    %5453 = vmatprep.subr.mxu0 0.0
    %5454 = vmatpush1.msra.mxu0 %v3379
    %5455 = vmatprep.subr.mxu0 0.0
    %5456 = vmatpush1.msra.mxu0 %v3380
    %5457 = vmatprep.subr.mxu0 0.0
    %5458 = vmatpush1.msra.mxu0 %v3381
    %5459 = vmatprep.subr.mxu0 0.0
    %5460 = vmatpush1.msra.mxu0 %v3382
    %5461 = vmatprep.subr.mxu0 0.0
    %5462 = vmatpush1.msra.mxu0 %v3383
    %5463 = vmatprep.subr.mxu0 0.0
    %5464 = vmatpush1.msra.mxu0 %v3384
    %5465 = vmatprep.subr.mxu0 0.0
    %5466 = vmatpush1.msra.mxu0 %v3385
    %5467 = vmatprep.subr.mxu0 0.0
    %5468 = vmatpush1.msra.mxu0 %v3386
    %5469 = vmatprep.subr.mxu0 0.0
    %5470 = vmatpush1.msra.mxu0 %v3387
    %5471 = vmatprep.subr.mxu0 0.0
    %5472 = vmatpush1.msra.mxu0 %v3388
    %5473 = vmatprep.subr.mxu0 0.0
    %5474 = vmatpush1.msra.mxu0 %v3389
    %5475 = vmatprep.subr.mxu0 0.0
    %5476 = vmatpush1.msra.mxu0 %v3390
    %5477 = vmatprep.subr.mxu0 0.0
    %5478 = vmatpush1.msra.mxu0 %v3391
    %5479 = vmatprep.subr.mxu0 0.0
    %5480 = vmatpush1.msra.mxu0 %v3392
    %5481 = vmatprep.subr.mxu0 0.0
    %5482 = vmatpush1.msra.mxu0 %v3393
    %5483 = vmatprep.subr.mxu0 0.0
    %5484 = vmatpush1.msra.mxu0 %v3394
    %5485 = vmatprep.subr.mxu0 0.0
    %5486 = vmatpush1.msra.mxu0 %v3395
    %5487 = vmatprep.subr.mxu0 0.0
    %5488 = vmatpush1.msra.mxu0 %v3396
    %5489 = vmatprep.subr.mxu0 0.0
    %5490 = vmatpush1.msra.mxu0 %v3397
    %5491 = vmatprep.subr.mxu0 0.0
    %5492 = vmatpush1.msra.mxu0 %v3398
    %5493 = vmatprep.subr.mxu0 0.0
    %5494 = vmatpush1.msra.mxu0 %v3399
    %5495 = vmatprep.subr.mxu0 0.0
    %5496 = vmatpush1.msra.mxu0 %v3400
    %5497 = vmatprep.subr.mxu0 0.0
    %5498 = vmatpush1.msra.mxu0 %v3401
    %5499 = vmatprep.subr.mxu0 0.0
    %5500 = vmatpush1.msra.mxu0 %v3402
    %5501 = vmatprep.subr.mxu0 0.0
    %5502 = vmatpush1.msra.mxu0 %v3403
    %5503 = vmatprep.subr.mxu0 0.0
    %5504 = vmatpush1.msra.mxu0 %v3404
    %5505 = vmatprep.subr.mxu0 0.0
    %5506 = vmatpush1.msra.mxu0 %v3405
    %5507 = vmatprep.subr.mxu0 0.0
    %5508 = vmatpush1.msra.mxu0 %v3406
    %5509 = vmatprep.subr.mxu0 0.0
    %5510 = vmatpush1.msra.mxu0 %v3407
    %5511 = vmatprep.mubr.f32.mxu0 %v5376
    %5512 = vmatmul.mubr.f32.gmra.mrb[0].mxu0 %v5375
    %v5513 = vpop.f32.mrb[0].mxu0
    %v5514 = vadd.f32 %v5444, %v5513
    %v5515 = vpop.f32.mrb[0].mxu0
    %5516 = vdwg.mxu0
    %v5517 = vmul.f32 %v5514, %v3641
    %v5518 = vmul.f32 %v5517, %v5517
    %v5520 = vrot.slane %v5518, 7
    %v5522 = vsub.f32 %v5517, %v5520
    %v5523 = vld [vmem:[#allocation12] sm:$0x1]
    %v5524 = vadd.f32 %v5522, 1e-05
    %v5525 = vrsqrt.pop %v5524
    %v5528 = vunpack.c.l.s4 1966171168
    %v5529 = vunpack.c.0.s8 %v5528
    %v5530 = vlaneseq
    %v5531 = vshrl.u32 %v5530, 7
    %v5532 = vsub.s32 %v5529, %v5531
    %v5533 = vrot.slane %v5525, %v5532
    %v5534 = vcombine.high %v5533, %v5533
    %v5536 = vunpack.c.l.s4 1966171168
    %v5537 = vunpack.c.0.s8 %v5536
    %v5538 = vlaneseq
    %v5539 = vshrl.u32 %v5538, 7
    %v5540 = vsub.s32 %v5537, %v5539
    %v5541 = vrot.slane %v5534, %v5540
    %v5543 = vmul.f32 %v5523, %v5541
    %v5544 = vld [vmem:[#allocation14] sm:$0x1]
    %v5545 = vmul.f32 %v5517, %v5543
    %v5546 = vsub.f32 %v5544, %v5545
    %v5548 = vlaneseq
    %v5549 = vshrl.u32 %v5548, 7
    %v5550 = vsub.s32 0, %v5549
    %v5551 = vrot.slane %v5543, %v5550
    %5552 = vrot.lane.b32.xlu0 %v5551, 32
    %v5553 = vpop.permute.xlu0 %5552
    %5555 = vrot.lane.b32.xlu0 %v5551, 64
    %v5556 = vpop.permute.xlu0 %5555
    %5558 = vrot.lane.b32.xlu0 %v5551, 96
    %v5559 = vpop.permute.xlu0 %5558
    %v5561 = vsel %vm3686, %v5543, %v5553
    %v5562 = vsel %vm3688, %v5561, %v5556
    %v5563 = vsel %vm3690, %v5562, %v5559
    %v5565 = vlaneseq
    %v5566 = vshrl.u32 %v5565, 7
    %v5567 = vsub.s32 0, %v5566
    %v5568 = vrot.slane %v5546, %v5567
    %5569 = vrot.lane.b32.xlu0 %v5568, 32
    %v5570 = vpop.permute.xlu0 %5569
    %5572 = vrot.lane.b32.xlu0 %v5568, 64
    %v5573 = vpop.permute.xlu0 %5572
    %5575 = vrot.lane.b32.xlu0 %v5568, 96
    %v5576 = vpop.permute.xlu0 %5575
    %v5578 = vsel %vm3686, %v5546, %v5570
    %v5579 = vsel %vm3688, %v5578, %v5573
    %v5580 = vsel %vm3690, %v5579, %v5576
    %v5581 = vld [vmem:[%s0] sm:$0xff]
    %v5582 = vld [vmem:[%s0 + $0x8] sm:$0xff]
    %v5583 = vld [vmem:[%s0 + $0x10] sm:$0xff]
    %v5584 = vld [vmem:[%s0 + $0x18] sm:$0xff]
    %v5585 = vld [vmem:[%s0 + $0x20] sm:$0x11]
    %v5586 = vld [vmem:[%s0 + $0x28] sm:$0x11]
    %v5587 = vld [vmem:[%s0 + $0x30] sm:$0xff]
    %v5588 = vld [vmem:[%s0 + $0x38] sm:$0xff]
    %v5589 = vld [vmem:[%s0 + $0x40] sm:$0xff]
    %v5590 = vld [vmem:[%s0 + $0x48] sm:$0xff]
    %v5591 = vld [vmem:[%s0 + $0x50] sm:$0x11]
    %v5592 = vld [vmem:[%s0 + $0x58] sm:$0x11]
    %v5594 = vshrl.u32 %v5581, 16
    %v5596 = vrot.slane %v5594, 4
    %v5597 = vshll.u32 %v5581, 16
    %v5599 = vrot.slane %v5597, 5
    %v5600 = vor.u32 %v5596, %v5599
    %v5601 = vrot.slane %v5600, 4
    %v5603 = vshll.u32 %v5583, 16
    %v5605 = vrot.slane %v5603, 5
    %v5606 = vsel %vm142, %v5601, %v5605
    %v5608 = vshrl.u32 %v5582, 16
    %v5610 = vrot.slane %v5608, 4
    %v5611 = vshll.u32 %v5582, 16
    %v5613 = vrot.slane %v5611, 5
    %v5614 = vor.u32 %v5610, %v5613
    %v5615 = vrot.slane %v5614, 4
    %v5617 = vshll.u32 %v5584, 16
    %v5619 = vrot.slane %v5617, 5
    %v5620 = vsel %vm142, %v5615, %v5619
    %v5621 = vshrl.u32 %v5583, 16
    %v5623 = vrot.slane %v5621, 4
    %v5624 = vor.u32 %v5623, %v5605
    %v5625 = vrot.slane %v5624, 4
    %v5627 = vshll.u32 %v5585, 16
    %v5629 = vrot.slane %v5627, 5
    %v5630 = vsel %vm142, %v5625, %v5629
    %v5631 = vshrl.u32 %v5584, 16
    %v5633 = vrot.slane %v5631, 4
    %v5634 = vor.u32 %v5633, %v5619
    %v5635 = vrot.slane %v5634, 4
    %v5637 = vshll.u32 %v5586, 16
    %v5639 = vrot.slane %v5637, 5
    %v5640 = vsel %vm142, %v5635, %v5639
    %v5642 = vshrl.u32 %v5587, 16
    %v5644 = vrot.slane %v5642, 4
    %v5645 = vshll.u32 %v5587, 16
    %v5647 = vrot.slane %v5645, 5
    %v5648 = vor.u32 %v5644, %v5647
    %v5649 = vrot.slane %v5648, 4
    %v5651 = vshll.u32 %v5589, 16
    %v5653 = vrot.slane %v5651, 5
    %v5654 = vsel %vm142, %v5649, %v5653
    %v5656 = vshrl.u32 %v5588, 16
    %v5658 = vrot.slane %v5656, 4
    %v5659 = vshll.u32 %v5588, 16
    %v5661 = vrot.slane %v5659, 5
    %v5662 = vor.u32 %v5658, %v5661
    %v5663 = vrot.slane %v5662, 4
    %v5665 = vshll.u32 %v5590, 16
    %v5667 = vrot.slane %v5665, 5
    %v5668 = vsel %vm142, %v5663, %v5667
    %v5669 = vshrl.u32 %v5589, 16
    %v5671 = vrot.slane %v5669, 4
    %v5672 = vor.u32 %v5671, %v5653
    %v5673 = vrot.slane %v5672, 4
    %v5675 = vshll.u32 %v5591, 16
    %v5677 = vrot.slane %v5675, 5
    %v5678 = vsel %vm142, %v5673, %v5677
    %v5679 = vshrl.u32 %v5590, 16
    %v5681 = vrot.slane %v5679, 4
    %v5682 = vor.u32 %v5681, %v5667
    %v5683 = vrot.slane %v5682, 4
    %v5685 = vshll.u32 %v5592, 16
    %v5687 = vrot.slane %v5685, 5
    %v5688 = vsel %vm142, %v5683, %v5687
    %v5697 = vunpack.c.l.bf16 %v5606
    %v5698 = vunpack.c.h.bf16 %v5606
    %v5699 = vunpack.c.l.bf16 %v5620
    %v5700 = vunpack.c.h.bf16 %v5620
    %v5701 = vunpack.c.l.bf16 %v5630
    %v5702 = vunpack.c.h.bf16 %v5630
    %v5703 = vunpack.c.l.bf16 %v5640
    %v5704 = vunpack.c.h.bf16 %v5640
    %v5705 = vunpack.c.l.bf16 %v5654
    %v5706 = vunpack.c.h.bf16 %v5654
    %v5707 = vunpack.c.l.bf16 %v5668
    %v5708 = vunpack.c.h.bf16 %v5668
    %v5709 = vunpack.c.l.bf16 %v5678
    %v5710 = vunpack.c.h.bf16 %v5678
    %v5711 = vunpack.c.l.bf16 %v5688
    %v5712 = vunpack.c.h.bf16 %v5688
    %v5713 = vlaneseq
    %v5714 = vshrl.u32 %v5713, 7
    %v5715 = vsub.s32 0, %v5714
    %v5716 = vrot.slane %v5563, %v5715
    %v5717 = vmul.f32 %v5269, %v5716
    %v5718 = vmul.f32 %v5270, %v5716
    %v5719 = vmul.f32 %v5271, %v5716
    %v5720 = vmul.f32 %v5272, %v5716
    %v5721 = vmul.f32 %v5273, %v5716
    %v5722 = vmul.f32 %v5274, %v5716
    %v5723 = vmul.f32 %v5275, %v5716
    %v5724 = vmul.f32 %v5276, %v5716
    %v5725 = vmul.f32 %v5277, %v5716
    %v5726 = vmul.f32 %v5278, %v5716
    %v5727 = vmul.f32 %v5279, %v5716
    %v5728 = vmul.f32 %v5280, %v5716
    %v5729 = vmul.f32 %v5281, %v5716
    %v5730 = vmul.f32 %v5282, %v5716
    %v5731 = vmul.f32 %v5283, %v5716
    %v5732 = vmul.f32 %v5284, %v5716
    %v5733 = vadd.f32 %v5697, %v5717
    %v5734 = vadd.f32 %v5698, %v5718
    %v5735 = vadd.f32 %v5699, %v5719
    %v5736 = vadd.f32 %v5700, %v5720
    %v5737 = vadd.f32 %v5701, %v5721
    %v5738 = vadd.f32 %v5702, %v5722
    %v5739 = vadd.f32 %v5703, %v5723
    %v5740 = vadd.f32 %v5704, %v5724
    %v5741 = vadd.f32 %v5705, %v5725
    %v5742 = vadd.f32 %v5706, %v5726
    %v5743 = vadd.f32 %v5707, %v5727
    %v5744 = vadd.f32 %v5708, %v5728
    %v5745 = vadd.f32 %v5709, %v5729
    %v5746 = vadd.f32 %v5710, %v5730
    %v5747 = vadd.f32 %v5711, %v5731
    %v5748 = vadd.f32 %v5712, %v5732
    %v5749 = vlaneseq
    %v5750 = vshrl.u32 %v5749, 7
    %v5751 = vsub.s32 0, %v5750
    %v5752 = vrot.slane %v5580, %v5751
    %v5753 = vadd.f32 %v5733, %v5752
    %v5754 = vadd.f32 %v5734, %v5752
    %v5755 = vadd.f32 %v5735, %v5752
    %v5756 = vadd.f32 %v5736, %v5752
    %v5757 = vadd.f32 %v5737, %v5752
    %v5758 = vadd.f32 %v5738, %v5752
    %v5759 = vadd.f32 %v5739, %v5752
    %v5760 = vadd.f32 %v5740, %v5752
    %v5761 = vadd.f32 %v5741, %v5752
    %v5762 = vadd.f32 %v5742, %v5752
    %v5763 = vadd.f32 %v5743, %v5752
    %v5764 = vadd.f32 %v5744, %v5752
    %v5765 = vadd.f32 %v5745, %v5752
    %v5766 = vadd.f32 %v5746, %v5752
    %v5767 = vadd.f32 %v5747, %v5752
    %v5768 = vadd.f32 %v5748, %v5752
    %5769 = vst [vmem:[#allocation15] sm:$0xff] %v5753
    %5770 = vst [vmem:[#allocation15 + $0x8] sm:$0xff] %v5754
    %5771 = vst [vmem:[#allocation15 + $0x10] sm:$0xff] %v5755
    %5772 = vst [vmem:[#allocation15 + $0x18] sm:$0xff] %v5756
    %5773 = vst [vmem:[#allocation15 + $0x20] sm:$0xff] %v5757
    %5774 = vst [vmem:[#allocation15 + $0x28] sm:$0xff] %v5758
    %5775 = vst [vmem:[#allocation15 + $0x30] sm:$0xff] %v5759
    %5776 = vst [vmem:[#allocation15 + $0x38] sm:$0xff] %v5760
    %5777 = vst [vmem:[#allocation15 + $0x40] sm:$0xff] %v5761
    %5778 = vst [vmem:[#allocation15 + $0x48] sm:$0xff] %v5762
    %5779 = vst [vmem:[#allocation15 + $0x50] sm:$0xff] %v5763
    %5780 = vst [vmem:[#allocation15 + $0x58] sm:$0xff] %v5764
    %5781 = vst [vmem:[#allocation15 + $0x60] sm:$0xff] %v5765
    %5782 = vst [vmem:[#allocation15 + $0x68] sm:$0xff] %v5766
    %5783 = vst [vmem:[#allocation15 + $0x70] sm:$0xff] %v5767
    %5784 = vst [vmem:[#allocation15 + $0x78] sm:$0xff] %v5768
    // Predicated region
    $region54: #{tpu_custom_call.1} parent=1 // pred_check
      _
    $region55: #{tpu_custom_call.1} parent=1 // pred_check_branch
      %5786 = sbr.rel (0) target = $region57
    $region56: #{tpu_custom_call.1} parent=1 // pred_region
      %s5788 = ssub.s32 2048, 2048
      %5789 = vsyncadd [#allocation8], %s5788
      %s5790 = sshll.u32 [#allocation15], 4
      %s5791 = int_to_ptr.vmem [resolvable:$true] %s5790
      %5796 = dma.vmem_to_hbm [thread:$0]  %s5791, 2048, %s9, [#allocation8], 512, 512, 32
    $region57: #{tpu_custom_call.1} parent=1 // pred_fallthru
      _
    // Predicated region
    $region58: #{tpu_custom_call.1} parent=1 // pred_check
      _
    $region59: #{tpu_custom_call.1} parent=1 // pred_check_branch
      %5798 = sbr.rel (0) target = $region61
    $region60: #{tpu_custom_call.1} parent=1 // pred_region
      %5799 = dma.done [#allocation8], 2048
    $region61: #{tpu_custom_call.1} parent=1 // pred_fallthru
      _
    %5800 = vsyncpa [#allocation7], 1
    %5801 = vsyncpa [#allocation10], 1
    %5802 = vsyncpa [#allocation13], 1
    %5803 = vsyncpa [#allocation8], 1
  %5804 = vsyncmov [#allocation4]
  %s5805 = vpop.sfrf %5804
  %p5806 = scmp.eq.s32.totalorder %s5805, 0
  %p5807 = pneg %p5806
  %5809 = shalt.err (%p5807)

</llo_original>
